<compile_context>
chip_gen: v5e
topology: v5e:2x2
jax: 0.10.0
libtpu: 0.0.40
codegen_flags: <defaults>
</compile_context>

<pallas_src>
import functools

import jax
import jax.numpy as jnp
from jax.experimental import pallas as pl
from jax.experimental.pallas import tpu as pltpu

HIDDEN_DIM = 128


def _r2d2_kernel(x_ref, w1_ref, b1_ref, wih_ref, whh_ref, bl_ref, wo_ref, bo_ref,
                 y_ref, h_out_ref, c_out_ref,
                 h_state, c_state, gx_scr, hall_scr,
                 *, seq_len, needs_tail_mask):
    """Per grid step shapes:
       x_ref   : (TC, Bblk, Din)     w1_ref : (Din, H)     b1_ref : (1, H)
       wih_ref : (H, 4H)             whh_ref: (H, 4H)      bl_ref : (1, 4H)
       wo_ref  : (H, Dpad)           bo_ref : (1, Dpad)
       y_ref   : (TC, Bblk, Dpad)    h_out_ref / c_out_ref : (Bblk, H)
       h_state / c_state : (Bblk, H) scratch (recurrent state across time chunks)
       gx_scr  : (TC, Bblk, 4H)      hall_scr : (TC, Bblk, H)
       Gate column order in wih/whh/bl is [i, f, o, g] (pre-permuted in wrapper).
    """
    TC, Bblk, Din = x_ref.shape
    H = HIDDEN_DIM
    Dp = wo_ref.shape[1]
    t_chunk = pl.program_id(1)

    # hidden=None in the PyTorch forward -> zero initial state, once per batch block.
    @pl.when(t_chunk == 0)
    def _():
        h_state[...] = jnp.zeros_like(h_state)
        c_state[...] = jnp.zeros_like(c_state)

    # ---- time-independent work, batched over the whole chunk (large MXU matmuls) ----
    # fc1 + ReLU for every timestep of the chunk: (TC*B, Din) @ (Din, H)
    x_all = x_ref[...].reshape(TC * Bblk, Din)
    a_all = jnp.maximum(
        jnp.dot(x_all, w1_ref[...], preferred_element_type=jnp.float32) + b1_ref[...],
        0.0)
    # input->gate pre-activations for every timestep: (TC*B, H) @ (H, 4H)
    gx_scr[...] = (
        jnp.dot(a_all, wih_ref[...], preferred_element_type=jnp.float32) + bl_ref[...]
    ).reshape(TC, Bblk, 4 * H)

    # ---- sequential recurrence: only h @ Whh + gate math remains per step ----
    t_base = t_chunk * TC

    def step(t, carry):
        h, c = carry
        gates = gx_scr[t] + jnp.dot(h, whh_ref[...],
                                    preferred_element_type=jnp.float32)   # (B, 4H)
        ifo = jax.nn.sigmoid(gates[:, 0:3 * H])       # one wide EUP push (i, f, o)
        g_g = jnp.tanh(gates[:, 3 * H:4 * H])
        i_g = ifo[:, 0:H]
        f_g = ifo[:, H:2 * H]
        o_g = ifo[:, 2 * H:3 * H]
        c_new = f_g * c + i_g * g_g
        h_new = o_g * jnp.tanh(c_new)
        if needs_tail_mask:
            # Hold the state on padded tail timesteps (only when seq_len % TC != 0).
            valid = (t_base + t) < seq_len
            h_new = jnp.where(valid, h_new, h)
            c_new = jnp.where(valid, c_new, c)
        hall_scr[t] = h_new
        return (h_new, c_new)

    h, c = jax.lax.fori_loop(0, TC, step, (h_state[...], c_state[...]), unroll=True)
    h_state[...] = h
    c_state[...] = c
    h_out_ref[...] = h
    c_out_ref[...] = c

    # ---- output projection, batched over the chunk, lane-dense (Dout padded to 128) ----
    h_all = hall_scr[...].reshape(TC * Bblk, H)
    y_ref[...] = (
        jnp.dot(h_all, wo_ref[...], preferred_element_type=jnp.float32) + bo_ref[...]
    ).reshape(TC, Bblk, Dp)


def _round_up(x, m):
    return ((x + m - 1) // m) * m


def _permute_gate_rows(w):
    """PyTorch gate order [i, f, g, o] (stacked along first axis) -> [i, f, o, g]."""
    i, f, g, o = jnp.split(w, 4, axis=0)
    return jnp.concatenate([i, f, o, g], axis=0)


def r2d2_forward(x, params, *, time_chunk=32):
    """x: (B, T, in_dim) float32 (batch-first, like the PyTorch module)."""
    B, T, Din = x.shape
    H = HIDDEN_DIM
    Dout = params["w_out"].shape[0]

    # Batch padded to a multiple of 8 (f32 sublanes); big batches split into 64-row
    # blocks so the "parallel" grid axis can shard them across TensorCores (v7x).
    if B <= 64:
        B_blk = max(8, _round_up(B, 8))
    else:
        B_blk = 64
    B_pad = _round_up(B, B_blk)
    nB = B_pad // B_blk

    TC = min(T, time_chunk)          # time chunk streamed per grid step
    nT = pl.cdiv(T, TC)

    D_pad = max(128, _round_up(Dout, 128))   # lane-dense output stores

    # Pre-transpose / pre-combine / gate-permute weights so the kernel does plain
    # row-major matmuls and a single wide sigmoid per step.
    f32 = jnp.float32
    w1 = params["w1"].T.astype(f32)                                        # (Din, H)
    b1 = params["b1"].reshape(1, H).astype(f32)
    wih = _permute_gate_rows(params["w_ih"].astype(f32)).T                 # (H, 4H)
    whh = _permute_gate_rows(params["w_hh"].astype(f32)).T                 # (H, 4H)
    bl = _permute_gate_rows(
        (params["b_ih"] + params["b_hh"]).astype(f32).reshape(4 * H, 1)
    ).reshape(1, 4 * H)
    wo = jnp.zeros((H, D_pad), f32).at[:, :Dout].set(params["w_out"].T.astype(f32))
    bo = jnp.zeros((1, D_pad), f32).at[:, :Dout].set(params["b_out"].astype(f32))

    # Time-major, batch-padded input.
    x_tm = jnp.transpose(x.astype(f32), (1, 0, 2))                         # (T, B, Din)
    if B_pad != B:
        x_tm = jnp.pad(x_tm, ((0, 0), (0, B_pad - B), (0, 0)))

    kernel = functools.partial(_r2d2_kernel, seq_len=T,
                               needs_tail_mask=(nT * TC != T))

    in_specs = [
        pl.BlockSpec((TC, B_blk, Din), lambda b, t: (t, b, 0)),       # x (time chunk)
        pl.BlockSpec((Din, H), lambda b, t: (0, 0)),                  # W1
        pl.BlockSpec((1, H), lambda b, t: (0, 0)),                    # b1
        pl.BlockSpec((H, 4 * H), lambda b, t: (0, 0)),                # W_ih (perm)
        pl.BlockSpec((H, 4 * H), lambda b, t: (0, 0)),                # W_hh (perm)
        pl.BlockSpec((1, 4 * H), lambda b, t: (0, 0)),                # b_ih + b_hh
        pl.BlockSpec((H, D_pad), lambda b, t: (0, 0)),                # W_out (padded)
        pl.BlockSpec((1, D_pad), lambda b, t: (0, 0)),                # b_out (padded)
    ]
    out_specs = (
        pl.BlockSpec((TC, B_blk, D_pad), lambda b, t: (t, b, 0)),     # y (time-major)
        pl.BlockSpec((B_blk, H), lambda b, t: (b, 0)),                # h_n
        pl.BlockSpec((B_blk, H), lambda b, t: (b, 0)),                # c_n
    )

    y_tm, h_n, c_n = pl.pallas_call(
        kernel,
        grid=(nB, nT),
        in_specs=in_specs,
        out_specs=out_specs,
        out_shape=(
            jax.ShapeDtypeStruct((T, B_pad, D_pad), jnp.float32),
            jax.ShapeDtypeStruct((B_pad, H), jnp.float32),
            jax.ShapeDtypeStruct((B_pad, H), jnp.float32),
        ),
        scratch_shapes=[
            pltpu.VMEM((B_blk, H), jnp.float32),           # h carry across chunks
            pltpu.VMEM((B_blk, H), jnp.float32),           # c carry across chunks
            pltpu.VMEM((TC, B_blk, 4 * H), jnp.float32),   # per-chunk gate pre-acts
            pltpu.VMEM((TC, B_blk, H), jnp.float32),       # per-chunk hidden states
        ],
        compiler_params=pltpu.CompilerParams(
            dimension_semantics=("parallel", "arbitrary"),
            vmem_limit_bytes=32 * 1024 * 1024,
        ),
    )(x_tm, w1, b1, wih, whh, bl, wo, bo)

    y = jnp.transpose(y_tm, (1, 0, 2))[:B, :, :Dout]       # (B, T, Dout) batch-first
    hidden = (h_n[None, :B, :], c_n[None, :B, :])          # (1, B, H) each
    return y, hidden


def _reference_forward(x, params):
    """Pure-JAX reference (f32, highest matmul precision) mirroring the PyTorch module."""
    H = HIDDEN_DIM
    hp = jax.lax.Precision.HIGHEST
    a = jax.nn.relu(
        jnp.einsum("btd,hd->bth", x, params["w1"], precision=hp) + params["b1"])
    B, T, _ = x.shape
    h = jnp.zeros((B, H), jnp.float32)
    c = jnp.zeros((B, H), jnp.float32)
    bias = params["b_ih"] + params["b_hh"]
    hs = []
    for t in range(T):
        g = (jnp.einsum("bh,gh->bg", a[:, t], params["w_ih"], precision=hp)
             + jnp.einsum("bh,gh->bg", h, params["w_hh"], precision=hp) + bias)
        i_g = jax.nn.sigmoid(g[:, :H])
        f_g = jax.nn.sigmoid(g[:, H:2 * H])
        g_g = jnp.tanh(g[:, 2 * H:3 * H])
        o_g = jax.nn.sigmoid(g[:, 3 * H:])
        c = f_g * c + i_g * g_g
        h = o_g * jnp.tanh(c)
        hs.append(h)
    hseq = jnp.stack(hs, axis=1)
    y = jnp.einsum("bth,oh->bto", hseq, params["w_out"], precision=hp) + params["b_out"]
    return y, (h[None], c[None])


def init_params(key, in_dim, out_dim):
    """Deterministic synthetic parameters with the same shapes as the PyTorch module."""
    H = HIDDEN_DIM
    ks = jax.random.split(key, 8)
    u = lambda k, shape, s: jax.random.uniform(k, shape, jnp.float32, -s, s)
    return {
        "w1":    u(ks[0], (H, in_dim), 1.0 / jnp.sqrt(in_dim)),
        "b1":    u(ks[1], (H,),        1.0 / jnp.sqrt(in_dim)),
        "w_ih":  u(ks[2], (4 * H, H),  1.0 / jnp.sqrt(H)),
        "w_hh":  u(ks[3], (4 * H, H),  1.0 / jnp.sqrt(H)),
        "b_ih":  u(ks[4], (4 * H,),    1.0 / jnp.sqrt(H)),
        "b_hh":  u(ks[5], (4 * H,),    1.0 / jnp.sqrt(H)),
        "w_out": u(ks[6], (out_dim, H), 1.0 / jnp.sqrt(H)),
        "b_out": u(ks[7], (out_dim,),   1.0 / jnp.sqrt(H)),
    }


if __name__ == "__main__":
    B, T, IN_DIM, OUT_DIM = 2, 8, 16, 8

    key = jax.random.PRNGKey(0)
    k_x, k_p = jax.random.split(key)
    x = jax.random.normal(k_x, (B, T, IN_DIM), jnp.float32)
    params = init_params(k_p, IN_DIM, OUT_DIM)

    y, (h_n, c_n) = jax.jit(r2d2_forward)(x, params)
    jax.block_until_ready((y, h_n, c_n))

    assert y.shape == (B, T, OUT_DIM)
    assert h_n.shape == (1, B, HIDDEN_DIM) and c_n.shape == (1, B, HIDDEN_DIM)
    assert bool(jnp.all(jnp.isfinite(y)))

    # Numerical check against a pure-JAX reference of the same network.
    y_ref, (h_ref, c_ref) = _reference_forward(x, params)
    assert bool(jnp.allclose(y, y_ref, atol=5e-3, rtol=5e-3))
    assert bool(jnp.allclose(h_n, h_ref, atol=5e-3, rtol=5e-3))
    assert bool(jnp.allclose(c_n, c_ref, atol=5e-3, rtol=5e-3))

    print("KERNEL_OK")
</pallas_src>

<mosaic_0001>
module attributes {stable_mosaic.version = 11 : i64} {
  func.func @_r2d2_kernel(%arg0: i32, %arg1: i32, %arg2: memref<8x8x16xf32, #tpu.memory_space<vmem>>, %arg3: memref<16x128xf32, #tpu.memory_space<vmem>>, %arg4: memref<1x128xf32, #tpu.memory_space<vmem>>, %arg5: memref<128x512xf32, #tpu.memory_space<vmem>>, %arg6: memref<128x512xf32, #tpu.memory_space<vmem>>, %arg7: memref<1x512xf32, #tpu.memory_space<vmem>>, %arg8: memref<128x128xf32, #tpu.memory_space<vmem>>, %arg9: memref<1x128xf32, #tpu.memory_space<vmem>>, %arg10: memref<8x8x128xf32, #tpu.memory_space<vmem>>, %arg11: memref<8x128xf32, #tpu.memory_space<vmem>>, %arg12: memref<8x128xf32, #tpu.memory_space<vmem>>, %arg13: memref<8x128xf32, #tpu.memory_space<vmem>>, %arg14: memref<8x128xf32, #tpu.memory_space<vmem>>, %arg15: memref<8x8x512xf32, #tpu.memory_space<vmem>>, %arg16: memref<8x8x128xf32, #tpu.memory_space<vmem>>) attributes {dimension_semantics = [#tpu.dimension_semantics<parallel>, #tpu.dimension_semantics<arbitrary>], iteration_bounds = array<i64: 1, 1>, scalar_prefetch = 0 : i64, scratch_operands = 4 : i64, tpu.core_type = #tpu.core_type<tc>, window_params = [{transform_indices = @transform_0, window_bounds = array<i64: 8, 8, 16>}, {pipeline_mode = #tpu.pipeline_mode<synchronous>, transform_indices = @transform_1, window_bounds = array<i64: 16, 128>}, {pipeline_mode = #tpu.pipeline_mode<synchronous>, transform_indices = @transform_2, window_bounds = array<i64: 1, 128>}, {pipeline_mode = #tpu.pipeline_mode<synchronous>, transform_indices = @transform_3, window_bounds = array<i64: 128, 512>}, {pipeline_mode = #tpu.pipeline_mode<synchronous>, transform_indices = @transform_4, window_bounds = array<i64: 128, 512>}, {pipeline_mode = #tpu.pipeline_mode<synchronous>, transform_indices = @transform_5, window_bounds = array<i64: 1, 512>}, {pipeline_mode = #tpu.pipeline_mode<synchronous>, transform_indices = @transform_6, window_bounds = array<i64: 128, 128>}, {pipeline_mode = #tpu.pipeline_mode<synchronous>, transform_indices = @transform_7, window_bounds = array<i64: 1, 128>}, {transform_indices = @transform_8, window_bounds = array<i64: 8, 8, 128>}, {transform_indices = @transform_9, window_bounds = array<i64: 8, 128>}, {transform_indices = @transform_10, window_bounds = array<i64: 8, 128>}]} {
    %c0_i32 = arith.constant 0 : i32
    %0 = arith.cmpi eq, %arg1, %c0_i32 : i32
    %1 = arith.extui %0 : i1 to i32
    %c0_i32_0 = arith.constant 0 : i32
    %2 = arith.cmpi ne, %1, %c0_i32_0 : i32
    scf.if %2 {
      %cst_104 = arith.constant 0.000000e+00 : f32
      %242 = vector.broadcast %cst_104 : f32 to vector<8x128xf32>
      %c0_105 = arith.constant 0 : index
      %c0_106 = arith.constant 0 : index
      %243 = vector.load %arg13[%c0_105, %c0_106] : memref<8x128xf32, #tpu.memory_space<vmem>>, vector<8x128xf32>
      tpu.vector_store %arg13[%c0_105, %c0_106], %242 {strides = array<i32>} : memref<8x128xf32, #tpu.memory_space<vmem>>, vector<8x128xf32>,
      %cst_107 = arith.constant 0.000000e+00 : f32
      %244 = vector.broadcast %cst_107 : f32 to vector<8x128xf32>
      %c0_108 = arith.constant 0 : index
      %c0_109 = arith.constant 0 : index
      %245 = vector.load %arg14[%c0_108, %c0_109] : memref<8x128xf32, #tpu.memory_space<vmem>>, vector<8x128xf32>
      tpu.vector_store %arg14[%c0_108, %c0_109], %244 {strides = array<i32>} : memref<8x128xf32, #tpu.memory_space<vmem>>, vector<8x128xf32>,
    } else {
    }
    %c0 = arith.constant 0 : index
    %c0_1 = arith.constant 0 : index
    %c0_2 = arith.constant 0 : index
    %3 = vector.load %arg2[%c0, %c0_1, %c0_2] : memref<8x8x16xf32, #tpu.memory_space<vmem>>, vector<8x8x16xf32>
    %4 = vector.shape_cast %3 : vector<8x8x16xf32> to vector<64x16xf32>
    %c0_3 = arith.constant 0 : index
    %c0_4 = arith.constant 0 : index
    %5 = vector.load %arg3[%c0_3, %c0_4] : memref<16x128xf32, #tpu.memory_space<vmem>>, vector<16x128xf32>
    %cst = arith.constant dense<0.000000e+00> : vector<64x128xf32>
    %6 = tpu.matmul %4, %5, %cst {dimension_numbers = #tpu.dot_dimension_numbers<[1], [0], [0], [1], [0, 0, 1, 1], [], []>} : vector<64x16xf32>, vector<16x128xf32>, vector<64x128xf32> -> vector<64x128xf32>
    %c0_5 = arith.constant 0 : index
    %c0_6 = arith.constant 0 : index
    %7 = vector.load %arg4[%c0_5, %c0_6] : memref<1x128xf32, #tpu.memory_space<vmem>>, vector<1x128xf32>
    %8 = vector.broadcast %7 : vector<1x128xf32> to vector<64x128xf32>
    %9 = arith.addf %6, %8 : vector<64x128xf32>
    %cst_7 = arith.constant 0.000000e+00 : f32
    %10 = vector.broadcast %cst_7 : f32 to vector<64x128xf32>
    %11 = arith.maximumf %9, %10 : vector<64x128xf32>
    %c0_8 = arith.constant 0 : index
    %c0_9 = arith.constant 0 : index
    %12 = vector.load %arg5[%c0_8, %c0_9] : memref<128x512xf32, #tpu.memory_space<vmem>>, vector<128x512xf32>
    %cst_10 = arith.constant dense<0.000000e+00> : vector<64x512xf32>
    %13 = tpu.matmul %11, %12, %cst_10 {dimension_numbers = #tpu.dot_dimension_numbers<[1], [0], [0], [1], [0, 0, 1, 1], [], []>} : vector<64x128xf32>, vector<128x512xf32>, vector<64x512xf32> -> vector<64x512xf32>
    %c0_11 = arith.constant 0 : index
    %c0_12 = arith.constant 0 : index
    %14 = vector.load %arg7[%c0_11, %c0_12] : memref<1x512xf32, #tpu.memory_space<vmem>>, vector<1x512xf32>
    %15 = vector.broadcast %14 : vector<1x512xf32> to vector<64x512xf32>
    %16 = arith.addf %13, %15 : vector<64x512xf32>
    %17 = vector.shape_cast %16 : vector<64x512xf32> to vector<8x8x512xf32>
    %c0_13 = arith.constant 0 : index
    %c0_14 = arith.constant 0 : index
    %c0_15 = arith.constant 0 : index
    %18 = vector.load %arg15[%c0_13, %c0_14, %c0_15] : memref<8x8x512xf32, #tpu.memory_space<vmem>>, vector<8x8x512xf32>
    tpu.vector_store %arg15[%c0_13, %c0_14, %c0_15], %17 {strides = array<i32>} : memref<8x8x512xf32, #tpu.memory_space<vmem>>, vector<8x8x512xf32>,
    %c0_16 = arith.constant 0 : index
    %c0_17 = arith.constant 0 : index
    %19 = vector.load %arg13[%c0_16, %c0_17] : memref<8x128xf32, #tpu.memory_space<vmem>>, vector<8x128xf32>
    %c0_18 = arith.constant 0 : index
    %c0_19 = arith.constant 0 : index
    %20 = vector.load %arg14[%c0_18, %c0_19] : memref<8x128xf32, #tpu.memory_space<vmem>>, vector<8x128xf32>
    %c0_i32_20 = arith.constant 0 : i32
    %21 = arith.index_cast %c0_i32_20 : i32 to index
    %c0_21 = arith.constant 0 : index
    %c0_22 = arith.constant 0 : index
    %22 = vector.load %arg15[%21, %c0_21, %c0_22] : memref<8x8x512xf32, #tpu.memory_space<vmem>>, vector<1x8x512xf32>
    %23 = vector.shape_cast %22 : vector<1x8x512xf32> to vector<8x512xf32>
    %c0_23 = arith.constant 0 : index
    %c0_24 = arith.constant 0 : index
    %24 = vector.load %arg6[%c0_23, %c0_24] : memref<128x512xf32, #tpu.memory_space<vmem>>, vector<128x512xf32>
    %cst_25 = arith.constant dense<0.000000e+00> : vector<8x512xf32>
    %25 = tpu.matmul %19, %24, %cst_25 {dimension_numbers = #tpu.dot_dimension_numbers<[1], [0], [0], [1], [0, 0, 1, 1], [], []>} : vector<8x128xf32>, vector<128x512xf32>, vector<8x512xf32> -> vector<8x512xf32>
    %26 = arith.addf %23, %25 : vector<8x512xf32>
    %27 = vector.extract_strided_slice %26 {offsets = [0, 0], sizes = [8, 384], strides = [1, 1]} : vector<8x512xf32> to vector<8x384xf32>
    %28 = arith.negf %27 : vector<8x384xf32>
    %29 = math.exp %28 : vector<8x384xf32>
    %cst_26 = arith.constant 1.000000e+00 : f32
    %30 = vector.broadcast %cst_26 : f32 to vector<8x384xf32>
    %31 = arith.addf %30, %29 : vector<8x384xf32>
    %32 = arith.divf %30, %31 : vector<8x384xf32>
    %33 = vector.extract_strided_slice %26 {offsets = [0, 384], sizes = [8, 128], strides = [1, 1]} : vector<8x512xf32> to vector<8x128xf32>
    %34 = math.tanh %33 : vector<8x128xf32>
    %35 = vector.extract_strided_slice %32 {offsets = [0, 0], sizes = [8, 128], strides = [1, 1]} : vector<8x384xf32> to vector<8x128xf32>
    %36 = vector.extract_strided_slice %32 {offsets = [0, 128], sizes = [8, 128], strides = [1, 1]} : vector<8x384xf32> to vector<8x128xf32>
    %37 = vector.extract_strided_slice %32 {offsets = [0, 256], sizes = [8, 128], strides = [1, 1]} : vector<8x384xf32> to vector<8x128xf32>
    %38 = arith.mulf %36, %20 : vector<8x128xf32>
    %39 = arith.mulf %35, %34 : vector<8x128xf32>
    %40 = arith.addf %38, %39 : vector<8x128xf32>
    %41 = math.tanh %40 : vector<8x128xf32>
    %42 = arith.mulf %37, %41 : vector<8x128xf32>
    %43 = arith.index_cast %c0_i32_20 : i32 to index
    %c0_27 = arith.constant 0 : index
    %c0_28 = arith.constant 0 : index
    %44 = vector.load %arg16[%43, %c0_27, %c0_28] : memref<8x8x128xf32, #tpu.memory_space<vmem>>, vector<1x8x128xf32>
    %45 = vector.shape_cast %44 : vector<1x8x128xf32> to vector<8x128xf32>
    %46 = vector.shape_cast %42 : vector<8x128xf32> to vector<1x8x128xf32>
    tpu.vector_store %arg16[%43, %c0_27, %c0_28], %46 {strides = array<i32>} : memref<8x8x128xf32, #tpu.memory_space<vmem>>, vector<1x8x128xf32>,
    %c1_i32 = arith.constant 1 : i32
    %47 = arith.index_cast %c1_i32 : i32 to index
    %c0_29 = arith.constant 0 : index
    %c0_30 = arith.constant 0 : index
    %48 = vector.load %arg15[%47, %c0_29, %c0_30] : memref<8x8x512xf32, #tpu.memory_space<vmem>>, vector<1x8x512xf32>
    %49 = vector.shape_cast %48 : vector<1x8x512xf32> to vector<8x512xf32>
    %c0_31 = arith.constant 0 : index
    %c0_32 = arith.constant 0 : index
    %50 = vector.load %arg6[%c0_31, %c0_32] : memref<128x512xf32, #tpu.memory_space<vmem>>, vector<128x512xf32>
    %cst_33 = arith.constant dense<0.000000e+00> : vector<8x512xf32>
    %51 = tpu.matmul %42, %50, %cst_33 {dimension_numbers = #tpu.dot_dimension_numbers<[1], [0], [0], [1], [0, 0, 1, 1], [], []>} : vector<8x128xf32>, vector<128x512xf32>, vector<8x512xf32> -> vector<8x512xf32>
    %52 = arith.addf %49, %51 : vector<8x512xf32>
    %53 = vector.extract_strided_slice %52 {offsets = [0, 0], sizes = [8, 384], strides = [1, 1]} : vector<8x512xf32> to vector<8x384xf32>
    %54 = arith.negf %53 : vector<8x384xf32>
    %55 = math.exp %54 : vector<8x384xf32>
    %cst_34 = arith.constant 1.000000e+00 : f32
    %56 = vector.broadcast %cst_34 : f32 to vector<8x384xf32>
    %57 = arith.addf %56, %55 : vector<8x384xf32>
    %58 = arith.divf %56, %57 : vector<8x384xf32>
    %59 = vector.extract_strided_slice %52 {offsets = [0, 384], sizes = [8, 128], strides = [1, 1]} : vector<8x512xf32> to vector<8x128xf32>
    %60 = math.tanh %59 : vector<8x128xf32>
    %61 = vector.extract_strided_slice %58 {offsets = [0, 0], sizes = [8, 128], strides = [1, 1]} : vector<8x384xf32> to vector<8x128xf32>
    %62 = vector.extract_strided_slice %58 {offsets = [0, 128], sizes = [8, 128], strides = [1, 1]} : vector<8x384xf32> to vector<8x128xf32>
    %63 = vector.extract_strided_slice %58 {offsets = [0, 256], sizes = [8, 128], strides = [1, 1]} : vector<8x384xf32> to vector<8x128xf32>
    %64 = arith.mulf %62, %40 : vector<8x128xf32>
    %65 = arith.mulf %61, %60 : vector<8x128xf32>
    %66 = arith.addf %64, %65 : vector<8x128xf32>
    %67 = math.tanh %66 : vector<8x128xf32>
    %68 = arith.mulf %63, %67 : vector<8x128xf32>
    %69 = arith.index_cast %c1_i32 : i32 to index
    %c0_35 = arith.constant 0 : index
    %c0_36 = arith.constant 0 : index
    %70 = vector.load %arg16[%69, %c0_35, %c0_36] : memref<8x8x128xf32, #tpu.memory_space<vmem>>, vector<1x8x128xf32>
    %71 = vector.shape_cast %70 : vector<1x8x128xf32> to vector<8x128xf32>
    %72 = vector.shape_cast %68 : vector<8x128xf32> to vector<1x8x128xf32>
    tpu.vector_store %arg16[%69, %c0_35, %c0_36], %72 {strides = array<i32>} : memref<8x8x128xf32, #tpu.memory_space<vmem>>, vector<1x8x128xf32>,
    %c2_i32 = arith.constant 2 : i32
    %73 = arith.index_cast %c2_i32 : i32 to index
    %c0_37 = arith.constant 0 : index
    %c0_38 = arith.constant 0 : index
    %74 = vector.load %arg15[%73, %c0_37, %c0_38] : memref<8x8x512xf32, #tpu.memory_space<vmem>>, vector<1x8x512xf32>
    %75 = vector.shape_cast %74 : vector<1x8x512xf32> to vector<8x512xf32>
    %c0_39 = arith.constant 0 : index
    %c0_40 = arith.constant 0 : index
    %76 = vector.load %arg6[%c0_39, %c0_40] : memref<128x512xf32, #tpu.memory_space<vmem>>, vector<128x512xf32>
    %cst_41 = arith.constant dense<0.000000e+00> : vector<8x512xf32>
    %77 = tpu.matmul %68, %76, %cst_41 {dimension_numbers = #tpu.dot_dimension_numbers<[1], [0], [0], [1], [0, 0, 1, 1], [], []>} : vector<8x128xf32>, vector<128x512xf32>, vector<8x512xf32> -> vector<8x512xf32>
    %78 = arith.addf %75, %77 : vector<8x512xf32>
    %79 = vector.extract_strided_slice %78 {offsets = [0, 0], sizes = [8, 384], strides = [1, 1]} : vector<8x512xf32> to vector<8x384xf32>
    %80 = arith.negf %79 : vector<8x384xf32>
    %81 = math.exp %80 : vector<8x384xf32>
    %cst_42 = arith.constant 1.000000e+00 : f32
    %82 = vector.broadcast %cst_42 : f32 to vector<8x384xf32>
    %83 = arith.addf %82, %81 : vector<8x384xf32>
    %84 = arith.divf %82, %83 : vector<8x384xf32>
    %85 = vector.extract_strided_slice %78 {offsets = [0, 384], sizes = [8, 128], strides = [1, 1]} : vector<8x512xf32> to vector<8x128xf32>
    %86 = math.tanh %85 : vector<8x128xf32>
    %87 = vector.extract_strided_slice %84 {offsets = [0, 0], sizes = [8, 128], strides = [1, 1]} : vector<8x384xf32> to vector<8x128xf32>
    %88 = vector.extract_strided_slice %84 {offsets = [0, 128], sizes = [8, 128], strides = [1, 1]} : vector<8x384xf32> to vector<8x128xf32>
    %89 = vector.extract_strided_slice %84 {offsets = [0, 256], sizes = [8, 128], strides = [1, 1]} : vector<8x384xf32> to vector<8x128xf32>
    %90 = arith.mulf %88, %66 : vector<8x128xf32>
    %91 = arith.mulf %87, %86 : vector<8x128xf32>
    %92 = arith.addf %90, %91 : vector<8x128xf32>
    %93 = math.tanh %92 : vector<8x128xf32>
    %94 = arith.mulf %89, %93 : vector<8x128xf32>
    %95 = arith.index_cast %c2_i32 : i32 to index
    %c0_43 = arith.constant 0 : index
    %c0_44 = arith.constant 0 : index
    %96 = vector.load %arg16[%95, %c0_43, %c0_44] : memref<8x8x128xf32, #tpu.memory_space<vmem>>, vector<1x8x128xf32>
    %97 = vector.shape_cast %96 : vector<1x8x128xf32> to vector<8x128xf32>
    %98 = vector.shape_cast %94 : vector<8x128xf32> to vector<1x8x128xf32>
    tpu.vector_store %arg16[%95, %c0_43, %c0_44], %98 {strides = array<i32>} : memref<8x8x128xf32, #tpu.memory_space<vmem>>, vector<1x8x128xf32>,
    %c3_i32 = arith.constant 3 : i32
    %99 = arith.index_cast %c3_i32 : i32 to index
    %c0_45 = arith.constant 0 : index
    %c0_46 = arith.constant 0 : index
    %100 = vector.load %arg15[%99, %c0_45, %c0_46] : memref<8x8x512xf32, #tpu.memory_space<vmem>>, vector<1x8x512xf32>
    %101 = vector.shape_cast %100 : vector<1x8x512xf32> to vector<8x512xf32>
    %c0_47 = arith.constant 0 : index
    %c0_48 = arith.constant 0 : index
    %102 = vector.load %arg6[%c0_47, %c0_48] : memref<128x512xf32, #tpu.memory_space<vmem>>, vector<128x512xf32>
    %cst_49 = arith.constant dense<0.000000e+00> : vector<8x512xf32>
    %103 = tpu.matmul %94, %102, %cst_49 {dimension_numbers = #tpu.dot_dimension_numbers<[1], [0], [0], [1], [0, 0, 1, 1], [], []>} : vector<8x128xf32>, vector<128x512xf32>, vector<8x512xf32> -> vector<8x512xf32>
    %104 = arith.addf %101, %103 : vector<8x512xf32>
    %105 = vector.extract_strided_slice %104 {offsets = [0, 0], sizes = [8, 384], strides = [1, 1]} : vector<8x512xf32> to vector<8x384xf32>
    %106 = arith.negf %105 : vector<8x384xf32>
    %107 = math.exp %106 : vector<8x384xf32>
    %cst_50 = arith.constant 1.000000e+00 : f32
    %108 = vector.broadcast %cst_50 : f32 to vector<8x384xf32>
    %109 = arith.addf %108, %107 : vector<8x384xf32>
    %110 = arith.divf %108, %109 : vector<8x384xf32>
    %111 = vector.extract_strided_slice %104 {offsets = [0, 384], sizes = [8, 128], strides = [1, 1]} : vector<8x512xf32> to vector<8x128xf32>
    %112 = math.tanh %111 : vector<8x128xf32>
    %113 = vector.extract_strided_slice %110 {offsets = [0, 0], sizes = [8, 128], strides = [1, 1]} : vector<8x384xf32> to vector<8x128xf32>
    %114 = vector.extract_strided_slice %110 {offsets = [0, 128], sizes = [8, 128], strides = [1, 1]} : vector<8x384xf32> to vector<8x128xf32>
    %115 = vector.extract_strided_slice %110 {offsets = [0, 256], sizes = [8, 128], strides = [1, 1]} : vector<8x384xf32> to vector<8x128xf32>
    %116 = arith.mulf %114, %92 : vector<8x128xf32>
    %117 = arith.mulf %113, %112 : vector<8x128xf32>
    %118 = arith.addf %116, %117 : vector<8x128xf32>
    %119 = math.tanh %118 : vector<8x128xf32>
    %120 = arith.mulf %115, %119 : vector<8x128xf32>
    %121 = arith.index_cast %c3_i32 : i32 to index
    %c0_51 = arith.constant 0 : index
    %c0_52 = arith.constant 0 : index
    %122 = vector.load %arg16[%121, %c0_51, %c0_52] : memref<8x8x128xf32, #tpu.memory_space<vmem>>, vector<1x8x128xf32>
    %123 = vector.shape_cast %122 : vector<1x8x128xf32> to vector<8x128xf32>
    %124 = vector.shape_cast %120 : vector<8x128xf32> to vector<1x8x128xf32>
    tpu.vector_store %arg16[%121, %c0_51, %c0_52], %124 {strides = array<i32>} : memref<8x8x128xf32, #tpu.memory_space<vmem>>, vector<1x8x128xf32>,
    %c4_i32 = arith.constant 4 : i32
    %125 = arith.index_cast %c4_i32 : i32 to index
    %c0_53 = arith.constant 0 : index
    %c0_54 = arith.constant 0 : index
    %126 = vector.load %arg15[%125, %c0_53, %c0_54] : memref<8x8x512xf32, #tpu.memory_space<vmem>>, vector<1x8x512xf32>
    %127 = vector.shape_cast %126 : vector<1x8x512xf32> to vector<8x512xf32>
    %c0_55 = arith.constant 0 : index
    %c0_56 = arith.constant 0 : index
    %128 = vector.load %arg6[%c0_55, %c0_56] : memref<128x512xf32, #tpu.memory_space<vmem>>, vector<128x512xf32>
    %cst_57 = arith.constant dense<0.000000e+00> : vector<8x512xf32>
    %129 = tpu.matmul %120, %128, %cst_57 {dimension_numbers = #tpu.dot_dimension_numbers<[1], [0], [0], [1], [0, 0, 1, 1], [], []>} : vector<8x128xf32>, vector<128x512xf32>, vector<8x512xf32> -> vector<8x512xf32>
    %130 = arith.addf %127, %129 : vector<8x512xf32>
    %131 = vector.extract_strided_slice %130 {offsets = [0, 0], sizes = [8, 384], strides = [1, 1]} : vector<8x512xf32> to vector<8x384xf32>
    %132 = arith.negf %131 : vector<8x384xf32>
    %133 = math.exp %132 : vector<8x384xf32>
    %cst_58 = arith.constant 1.000000e+00 : f32
    %134 = vector.broadcast %cst_58 : f32 to vector<8x384xf32>
    %135 = arith.addf %134, %133 : vector<8x384xf32>
    %136 = arith.divf %134, %135 : vector<8x384xf32>
    %137 = vector.extract_strided_slice %130 {offsets = [0, 384], sizes = [8, 128], strides = [1, 1]} : vector<8x512xf32> to vector<8x128xf32>
    %138 = math.tanh %137 : vector<8x128xf32>
    %139 = vector.extract_strided_slice %136 {offsets = [0, 0], sizes = [8, 128], strides = [1, 1]} : vector<8x384xf32> to vector<8x128xf32>
    %140 = vector.extract_strided_slice %136 {offsets = [0, 128], sizes = [8, 128], strides = [1, 1]} : vector<8x384xf32> to vector<8x128xf32>
    %141 = vector.extract_strided_slice %136 {offsets = [0, 256], sizes = [8, 128], strides = [1, 1]} : vector<8x384xf32> to vector<8x128xf32>
    %142 = arith.mulf %140, %118 : vector<8x128xf32>
    %143 = arith.mulf %139, %138 : vector<8x128xf32>
    %144 = arith.addf %142, %143 : vector<8x128xf32>
    %145 = math.tanh %144 : vector<8x128xf32>
    %146 = arith.mulf %141, %145 : vector<8x128xf32>
    %147 = arith.index_cast %c4_i32 : i32 to index
    %c0_59 = arith.constant 0 : index
    %c0_60 = arith.constant 0 : index
    %148 = vector.load %arg16[%147, %c0_59, %c0_60] : memref<8x8x128xf32, #tpu.memory_space<vmem>>, vector<1x8x128xf32>
    %149 = vector.shape_cast %148 : vector<1x8x128xf32> to vector<8x128xf32>
    %150 = vector.shape_cast %146 : vector<8x128xf32> to vector<1x8x128xf32>
    tpu.vector_store %arg16[%147, %c0_59, %c0_60], %150 {strides = array<i32>} : memref<8x8x128xf32, #tpu.memory_space<vmem>>, vector<1x8x128xf32>,
    %c5_i32 = arith.constant 5 : i32
    %151 = arith.index_cast %c5_i32 : i32 to index
    %c0_61 = arith.constant 0 : index
    %c0_62 = arith.constant 0 : index
    %152 = vector.load %arg15[%151, %c0_61, %c0_62] : memref<8x8x512xf32, #tpu.memory_space<vmem>>, vector<1x8x512xf32>
    %153 = vector.shape_cast %152 : vector<1x8x512xf32> to vector<8x512xf32>
    %c0_63 = arith.constant 0 : index
    %c0_64 = arith.constant 0 : index
    %154 = vector.load %arg6[%c0_63, %c0_64] : memref<128x512xf32, #tpu.memory_space<vmem>>, vector<128x512xf32>
    %cst_65 = arith.constant dense<0.000000e+00> : vector<8x512xf32>
    %155 = tpu.matmul %146, %154, %cst_65 {dimension_numbers = #tpu.dot_dimension_numbers<[1], [0], [0], [1], [0, 0, 1, 1], [], []>} : vector<8x128xf32>, vector<128x512xf32>, vector<8x512xf32> -> vector<8x512xf32>
    %156 = arith.addf %153, %155 : vector<8x512xf32>
    %157 = vector.extract_strided_slice %156 {offsets = [0, 0], sizes = [8, 384], strides = [1, 1]} : vector<8x512xf32> to vector<8x384xf32>
    %158 = arith.negf %157 : vector<8x384xf32>
    %159 = math.exp %158 : vector<8x384xf32>
    %cst_66 = arith.constant 1.000000e+00 : f32
    %160 = vector.broadcast %cst_66 : f32 to vector<8x384xf32>
    %161 = arith.addf %160, %159 : vector<8x384xf32>
    %162 = arith.divf %160, %161 : vector<8x384xf32>
    %163 = vector.extract_strided_slice %156 {offsets = [0, 384], sizes = [8, 128], strides = [1, 1]} : vector<8x512xf32> to vector<8x128xf32>
    %164 = math.tanh %163 : vector<8x128xf32>
    %165 = vector.extract_strided_slice %162 {offsets = [0, 0], sizes = [8, 128], strides = [1, 1]} : vector<8x384xf32> to vector<8x128xf32>
    %166 = vector.extract_strided_slice %162 {offsets = [0, 128], sizes = [8, 128], strides = [1, 1]} : vector<8x384xf32> to vector<8x128xf32>
    %167 = vector.extract_strided_slice %162 {offsets = [0, 256], sizes = [8, 128], strides = [1, 1]} : vector<8x384xf32> to vector<8x128xf32>
    %168 = arith.mulf %166, %144 : vector<8x128xf32>
    %169 = arith.mulf %165, %164 : vector<8x128xf32>
    %170 = arith.addf %168, %169 : vector<8x128xf32>
    %171 = math.tanh %170 : vector<8x128xf32>
    %172 = arith.mulf %167, %171 : vector<8x128xf32>
    %173 = arith.index_cast %c5_i32 : i32 to index
    %c0_67 = arith.constant 0 : index
    %c0_68 = arith.constant 0 : index
    %174 = vector.load %arg16[%173, %c0_67, %c0_68] : memref<8x8x128xf32, #tpu.memory_space<vmem>>, vector<1x8x128xf32>
    %175 = vector.shape_cast %174 : vector<1x8x128xf32> to vector<8x128xf32>
    %176 = vector.shape_cast %172 : vector<8x128xf32> to vector<1x8x128xf32>
    tpu.vector_store %arg16[%173, %c0_67, %c0_68], %176 {strides = array<i32>} : memref<8x8x128xf32, #tpu.memory_space<vmem>>, vector<1x8x128xf32>,
    %c6_i32 = arith.constant 6 : i32
    %177 = arith.index_cast %c6_i32 : i32 to index
    %c0_69 = arith.constant 0 : index
    %c0_70 = arith.constant 0 : index
    %178 = vector.load %arg15[%177, %c0_69, %c0_70] : memref<8x8x512xf32, #tpu.memory_space<vmem>>, vector<1x8x512xf32>
    %179 = vector.shape_cast %178 : vector<1x8x512xf32> to vector<8x512xf32>
    %c0_71 = arith.constant 0 : index
    %c0_72 = arith.constant 0 : index
    %180 = vector.load %arg6[%c0_71, %c0_72] : memref<128x512xf32, #tpu.memory_space<vmem>>, vector<128x512xf32>
    %cst_73 = arith.constant dense<0.000000e+00> : vector<8x512xf32>
    %181 = tpu.matmul %172, %180, %cst_73 {dimension_numbers = #tpu.dot_dimension_numbers<[1], [0], [0], [1], [0, 0, 1, 1], [], []>} : vector<8x128xf32>, vector<128x512xf32>, vector<8x512xf32> -> vector<8x512xf32>
    %182 = arith.addf %179, %181 : vector<8x512xf32>
    %183 = vector.extract_strided_slice %182 {offsets = [0, 0], sizes = [8, 384], strides = [1, 1]} : vector<8x512xf32> to vector<8x384xf32>
    %184 = arith.negf %183 : vector<8x384xf32>
    %185 = math.exp %184 : vector<8x384xf32>
    %cst_74 = arith.constant 1.000000e+00 : f32
    %186 = vector.broadcast %cst_74 : f32 to vector<8x384xf32>
    %187 = arith.addf %186, %185 : vector<8x384xf32>
    %188 = arith.divf %186, %187 : vector<8x384xf32>
    %189 = vector.extract_strided_slice %182 {offsets = [0, 384], sizes = [8, 128], strides = [1, 1]} : vector<8x512xf32> to vector<8x128xf32>
    %190 = math.tanh %189 : vector<8x128xf32>
    %191 = vector.extract_strided_slice %188 {offsets = [0, 0], sizes = [8, 128], strides = [1, 1]} : vector<8x384xf32> to vector<8x128xf32>
    %192 = vector.extract_strided_slice %188 {offsets = [0, 128], sizes = [8, 128], strides = [1, 1]} : vector<8x384xf32> to vector<8x128xf32>
    %193 = vector.extract_strided_slice %188 {offsets = [0, 256], sizes = [8, 128], strides = [1, 1]} : vector<8x384xf32> to vector<8x128xf32>
    %194 = arith.mulf %192, %170 : vector<8x128xf32>
    %195 = arith.mulf %191, %190 : vector<8x128xf32>
    %196 = arith.addf %194, %195 : vector<8x128xf32>
    %197 = math.tanh %196 : vector<8x128xf32>
    %198 = arith.mulf %193, %197 : vector<8x128xf32>
    %199 = arith.index_cast %c6_i32 : i32 to index
    %c0_75 = arith.constant 0 : index
    %c0_76 = arith.constant 0 : index
    %200 = vector.load %arg16[%199, %c0_75, %c0_76] : memref<8x8x128xf32, #tpu.memory_space<vmem>>, vector<1x8x128xf32>
    %201 = vector.shape_cast %200 : vector<1x8x128xf32> to vector<8x128xf32>
    %202 = vector.shape_cast %198 : vector<8x128xf32> to vector<1x8x128xf32>
    tpu.vector_store %arg16[%199, %c0_75, %c0_76], %202 {strides = array<i32>} : memref<8x8x128xf32, #tpu.memory_space<vmem>>, vector<1x8x128xf32>,
    %c7_i32 = arith.constant 7 : i32
    %203 = arith.index_cast %c7_i32 : i32 to index
    %c0_77 = arith.constant 0 : index
    %c0_78 = arith.constant 0 : index
    %204 = vector.load %arg15[%203, %c0_77, %c0_78] : memref<8x8x512xf32, #tpu.memory_space<vmem>>, vector<1x8x512xf32>
    %205 = vector.shape_cast %204 : vector<1x8x512xf32> to vector<8x512xf32>
    %c0_79 = arith.constant 0 : index
    %c0_80 = arith.constant 0 : index
    %206 = vector.load %arg6[%c0_79, %c0_80] : memref<128x512xf32, #tpu.memory_space<vmem>>, vector<128x512xf32>
    %cst_81 = arith.constant dense<0.000000e+00> : vector<8x512xf32>
    %207 = tpu.matmul %198, %206, %cst_81 {dimension_numbers = #tpu.dot_dimension_numbers<[1], [0], [0], [1], [0, 0, 1, 1], [], []>} : vector<8x128xf32>, vector<128x512xf32>, vector<8x512xf32> -> vector<8x512xf32>
    %208 = arith.addf %205, %207 : vector<8x512xf32>
    %209 = vector.extract_strided_slice %208 {offsets = [0, 0], sizes = [8, 384], strides = [1, 1]} : vector<8x512xf32> to vector<8x384xf32>
    %210 = arith.negf %209 : vector<8x384xf32>
    %211 = math.exp %210 : vector<8x384xf32>
    %cst_82 = arith.constant 1.000000e+00 : f32
    %212 = vector.broadcast %cst_82 : f32 to vector<8x384xf32>
    %213 = arith.addf %212, %211 : vector<8x384xf32>
    %214 = arith.divf %212, %213 : vector<8x384xf32>
    %215 = vector.extract_strided_slice %208 {offsets = [0, 384], sizes = [8, 128], strides = [1, 1]} : vector<8x512xf32> to vector<8x128xf32>
    %216 = math.tanh %215 : vector<8x128xf32>
    %217 = vector.extract_strided_slice %214 {offsets = [0, 0], sizes = [8, 128], strides = [1, 1]} : vector<8x384xf32> to vector<8x128xf32>
    %218 = vector.extract_strided_slice %214 {offsets = [0, 128], sizes = [8, 128], strides = [1, 1]} : vector<8x384xf32> to vector<8x128xf32>
    %219 = vector.extract_strided_slice %214 {offsets = [0, 256], sizes = [8, 128], strides = [1, 1]} : vector<8x384xf32> to vector<8x128xf32>
    %220 = arith.mulf %218, %196 : vector<8x128xf32>
    %221 = arith.mulf %217, %216 : vector<8x128xf32>
    %222 = arith.addf %220, %221 : vector<8x128xf32>
    %223 = math.tanh %222 : vector<8x128xf32>
    %224 = arith.mulf %219, %223 : vector<8x128xf32>
    %225 = arith.index_cast %c7_i32 : i32 to index
    %c0_83 = arith.constant 0 : index
    %c0_84 = arith.constant 0 : index
    %226 = vector.load %arg16[%225, %c0_83, %c0_84] : memref<8x8x128xf32, #tpu.memory_space<vmem>>, vector<1x8x128xf32>
    %227 = vector.shape_cast %226 : vector<1x8x128xf32> to vector<8x128xf32>
    %228 = vector.shape_cast %224 : vector<8x128xf32> to vector<1x8x128xf32>
    tpu.vector_store %arg16[%225, %c0_83, %c0_84], %228 {strides = array<i32>} : memref<8x8x128xf32, #tpu.memory_space<vmem>>, vector<1x8x128xf32>,
    %c8_i32 = arith.constant 8 : i32
    %c0_85 = arith.constant 0 : index
    %c0_86 = arith.constant 0 : index
    %229 = vector.load %arg13[%c0_85, %c0_86] : memref<8x128xf32, #tpu.memory_space<vmem>>, vector<8x128xf32>
    tpu.vector_store %arg13[%c0_85, %c0_86], %224 {strides = array<i32>} : memref<8x128xf32, #tpu.memory_space<vmem>>, vector<8x128xf32>,
    %c0_87 = arith.constant 0 : index
    %c0_88 = arith.constant 0 : index
    %230 = vector.load %arg14[%c0_87, %c0_88] : memref<8x128xf32, #tpu.memory_space<vmem>>, vector<8x128xf32>
    tpu.vector_store %arg14[%c0_87, %c0_88], %222 {strides = array<i32>} : memref<8x128xf32, #tpu.memory_space<vmem>>, vector<8x128xf32>,
    %c0_89 = arith.constant 0 : index
    %c0_90 = arith.constant 0 : index
    %231 = vector.load %arg11[%c0_89, %c0_90] : memref<8x128xf32, #tpu.memory_space<vmem>>, vector<8x128xf32>
    tpu.vector_store %arg11[%c0_89, %c0_90], %224 {strides = array<i32>} : memref<8x128xf32, #tpu.memory_space<vmem>>, vector<8x128xf32>,
    %c0_91 = arith.constant 0 : index
    %c0_92 = arith.constant 0 : index
    %232 = vector.load %arg12[%c0_91, %c0_92] : memref<8x128xf32, #tpu.memory_space<vmem>>, vector<8x128xf32>
    tpu.vector_store %arg12[%c0_91, %c0_92], %222 {strides = array<i32>} : memref<8x128xf32, #tpu.memory_space<vmem>>, vector<8x128xf32>,
    %c0_93 = arith.constant 0 : index
    %c0_94 = arith.constant 0 : index
    %c0_95 = arith.constant 0 : index
    %233 = vector.load %arg16[%c0_93, %c0_94, %c0_95] : memref<8x8x128xf32, #tpu.memory_space<vmem>>, vector<8x8x128xf32>
    %234 = vector.shape_cast %233 : vector<8x8x128xf32> to vector<64x128xf32>
    %c0_96 = arith.constant 0 : index
    %c0_97 = arith.constant 0 : index
    %235 = vector.load %arg8[%c0_96, %c0_97] : memref<128x128xf32, #tpu.memory_space<vmem>>, vector<128x128xf32>
    %cst_98 = arith.constant dense<0.000000e+00> : vector<64x128xf32>
    %236 = tpu.matmul %234, %235, %cst_98 {dimension_numbers = #tpu.dot_dimension_numbers<[1], [0], [0], [1], [0, 0, 1, 1], [], []>} : vector<64x128xf32>, vector<128x128xf32>, vector<64x128xf32> -> vector<64x128xf32>
    %c0_99 = arith.constant 0 : index
    %c0_100 = arith.constant 0 : index
    %237 = vector.load %arg9[%c0_99, %c0_100] : memref<1x128xf32, #tpu.memory_space<vmem>>, vector<1x128xf32>
    %238 = vector.broadcast %237 : vector<1x128xf32> to vector<64x128xf32>
    %239 = arith.addf %236, %238 : vector<64x128xf32>
    %240 = vector.shape_cast %239 : vector<64x128xf32> to vector<8x8x128xf32>
    %c0_101 = arith.constant 0 : index
    %c0_102 = arith.constant 0 : index
    %c0_103 = arith.constant 0 : index
    %241 = vector.load %arg10[%c0_101, %c0_102, %c0_103] : memref<8x8x128xf32, #tpu.memory_space<vmem>>, vector<8x8x128xf32>
    tpu.vector_store %arg10[%c0_101, %c0_102, %c0_103], %240 {strides = array<i32>} : memref<8x8x128xf32, #tpu.memory_space<vmem>>, vector<8x8x128xf32>,
    return
  }
  func.func @transform_0(%arg0: i32, %arg1: i32) -> (i32, i32, i32) {
    %c0_i32 = arith.constant 0 : i32
    %c0_i32_0 = arith.constant 0 : i32
    return %arg1, %arg0, %c0_i32 : i32, i32, i32
  }
  func.func @transform_1(%arg0: i32, %arg1: i32) -> (i32, i32) {
    %c0_i32 = arith.constant 0 : i32
    %c0_i32_0 = arith.constant 0 : i32
    %c0_i32_1 = arith.constant 0 : i32
    return %c0_i32, %c0_i32_0 : i32, i32
  }
  func.func @transform_2(%arg0: i32, %arg1: i32) -> (i32, i32) {
    %c0_i32 = arith.constant 0 : i32
    %c0_i32_0 = arith.constant 0 : i32
    %c0_i32_1 = arith.constant 0 : i32
    return %c0_i32, %c0_i32_0 : i32, i32
  }
  func.func @transform_3(%arg0: i32, %arg1: i32) -> (i32, i32) {
    %c0_i32 = arith.constant 0 : i32
    %c0_i32_0 = arith.constant 0 : i32
    %c0_i32_1 = arith.constant 0 : i32
    return %c0_i32, %c0_i32_0 : i32, i32
  }
  func.func @transform_4(%arg0: i32, %arg1: i32) -> (i32, i32) {
    %c0_i32 = arith.constant 0 : i32
    %c0_i32_0 = arith.constant 0 : i32
    %c0_i32_1 = arith.constant 0 : i32
    return %c0_i32, %c0_i32_0 : i32, i32
  }
  func.func @transform_5(%arg0: i32, %arg1: i32) -> (i32, i32) {
    %c0_i32 = arith.constant 0 : i32
    %c0_i32_0 = arith.constant 0 : i32
    %c0_i32_1 = arith.constant 0 : i32
    return %c0_i32, %c0_i32_0 : i32, i32
  }
  func.func @transform_6(%arg0: i32, %arg1: i32) -> (i32, i32) {
    %c0_i32 = arith.constant 0 : i32
    %c0_i32_0 = arith.constant 0 : i32
    %c0_i32_1 = arith.constant 0 : i32
    return %c0_i32, %c0_i32_0 : i32, i32
  }
  func.func @transform_7(%arg0: i32, %arg1: i32) -> (i32, i32) {
    %c0_i32 = arith.constant 0 : i32
    %c0_i32_0 = arith.constant 0 : i32
    %c0_i32_1 = arith.constant 0 : i32
    return %c0_i32, %c0_i32_0 : i32, i32
  }
  func.func @transform_8(%arg0: i32, %arg1: i32) -> (i32, i32, i32) {
    %c0_i32 = arith.constant 0 : i32
    %c0_i32_0 = arith.constant 0 : i32
    return %arg1, %arg0, %c0_i32 : i32, i32, i32
  }
  func.func @transform_9(%arg0: i32, %arg1: i32) -> (i32, i32) {
    %c0_i32 = arith.constant 0 : i32
    %c0_i32_0 = arith.constant 0 : i32
    return %arg0, %c0_i32 : i32, i32
  }
  func.func @transform_10(%arg0: i32, %arg1: i32) -> (i32, i32) {
    %c0_i32 = arith.constant 0 : i32
    %c0_i32_0 = arith.constant 0 : i32
    return %arg0, %c0_i32 : i32, i32
  }
}

</mosaic_0001>

<llo_original>
// kernel: r2d2_forward.1
$region0: #{r2d2_forward.1}
  #allocation0 [shape = 'u32[]', space=smem, size = 0x4, offset = 0x4, fixed_abs, tag = 'smem constant byte address 0x4 - core index']
  #allocation1 [shape = 'u32[72,128]{1,0:T(1,128)}', space=vmem, size = 0x9000, scoped, tag = 'internal scratch']
  #allocation2 [shape = 'f32[8,128]{1,0:T(8,128)}', space=vmem, size = 0x1000, scoped, tag = 'scratch operand']
  #allocation3 [shape = 'f32[8,128]{1,0:T(8,128)}', space=vmem, size = 0x1000, scoped, tag = 'scratch operand']
  #allocation4 [shape = 'f32[8,8,512]{2,1,0:T(8,128)}', space=vmem, size = 0x20000, scoped, tag = 'scratch operand']
  #allocation5 [shape = 'f32[8,8,128]{2,1,0:T(8,128)}', space=vmem, size = 0x8000, scoped, tag = 'scratch operand']
  %s0 = inlined_call_operand.vmem [shape: f32[8,8,16], index: 0, kind: input, shape index: {}]
  %s1 = inlined_call_operand.vmem [shape: f32[16,128], index: 1, kind: input, shape index: {}]
  %s2 = inlined_call_operand.vmem [shape: f32[1,128], index: 2, kind: input, shape index: {}]
  %s3 = inlined_call_operand.vmem [shape: f32[128,512], index: 3, kind: input, shape index: {}]
  %s4 = inlined_call_operand.vmem [shape: f32[128,512], index: 4, kind: input, shape index: {}]
  %s5 = inlined_call_operand.vmem [shape: f32[1,512], index: 5, kind: input, shape index: {}]
  %s6 = inlined_call_operand.vmem [shape: f32[128,128], index: 6, kind: input, shape index: {}]
  %s7 = inlined_call_operand.vmem [shape: f32[1,128], index: 7, kind: input, shape index: {}]
  %s8 = inlined_call_operand.vmem [shape: f32[8,8,128], index: 8, kind: output, shape index: {0}]
  %s9 = inlined_call_operand.vmem [shape: f32[8,128], index: 9, kind: output, shape index: {1}]
  %s10 = inlined_call_operand.vmem [shape: f32[8,128], index: 10, kind: output, shape index: {2}]
  %11 = xla_tuple %s8, %s9, %s10
  %s12 = sld [smem:[#allocation0]]
  $region62: #{r2d2_forward.1} parent=0
    _
  %s14 = ssub.s32 1, %s12
  %s15 = scalar_select 0, %s14, %s12
  // Predicated region
  $region2: #{r2d2_forward.1} parent=0 // pred_check
    _
  $region3: #{r2d2_forward.1} parent=0 // pred_check_branch
    %17 = sbr.rel (0) target = $region5
  $region4: #{r2d2_forward.1} parent=0 // pred_region
    _
  $region5: #{r2d2_forward.1} parent=0 // pred_fallthru
    _
  // Predicated region
  $region6: #{r2d2_forward.1} parent=0 // pred_check
    _
  $region7: #{r2d2_forward.1} parent=0 // pred_check_branch
    %19 = sbr.rel (0) target = $region9
  $region8: #{r2d2_forward.1} parent=0 // pred_region
    _
  $region9: #{r2d2_forward.1} parent=0 // pred_fallthru
    _
  // Predicated region
  $region10: #{r2d2_forward.1} parent=0 // pred_check
    _
  $region11: #{r2d2_forward.1} parent=0 // pred_check_branch
    %21 = sbr.rel (0) target = $region13
  $region12: #{r2d2_forward.1} parent=0 // pred_region
    _
  $region13: #{r2d2_forward.1} parent=0 // pred_fallthru
    _
  // Predicated region
  $region14: #{r2d2_forward.1} parent=0 // pred_check
    _
  $region15: #{r2d2_forward.1} parent=0 // pred_check_branch
    %23 = sbr.rel (0) target = $region17
  $region16: #{r2d2_forward.1} parent=0 // pred_region
    _
  $region17: #{r2d2_forward.1} parent=0 // pred_fallthru
    _
  // Predicated region
  $region18: #{r2d2_forward.1} parent=0 // pred_check
    _
  $region19: #{r2d2_forward.1} parent=0 // pred_check_branch
    %25 = sbr.rel (0) target = $region21
  $region20: #{r2d2_forward.1} parent=0 // pred_region
    _
  $region21: #{r2d2_forward.1} parent=0 // pred_fallthru
    _
  // Predicated region
  $region22: #{r2d2_forward.1} parent=0 // pred_check
    _
  $region23: #{r2d2_forward.1} parent=0 // pred_check_branch
    %27 = sbr.rel (0) target = $region25
  $region24: #{r2d2_forward.1} parent=0 // pred_region
    _
  $region25: #{r2d2_forward.1} parent=0 // pred_fallthru
    _
  // Predicated region
  $region26: #{r2d2_forward.1} parent=0 // pred_check
    _
  $region27: #{r2d2_forward.1} parent=0 // pred_check_branch
    %29 = sbr.rel (0) target = $region29
  $region28: #{r2d2_forward.1} parent=0 // pred_region
    _
  $region29: #{r2d2_forward.1} parent=0 // pred_fallthru
    _
  // Predicated region
  $region30: #{r2d2_forward.1} parent=0 // pred_check
    _
  $region31: #{r2d2_forward.1} parent=0 // pred_check_branch
    %31 = sbr.rel (0) target = $region33
  $region32: #{r2d2_forward.1} parent=0 // pred_region
    _
  $region33: #{r2d2_forward.1} parent=0 // pred_fallthru
    _
  %p32 = scmp.eq.s32.totalorder 0, 0
  // Predicated region
  $region34: #{r2d2_forward.1} parent=0 // pred_check
    %p33 = pneg %p32
  $region35: #{r2d2_forward.1} parent=0 // pred_check_branch
    %35 = sbr.rel (%p33) target = $region37
  $region36: #{r2d2_forward.1} parent=0 // pred_region
    %36 = vst [vmem:[#allocation2] sm:$0xff] 0.0
    %37 = vst [vmem:[#allocation3] sm:$0xff] 0.0
  $region37: #{r2d2_forward.1} parent=0 // pred_fallthru
    _
  %v38 = vld [vmem:[%s0] sm:$0xff]
  %v39 = vld [vmem:[%s0 + $0x8] sm:$0xff]
  %v40 = vld [vmem:[%s0 + $0x10] sm:$0xff]
  %v41 = vld [vmem:[%s0 + $0x18] sm:$0xff]
  %v42 = vld [vmem:[%s0 + $0x20] sm:$0xff]
  %v43 = vld [vmem:[%s0 + $0x28] sm:$0xff]
  %v44 = vld [vmem:[%s0 + $0x30] sm:$0xff]
  %v45 = vld [vmem:[%s0 + $0x38] sm:$0xff]
  %v46 = vld [vmem:[%s1] sm:$0xff]
  %v47 = vld [vmem:[%s1 + $0x8] sm:$0xff]
  %v48 = vld [vmem:[%s2] sm:$0x1]
  %v50 = vperm.slane %v48, 0
  %vm52 = vcmask 130048
  %v54 = vsel %vm52, %v38, 0
  %v57 = vsel %vm52, %v39, 0
  %v60 = vsel %vm52, %v40, 0
  %v63 = vsel %vm52, %v41, 0
  %v66 = vsel %vm52, %v42, 0
  %v69 = vsel %vm52, %v43, 0
  %v72 = vsel %vm52, %v44, 0
  %v75 = vsel %vm52, %v45, 0
  %77 = vmatpush.msra.mxu0 0.0
  %78 = vmatpush.msra.mxu0 0.0
  %79 = vmatpush.msra.mxu0 0.0
  %80 = vmatpush.msra.mxu0 0.0
  %81 = vmatpush.msra.mxu0 0.0
  %82 = vmatpush.msra.mxu0 0.0
  %83 = vmatpush.msra.mxu0 0.0
  %84 = vmatpush.msra.mxu0 0.0
  %85 = vmatpush.msra.mxu0 0.0
  %86 = vmatpush.msra.mxu0 0.0
  %87 = vmatpush.msra.mxu0 0.0
  %88 = vmatpush.msra.mxu0 0.0
  %89 = vmatpush.msra.mxu0 0.0
  %90 = vmatpush.msra.mxu0 0.0
  %91 = vmatpush.msra.mxu0 %v47
  %92 = vmatpush.msra.mxu0 %v46
  %93 = vmatmul.f32.gmra.mxu0 %v54
  %v94 = vpop.f32.mrf.mxu0
  %v95 = vadd.f32 %v50, %v94
  %96 = vmatmul.f32.gmra.mxu0 %v57
  %v97 = vpop.f32.mrf.mxu0
  %v98 = vadd.f32 %v50, %v97
  %99 = vmatmul.f32.gmra.mxu0 %v60
  %v100 = vpop.f32.mrf.mxu0
  %v101 = vadd.f32 %v50, %v100
  %102 = vmatmul.f32.gmra.mxu0 %v63
  %v103 = vpop.f32.mrf.mxu0
  %v104 = vadd.f32 %v50, %v103
  %105 = vmatmul.f32.gmra.mxu0 %v66
  %v106 = vpop.f32.mrf.mxu0
  %v107 = vadd.f32 %v50, %v106
  %108 = vmatmul.f32.gmra.mxu0 %v69
  %v109 = vpop.f32.mrf.mxu0
  %v110 = vadd.f32 %v50, %v109
  %111 = vmatmul.f32.gmra.mxu0 %v72
  %v112 = vpop.f32.mrf.mxu0
  %v113 = vadd.f32 %v50, %v112
  %114 = vmatmul.f32.gmra.mxu0 %v75
  %v115 = vpop.f32.mrf.mxu0
  %v116 = vadd.f32 %v50, %v115
  %117 = vdwg.mxu0
  %v118 = vmax.f32 %v95, 0.0
  %v119 = vmax.f32 %v98, 0.0
  %v120 = vmax.f32 %v101, 0.0
  %v121 = vmax.f32 %v104, 0.0
  %v122 = vmax.f32 %v107, 0.0
  %v123 = vmax.f32 %v110, 0.0
  %v124 = vmax.f32 %v113, 0.0
  %v125 = vmax.f32 %v116, 0.0
  %v126 = vld [vmem:[%s3] sm:$0xff]
  %v127 = vld [vmem:[%s3 + $0x8] sm:$0xff]
  %v128 = vld [vmem:[%s3 + $0x10] sm:$0xff]
  %v129 = vld [vmem:[%s3 + $0x18] sm:$0xff]
  %v130 = vld [vmem:[%s3 + $0x20] sm:$0xff]
  %v131 = vld [vmem:[%s3 + $0x28] sm:$0xff]
  %v132 = vld [vmem:[%s3 + $0x30] sm:$0xff]
  %v133 = vld [vmem:[%s3 + $0x38] sm:$0xff]
  %v134 = vld [vmem:[%s3 + $0x40] sm:$0xff]
  %v135 = vld [vmem:[%s3 + $0x48] sm:$0xff]
  %v136 = vld [vmem:[%s3 + $0x50] sm:$0xff]
  %v137 = vld [vmem:[%s3 + $0x58] sm:$0xff]
  %v138 = vld [vmem:[%s3 + $0x60] sm:$0xff]
  %v139 = vld [vmem:[%s3 + $0x68] sm:$0xff]
  %v140 = vld [vmem:[%s3 + $0x70] sm:$0xff]
  %v141 = vld [vmem:[%s3 + $0x78] sm:$0xff]
  %v142 = vld [vmem:[%s3 + $0x80] sm:$0xff]
  %v143 = vld [vmem:[%s3 + $0x88] sm:$0xff]
  %v144 = vld [vmem:[%s3 + $0x90] sm:$0xff]
  %v145 = vld [vmem:[%s3 + $0x98] sm:$0xff]
  %v146 = vld [vmem:[%s3 + $0xa0] sm:$0xff]
  %v147 = vld [vmem:[%s3 + $0xa8] sm:$0xff]
  %v148 = vld [vmem:[%s3 + $0xb0] sm:$0xff]
  %v149 = vld [vmem:[%s3 + $0xb8] sm:$0xff]
  %v150 = vld [vmem:[%s3 + $0xc0] sm:$0xff]
  %v151 = vld [vmem:[%s3 + $0xc8] sm:$0xff]
  %v152 = vld [vmem:[%s3 + $0xd0] sm:$0xff]
  %v153 = vld [vmem:[%s3 + $0xd8] sm:$0xff]
  %v154 = vld [vmem:[%s3 + $0xe0] sm:$0xff]
  %v155 = vld [vmem:[%s3 + $0xe8] sm:$0xff]
  %v156 = vld [vmem:[%s3 + $0xf0] sm:$0xff]
  %v157 = vld [vmem:[%s3 + $0xf8] sm:$0xff]
  %v158 = vld [vmem:[%s3 + $0x100] sm:$0xff]
  %v159 = vld [vmem:[%s3 + $0x108] sm:$0xff]
  %v160 = vld [vmem:[%s3 + $0x110] sm:$0xff]
  %v161 = vld [vmem:[%s3 + $0x118] sm:$0xff]
  %v162 = vld [vmem:[%s3 + $0x120] sm:$0xff]
  %v163 = vld [vmem:[%s3 + $0x128] sm:$0xff]
  %v164 = vld [vmem:[%s3 + $0x130] sm:$0xff]
  %v165 = vld [vmem:[%s3 + $0x138] sm:$0xff]
  %v166 = vld [vmem:[%s3 + $0x140] sm:$0xff]
  %v167 = vld [vmem:[%s3 + $0x148] sm:$0xff]
  %v168 = vld [vmem:[%s3 + $0x150] sm:$0xff]
  %v169 = vld [vmem:[%s3 + $0x158] sm:$0xff]
  %v170 = vld [vmem:[%s3 + $0x160] sm:$0xff]
  %v171 = vld [vmem:[%s3 + $0x168] sm:$0xff]
  %v172 = vld [vmem:[%s3 + $0x170] sm:$0xff]
  %v173 = vld [vmem:[%s3 + $0x178] sm:$0xff]
  %v174 = vld [vmem:[%s3 + $0x180] sm:$0xff]
  %v175 = vld [vmem:[%s3 + $0x188] sm:$0xff]
  %v176 = vld [vmem:[%s3 + $0x190] sm:$0xff]
  %v177 = vld [vmem:[%s3 + $0x198] sm:$0xff]
  %v178 = vld [vmem:[%s3 + $0x1a0] sm:$0xff]
  %v179 = vld [vmem:[%s3 + $0x1a8] sm:$0xff]
  %v180 = vld [vmem:[%s3 + $0x1b0] sm:$0xff]
  %v181 = vld [vmem:[%s3 + $0x1b8] sm:$0xff]
  %v182 = vld [vmem:[%s3 + $0x1c0] sm:$0xff]
  %v183 = vld [vmem:[%s3 + $0x1c8] sm:$0xff]
  %v184 = vld [vmem:[%s3 + $0x1d0] sm:$0xff]
  %v185 = vld [vmem:[%s3 + $0x1d8] sm:$0xff]
  %v186 = vld [vmem:[%s3 + $0x1e0] sm:$0xff]
  %v187 = vld [vmem:[%s3 + $0x1e8] sm:$0xff]
  %v188 = vld [vmem:[%s3 + $0x1f0] sm:$0xff]
  %v189 = vld [vmem:[%s3 + $0x1f8] sm:$0xff]
  %v190 = vld [vmem:[%s5] sm:$0xf]
  %v192 = vperm.slane %v190, 0
  %v193 = vperm.slane %v190, 1
  %v194 = vperm.slane %v190, 2
  %v195 = vperm.slane %v190, 3
  %200 = vmatpush.msra.mxu0 %v186
  %201 = vmatpush.msra.mxu0 %v182
  %202 = vmatpush.msra.mxu0 %v178
  %203 = vmatpush.msra.mxu0 %v174
  %204 = vmatpush.msra.mxu0 %v170
  %205 = vmatpush.msra.mxu0 %v166
  %206 = vmatpush.msra.mxu0 %v162
  %207 = vmatpush.msra.mxu0 %v158
  %208 = vmatpush.msra.mxu0 %v154
  %209 = vmatpush.msra.mxu0 %v150
  %210 = vmatpush.msra.mxu0 %v146
  %211 = vmatpush.msra.mxu0 %v142
  %212 = vmatpush.msra.mxu0 %v138
  %213 = vmatpush.msra.mxu0 %v134
  %214 = vmatpush.msra.mxu0 %v130
  %215 = vmatpush.msra.mxu0 %v126
  %216 = vmatmul.f32.gmra.mxu0 %v118
  %v217 = vpop.f32.mrf.mxu0
  %v218 = vadd.f32 %v192, %v217
  %219 = vmatmul.f32.gmra.mxu0 %v119
  %v220 = vpop.f32.mrf.mxu0
  %v221 = vadd.f32 %v192, %v220
  %222 = vmatmul.f32.gmra.mxu0 %v120
  %v223 = vpop.f32.mrf.mxu0
  %v224 = vadd.f32 %v192, %v223
  %225 = vmatmul.f32.gmra.mxu0 %v121
  %v226 = vpop.f32.mrf.mxu0
  %v227 = vadd.f32 %v192, %v226
  %228 = vmatmul.f32.gmra.mxu0 %v122
  %v229 = vpop.f32.mrf.mxu0
  %v230 = vadd.f32 %v192, %v229
  %231 = vmatmul.f32.gmra.mxu0 %v123
  %v232 = vpop.f32.mrf.mxu0
  %v233 = vadd.f32 %v192, %v232
  %234 = vmatmul.f32.gmra.mxu0 %v124
  %v235 = vpop.f32.mrf.mxu0
  %v236 = vadd.f32 %v192, %v235
  %237 = vmatmul.f32.gmra.mxu0 %v125
  %v238 = vpop.f32.mrf.mxu0
  %v239 = vadd.f32 %v192, %v238
  %240 = vdwg.mxu0
  %241 = vmatpush.msra.mxu0 %v187
  %242 = vmatpush.msra.mxu0 %v183
  %243 = vmatpush.msra.mxu0 %v179
  %244 = vmatpush.msra.mxu0 %v175
  %245 = vmatpush.msra.mxu0 %v171
  %246 = vmatpush.msra.mxu0 %v167
  %247 = vmatpush.msra.mxu0 %v163
  %248 = vmatpush.msra.mxu0 %v159
  %249 = vmatpush.msra.mxu0 %v155
  %250 = vmatpush.msra.mxu0 %v151
  %251 = vmatpush.msra.mxu0 %v147
  %252 = vmatpush.msra.mxu0 %v143
  %253 = vmatpush.msra.mxu0 %v139
  %254 = vmatpush.msra.mxu0 %v135
  %255 = vmatpush.msra.mxu0 %v131
  %256 = vmatpush.msra.mxu0 %v127
  %257 = vmatmul.f32.gmra.mxu0 %v118
  %v258 = vpop.f32.mrf.mxu0
  %v259 = vadd.f32 %v193, %v258
  %260 = vmatmul.f32.gmra.mxu0 %v119
  %v261 = vpop.f32.mrf.mxu0
  %v262 = vadd.f32 %v193, %v261
  %263 = vmatmul.f32.gmra.mxu0 %v120
  %v264 = vpop.f32.mrf.mxu0
  %v265 = vadd.f32 %v193, %v264
  %266 = vmatmul.f32.gmra.mxu0 %v121
  %v267 = vpop.f32.mrf.mxu0
  %v268 = vadd.f32 %v193, %v267
  %269 = vmatmul.f32.gmra.mxu0 %v122
  %v270 = vpop.f32.mrf.mxu0
  %v271 = vadd.f32 %v193, %v270
  %272 = vmatmul.f32.gmra.mxu0 %v123
  %v273 = vpop.f32.mrf.mxu0
  %v274 = vadd.f32 %v193, %v273
  %275 = vmatmul.f32.gmra.mxu0 %v124
  %v276 = vpop.f32.mrf.mxu0
  %v277 = vadd.f32 %v193, %v276
  %278 = vmatmul.f32.gmra.mxu0 %v125
  %v279 = vpop.f32.mrf.mxu0
  %v280 = vadd.f32 %v193, %v279
  %281 = vdwg.mxu0
  %282 = vmatpush.msra.mxu0 %v188
  %283 = vmatpush.msra.mxu0 %v184
  %284 = vmatpush.msra.mxu0 %v180
  %285 = vmatpush.msra.mxu0 %v176
  %286 = vmatpush.msra.mxu0 %v172
  %287 = vmatpush.msra.mxu0 %v168
  %288 = vmatpush.msra.mxu0 %v164
  %289 = vmatpush.msra.mxu0 %v160
  %290 = vmatpush.msra.mxu0 %v156
  %291 = vmatpush.msra.mxu0 %v152
  %292 = vmatpush.msra.mxu0 %v148
  %293 = vmatpush.msra.mxu0 %v144
  %294 = vmatpush.msra.mxu0 %v140
  %295 = vmatpush.msra.mxu0 %v136
  %296 = vmatpush.msra.mxu0 %v132
  %297 = vmatpush.msra.mxu0 %v128
  %298 = vmatmul.f32.gmra.mxu0 %v118
  %v299 = vpop.f32.mrf.mxu0
  %v300 = vadd.f32 %v194, %v299
  %301 = vmatmul.f32.gmra.mxu0 %v119
  %v302 = vpop.f32.mrf.mxu0
  %v303 = vadd.f32 %v194, %v302
  %304 = vmatmul.f32.gmra.mxu0 %v120
  %v305 = vpop.f32.mrf.mxu0
  %v306 = vadd.f32 %v194, %v305
  %307 = vmatmul.f32.gmra.mxu0 %v121
  %v308 = vpop.f32.mrf.mxu0
  %v309 = vadd.f32 %v194, %v308
  %310 = vmatmul.f32.gmra.mxu0 %v122
  %v311 = vpop.f32.mrf.mxu0
  %v312 = vadd.f32 %v194, %v311
  %313 = vmatmul.f32.gmra.mxu0 %v123
  %v314 = vpop.f32.mrf.mxu0
  %v315 = vadd.f32 %v194, %v314
  %316 = vmatmul.f32.gmra.mxu0 %v124
  %v317 = vpop.f32.mrf.mxu0
  %v318 = vadd.f32 %v194, %v317
  %319 = vmatmul.f32.gmra.mxu0 %v125
  %v320 = vpop.f32.mrf.mxu0
  %v321 = vadd.f32 %v194, %v320
  %322 = vdwg.mxu0
  %323 = vmatpush.msra.mxu0 %v189
  %324 = vmatpush.msra.mxu0 %v185
  %325 = vmatpush.msra.mxu0 %v181
  %326 = vmatpush.msra.mxu0 %v177
  %327 = vmatpush.msra.mxu0 %v173
  %328 = vmatpush.msra.mxu0 %v169
  %329 = vmatpush.msra.mxu0 %v165
  %330 = vmatpush.msra.mxu0 %v161
  %331 = vmatpush.msra.mxu0 %v157
  %332 = vmatpush.msra.mxu0 %v153
  %333 = vmatpush.msra.mxu0 %v149
  %334 = vmatpush.msra.mxu0 %v145
  %335 = vmatpush.msra.mxu0 %v141
  %336 = vmatpush.msra.mxu0 %v137
  %337 = vmatpush.msra.mxu0 %v133
  %338 = vmatpush.msra.mxu0 %v129
  %339 = vmatmul.f32.gmra.mxu0 %v118
  %v340 = vpop.f32.mrf.mxu0
  %v341 = vadd.f32 %v195, %v340
  %342 = vmatmul.f32.gmra.mxu0 %v119
  %v343 = vpop.f32.mrf.mxu0
  %v344 = vadd.f32 %v195, %v343
  %345 = vmatmul.f32.gmra.mxu0 %v120
  %v346 = vpop.f32.mrf.mxu0
  %v347 = vadd.f32 %v195, %v346
  %348 = vmatmul.f32.gmra.mxu0 %v121
  %v349 = vpop.f32.mrf.mxu0
  %v350 = vadd.f32 %v195, %v349
  %351 = vmatmul.f32.gmra.mxu0 %v122
  %v352 = vpop.f32.mrf.mxu0
  %v353 = vadd.f32 %v195, %v352
  %354 = vmatmul.f32.gmra.mxu0 %v123
  %v355 = vpop.f32.mrf.mxu0
  %v356 = vadd.f32 %v195, %v355
  %357 = vmatmul.f32.gmra.mxu0 %v124
  %v358 = vpop.f32.mrf.mxu0
  %v359 = vadd.f32 %v195, %v358
  %360 = vmatmul.f32.gmra.mxu0 %v125
  %v361 = vpop.f32.mrf.mxu0
  %v362 = vadd.f32 %v195, %v361
  %363 = vdwg.mxu0
  %364 = vst [vmem:[#allocation4] sm:$0xff] %v218
  %365 = vst [vmem:[#allocation4 + $0x8] sm:$0xff] %v259
  %366 = vst [vmem:[#allocation4 + $0x10] sm:$0xff] %v300
  %367 = vst [vmem:[#allocation4 + $0x18] sm:$0xff] %v341
  %368 = vst [vmem:[#allocation4 + $0x20] sm:$0xff] %v221
  %369 = vst [vmem:[#allocation4 + $0x28] sm:$0xff] %v262
  %370 = vst [vmem:[#allocation4 + $0x30] sm:$0xff] %v303
  %371 = vst [vmem:[#allocation4 + $0x38] sm:$0xff] %v344
  %372 = vst [vmem:[#allocation4 + $0x40] sm:$0xff] %v224
  %373 = vst [vmem:[#allocation4 + $0x48] sm:$0xff] %v265
  %374 = vst [vmem:[#allocation4 + $0x50] sm:$0xff] %v306
  %375 = vst [vmem:[#allocation4 + $0x58] sm:$0xff] %v347
  %376 = vst [vmem:[#allocation4 + $0x60] sm:$0xff] %v227
  %377 = vst [vmem:[#allocation4 + $0x68] sm:$0xff] %v268
  %378 = vst [vmem:[#allocation4 + $0x70] sm:$0xff] %v309
  %379 = vst [vmem:[#allocation4 + $0x78] sm:$0xff] %v350
  %380 = vst [vmem:[#allocation4 + $0x80] sm:$0xff] %v230
  %381 = vst [vmem:[#allocation4 + $0x88] sm:$0xff] %v271
  %382 = vst [vmem:[#allocation4 + $0x90] sm:$0xff] %v312
  %383 = vst [vmem:[#allocation4 + $0x98] sm:$0xff] %v353
  %384 = vst [vmem:[#allocation4 + $0xa0] sm:$0xff] %v233
  %385 = vst [vmem:[#allocation4 + $0xa8] sm:$0xff] %v274
  %386 = vst [vmem:[#allocation4 + $0xb0] sm:$0xff] %v315
  %387 = vst [vmem:[#allocation4 + $0xb8] sm:$0xff] %v356
  %388 = vst [vmem:[#allocation4 + $0xc0] sm:$0xff] %v236
  %389 = vst [vmem:[#allocation4 + $0xc8] sm:$0xff] %v277
  %390 = vst [vmem:[#allocation4 + $0xd0] sm:$0xff] %v318
  %391 = vst [vmem:[#allocation4 + $0xd8] sm:$0xff] %v359
  %392 = vst [vmem:[#allocation4 + $0xe0] sm:$0xff] %v239
  %393 = vst [vmem:[#allocation4 + $0xe8] sm:$0xff] %v280
  %394 = vst [vmem:[#allocation4 + $0xf0] sm:$0xff] %v321
  %395 = vst [vmem:[#allocation4 + $0xf8] sm:$0xff] %v362
  %v396 = vld [vmem:[#allocation2] sm:$0xff]
  %v397 = vld [vmem:[#allocation3] sm:$0xff]
  %v398 = vld [vmem:[#allocation4] sm:$0xff]
  %v399 = vld [vmem:[#allocation4 + $0x8] sm:$0xff]
  %v400 = vld [vmem:[#allocation4 + $0x10] sm:$0xff]
  %v401 = vld [vmem:[#allocation4 + $0x18] sm:$0xff]
  %v402 = vld [vmem:[%s4] sm:$0xff]
  %v403 = vld [vmem:[%s4 + $0x8] sm:$0xff]
  %v404 = vld [vmem:[%s4 + $0x10] sm:$0xff]
  %v405 = vld [vmem:[%s4 + $0x18] sm:$0xff]
  %v406 = vld [vmem:[%s4 + $0x20] sm:$0xff]
  %v407 = vld [vmem:[%s4 + $0x28] sm:$0xff]
  %v408 = vld [vmem:[%s4 + $0x30] sm:$0xff]
  %v409 = vld [vmem:[%s4 + $0x38] sm:$0xff]
  %v410 = vld [vmem:[%s4 + $0x40] sm:$0xff]
  %v411 = vld [vmem:[%s4 + $0x48] sm:$0xff]
  %v412 = vld [vmem:[%s4 + $0x50] sm:$0xff]
  %v413 = vld [vmem:[%s4 + $0x58] sm:$0xff]
  %v414 = vld [vmem:[%s4 + $0x60] sm:$0xff]
  %v415 = vld [vmem:[%s4 + $0x68] sm:$0xff]
  %v416 = vld [vmem:[%s4 + $0x70] sm:$0xff]
  %v417 = vld [vmem:[%s4 + $0x78] sm:$0xff]
  %v418 = vld [vmem:[%s4 + $0x80] sm:$0xff]
  %v419 = vld [vmem:[%s4 + $0x88] sm:$0xff]
  %v420 = vld [vmem:[%s4 + $0x90] sm:$0xff]
  %v421 = vld [vmem:[%s4 + $0x98] sm:$0xff]
  %v422 = vld [vmem:[%s4 + $0xa0] sm:$0xff]
  %v423 = vld [vmem:[%s4 + $0xa8] sm:$0xff]
  %v424 = vld [vmem:[%s4 + $0xb0] sm:$0xff]
  %v425 = vld [vmem:[%s4 + $0xb8] sm:$0xff]
  %v426 = vld [vmem:[%s4 + $0xc0] sm:$0xff]
  %v427 = vld [vmem:[%s4 + $0xc8] sm:$0xff]
  %v428 = vld [vmem:[%s4 + $0xd0] sm:$0xff]
  %v429 = vld [vmem:[%s4 + $0xd8] sm:$0xff]
  %v430 = vld [vmem:[%s4 + $0xe0] sm:$0xff]
  %v431 = vld [vmem:[%s4 + $0xe8] sm:$0xff]
  %v432 = vld [vmem:[%s4 + $0xf0] sm:$0xff]
  %v433 = vld [vmem:[%s4 + $0xf8] sm:$0xff]
  %v434 = vld [vmem:[%s4 + $0x100] sm:$0xff]
  %v435 = vld [vmem:[%s4 + $0x108] sm:$0xff]
  %v436 = vld [vmem:[%s4 + $0x110] sm:$0xff]
  %v437 = vld [vmem:[%s4 + $0x118] sm:$0xff]
  %v438 = vld [vmem:[%s4 + $0x120] sm:$0xff]
  %v439 = vld [vmem:[%s4 + $0x128] sm:$0xff]
  %v440 = vld [vmem:[%s4 + $0x130] sm:$0xff]
  %v441 = vld [vmem:[%s4 + $0x138] sm:$0xff]
  %v442 = vld [vmem:[%s4 + $0x140] sm:$0xff]
  %v443 = vld [vmem:[%s4 + $0x148] sm:$0xff]
  %v444 = vld [vmem:[%s4 + $0x150] sm:$0xff]
  %v445 = vld [vmem:[%s4 + $0x158] sm:$0xff]
  %v446 = vld [vmem:[%s4 + $0x160] sm:$0xff]
  %v447 = vld [vmem:[%s4 + $0x168] sm:$0xff]
  %v448 = vld [vmem:[%s4 + $0x170] sm:$0xff]
  %v449 = vld [vmem:[%s4 + $0x178] sm:$0xff]
  %v450 = vld [vmem:[%s4 + $0x180] sm:$0xff]
  %v451 = vld [vmem:[%s4 + $0x188] sm:$0xff]
  %v452 = vld [vmem:[%s4 + $0x190] sm:$0xff]
  %v453 = vld [vmem:[%s4 + $0x198] sm:$0xff]
  %v454 = vld [vmem:[%s4 + $0x1a0] sm:$0xff]
  %v455 = vld [vmem:[%s4 + $0x1a8] sm:$0xff]
  %v456 = vld [vmem:[%s4 + $0x1b0] sm:$0xff]
  %v457 = vld [vmem:[%s4 + $0x1b8] sm:$0xff]
  %v458 = vld [vmem:[%s4 + $0x1c0] sm:$0xff]
  %v459 = vld [vmem:[%s4 + $0x1c8] sm:$0xff]
  %v460 = vld [vmem:[%s4 + $0x1d0] sm:$0xff]
  %v461 = vld [vmem:[%s4 + $0x1d8] sm:$0xff]
  %v462 = vld [vmem:[%s4 + $0x1e0] sm:$0xff]
  %v463 = vld [vmem:[%s4 + $0x1e8] sm:$0xff]
  %v464 = vld [vmem:[%s4 + $0x1f0] sm:$0xff]
  %v465 = vld [vmem:[%s4 + $0x1f8] sm:$0xff]
  %466 = vmatpush.msra.mxu0 %v462
  %467 = vmatpush.msra.mxu0 %v458
  %468 = vmatpush.msra.mxu0 %v454
  %469 = vmatpush.msra.mxu0 %v450
  %470 = vmatpush.msra.mxu0 %v446
  %471 = vmatpush.msra.mxu0 %v442
  %472 = vmatpush.msra.mxu0 %v438
  %473 = vmatpush.msra.mxu0 %v434
  %474 = vmatpush.msra.mxu0 %v430
  %475 = vmatpush.msra.mxu0 %v426
  %476 = vmatpush.msra.mxu0 %v422
  %477 = vmatpush.msra.mxu0 %v418
  %478 = vmatpush.msra.mxu0 %v414
  %479 = vmatpush.msra.mxu0 %v410
  %480 = vmatpush.msra.mxu0 %v406
  %481 = vmatpush.msra.mxu0 %v402
  %482 = vmatmul.f32.gmra.mxu0 %v396
  %v483 = vpop.f32.mrf.mxu0
  %v484 = vadd.f32 0.0, %v483
  %485 = vdwg.mxu0
  %486 = vmatpush.msra.mxu0 %v463
  %487 = vmatpush.msra.mxu0 %v459
  %488 = vmatpush.msra.mxu0 %v455
  %489 = vmatpush.msra.mxu0 %v451
  %490 = vmatpush.msra.mxu0 %v447
  %491 = vmatpush.msra.mxu0 %v443
  %492 = vmatpush.msra.mxu0 %v439
  %493 = vmatpush.msra.mxu0 %v435
  %494 = vmatpush.msra.mxu0 %v431
  %495 = vmatpush.msra.mxu0 %v427
  %496 = vmatpush.msra.mxu0 %v423
  %497 = vmatpush.msra.mxu0 %v419
  %498 = vmatpush.msra.mxu0 %v415
  %499 = vmatpush.msra.mxu0 %v411
  %500 = vmatpush.msra.mxu0 %v407
  %501 = vmatpush.msra.mxu0 %v403
  %502 = vmatmul.f32.gmra.mxu0 %v396
  %v503 = vpop.f32.mrf.mxu0
  %v504 = vadd.f32 0.0, %v503
  %505 = vdwg.mxu0
  %506 = vmatpush.msra.mxu0 %v464
  %507 = vmatpush.msra.mxu0 %v460
  %508 = vmatpush.msra.mxu0 %v456
  %509 = vmatpush.msra.mxu0 %v452
  %510 = vmatpush.msra.mxu0 %v448
  %511 = vmatpush.msra.mxu0 %v444
  %512 = vmatpush.msra.mxu0 %v440
  %513 = vmatpush.msra.mxu0 %v436
  %514 = vmatpush.msra.mxu0 %v432
  %515 = vmatpush.msra.mxu0 %v428
  %516 = vmatpush.msra.mxu0 %v424
  %517 = vmatpush.msra.mxu0 %v420
  %518 = vmatpush.msra.mxu0 %v416
  %519 = vmatpush.msra.mxu0 %v412
  %520 = vmatpush.msra.mxu0 %v408
  %521 = vmatpush.msra.mxu0 %v404
  %522 = vmatmul.f32.gmra.mxu0 %v396
  %v523 = vpop.f32.mrf.mxu0
  %v524 = vadd.f32 0.0, %v523
  %525 = vdwg.mxu0
  %526 = vmatpush.msra.mxu0 %v465
  %527 = vmatpush.msra.mxu0 %v461
  %528 = vmatpush.msra.mxu0 %v457
  %529 = vmatpush.msra.mxu0 %v453
  %530 = vmatpush.msra.mxu0 %v449
  %531 = vmatpush.msra.mxu0 %v445
  %532 = vmatpush.msra.mxu0 %v441
  %533 = vmatpush.msra.mxu0 %v437
  %534 = vmatpush.msra.mxu0 %v433
  %535 = vmatpush.msra.mxu0 %v429
  %536 = vmatpush.msra.mxu0 %v425
  %537 = vmatpush.msra.mxu0 %v421
  %538 = vmatpush.msra.mxu0 %v417
  %539 = vmatpush.msra.mxu0 %v413
  %540 = vmatpush.msra.mxu0 %v409
  %541 = vmatpush.msra.mxu0 %v405
  %542 = vmatmul.f32.gmra.mxu0 %v396
  %v543 = vpop.f32.mrf.mxu0
  %v544 = vadd.f32 0.0, %v543
  %545 = vdwg.mxu0
  %v546 = vadd.f32 %v398, %v484
  %v547 = vadd.f32 %v399, %v504
  %v548 = vadd.f32 %v400, %v524
  %v549 = vadd.f32 %v401, %v544
  %v550 = vxor.u32 %v546, 2147483648
  %v551 = vxor.u32 %v547, 2147483648
  %v552 = vxor.u32 %v548, 2147483648
  %v553 = vmul.f32 %v550, 1.442695
  %v554 = vpow.pop %v553
  %v555 = vmul.f32 %v551, 1.442695
  %v556 = vpow.pop %v555
  %v557 = vmul.f32 %v552, 1.442695
  %v558 = vpow.pop %v557
  %v559 = vadd.f32 %v554, 1.0
  %v560 = vadd.f32 %v556, 1.0
  %v561 = vadd.f32 %v558, 1.0
  %v562 = vrcp.pop %v559
  %v563 = vmul.f32 %v559, %v562
  %v564 = vsub.f32 1.0, %v563
  %v565 = vmul.f32 %v562, %v564
  %v566 = vadd.f32 %v562, %v565
  %vm567 = vweird.f32 %v559
  %vm568 = vweird.f32 %v562
  %vm569 = vmor %vm567, %vm568
  %v570 = vsel %vm569, %v562, %v566
  %v571 = vand.u32 2147483647, %v559
  %vm572 = vcmp.eq.f32.partialorder %v571, 8.507059e+37
  %v573 = vand.u32 %v559, 2147483648
  %v574 = vor.u32 1.1754944e-38, %v573
  %v575 = vsel %vm572, %v574, %v570
  %v576 = vmul.f32 1.0, %v575
  %v577 = vrcp.pop %v560
  %v578 = vmul.f32 %v560, %v577
  %v579 = vsub.f32 1.0, %v578
  %v580 = vmul.f32 %v577, %v579
  %v581 = vadd.f32 %v577, %v580
  %vm582 = vweird.f32 %v560
  %vm583 = vweird.f32 %v577
  %vm584 = vmor %vm582, %vm583
  %v585 = vsel %vm584, %v577, %v581
  %v586 = vand.u32 2147483647, %v560
  %vm587 = vcmp.eq.f32.partialorder %v586, 8.507059e+37
  %v588 = vand.u32 %v560, 2147483648
  %v589 = vor.u32 1.1754944e-38, %v588
  %v590 = vsel %vm587, %v589, %v585
  %v591 = vmul.f32 1.0, %v590
  %v592 = vrcp.pop %v561
  %v593 = vmul.f32 %v561, %v592
  %v594 = vsub.f32 1.0, %v593
  %v595 = vmul.f32 %v592, %v594
  %v596 = vadd.f32 %v592, %v595
  %vm597 = vweird.f32 %v561
  %vm598 = vweird.f32 %v592
  %vm599 = vmor %vm597, %vm598
  %v600 = vsel %vm599, %v592, %v596
  %v601 = vand.u32 2147483647, %v561
  %vm602 = vcmp.eq.f32.partialorder %v601, 8.507059e+37
  %v603 = vand.u32 %v561, 2147483648
  %v604 = vor.u32 1.1754944e-38, %v603
  %v605 = vsel %vm602, %v604, %v600
  %v606 = vmul.f32 1.0, %v605
  %v607 = vtanh.pop %v549
  %v608 = vmul.f32 %v591, %v397
  %v609 = vmul.f32 %v576, %v607
  %v610 = vadd.f32 %v608, %v609
  %v611 = vtanh.pop %v610
  %v612 = vmul.f32 %v606, %v611
  %613 = vst [vmem:[#allocation5] sm:$0xff] %v612
  %s614 = scalar_lea.vmem [#allocation4], 32
  %v615 = vld [vmem:[%s614] sm:$0xff]
  %v616 = vld [vmem:[%s614 + $0x8] sm:$0xff]
  %v617 = vld [vmem:[%s614 + $0x10] sm:$0xff]
  %v618 = vld [vmem:[%s614 + $0x18] sm:$0xff]
  %v619 = vld [vmem:[%s4] sm:$0xff]
  %v620 = vld [vmem:[%s4 + $0x8] sm:$0xff]
  %v621 = vld [vmem:[%s4 + $0x10] sm:$0xff]
  %v622 = vld [vmem:[%s4 + $0x18] sm:$0xff]
  %v623 = vld [vmem:[%s4 + $0x20] sm:$0xff]
  %v624 = vld [vmem:[%s4 + $0x28] sm:$0xff]
  %v625 = vld [vmem:[%s4 + $0x30] sm:$0xff]
  %v626 = vld [vmem:[%s4 + $0x38] sm:$0xff]
  %v627 = vld [vmem:[%s4 + $0x40] sm:$0xff]
  %v628 = vld [vmem:[%s4 + $0x48] sm:$0xff]
  %v629 = vld [vmem:[%s4 + $0x50] sm:$0xff]
  %v630 = vld [vmem:[%s4 + $0x58] sm:$0xff]
  %v631 = vld [vmem:[%s4 + $0x60] sm:$0xff]
  %v632 = vld [vmem:[%s4 + $0x68] sm:$0xff]
  %v633 = vld [vmem:[%s4 + $0x70] sm:$0xff]
  %v634 = vld [vmem:[%s4 + $0x78] sm:$0xff]
  %v635 = vld [vmem:[%s4 + $0x80] sm:$0xff]
  %v636 = vld [vmem:[%s4 + $0x88] sm:$0xff]
  %v637 = vld [vmem:[%s4 + $0x90] sm:$0xff]
  %v638 = vld [vmem:[%s4 + $0x98] sm:$0xff]
  %v639 = vld [vmem:[%s4 + $0xa0] sm:$0xff]
  %v640 = vld [vmem:[%s4 + $0xa8] sm:$0xff]
  %v641 = vld [vmem:[%s4 + $0xb0] sm:$0xff]
  %v642 = vld [vmem:[%s4 + $0xb8] sm:$0xff]
  %v643 = vld [vmem:[%s4 + $0xc0] sm:$0xff]
  %v644 = vld [vmem:[%s4 + $0xc8] sm:$0xff]
  %v645 = vld [vmem:[%s4 + $0xd0] sm:$0xff]
  %v646 = vld [vmem:[%s4 + $0xd8] sm:$0xff]
  %v647 = vld [vmem:[%s4 + $0xe0] sm:$0xff]
  %v648 = vld [vmem:[%s4 + $0xe8] sm:$0xff]
  %v649 = vld [vmem:[%s4 + $0xf0] sm:$0xff]
  %v650 = vld [vmem:[%s4 + $0xf8] sm:$0xff]
  %v651 = vld [vmem:[%s4 + $0x100] sm:$0xff]
  %v652 = vld [vmem:[%s4 + $0x108] sm:$0xff]
  %v653 = vld [vmem:[%s4 + $0x110] sm:$0xff]
  %v654 = vld [vmem:[%s4 + $0x118] sm:$0xff]
  %v655 = vld [vmem:[%s4 + $0x120] sm:$0xff]
  %v656 = vld [vmem:[%s4 + $0x128] sm:$0xff]
  %v657 = vld [vmem:[%s4 + $0x130] sm:$0xff]
  %v658 = vld [vmem:[%s4 + $0x138] sm:$0xff]
  %v659 = vld [vmem:[%s4 + $0x140] sm:$0xff]
  %v660 = vld [vmem:[%s4 + $0x148] sm:$0xff]
  %v661 = vld [vmem:[%s4 + $0x150] sm:$0xff]
  %v662 = vld [vmem:[%s4 + $0x158] sm:$0xff]
  %v663 = vld [vmem:[%s4 + $0x160] sm:$0xff]
  %v664 = vld [vmem:[%s4 + $0x168] sm:$0xff]
  %v665 = vld [vmem:[%s4 + $0x170] sm:$0xff]
  %v666 = vld [vmem:[%s4 + $0x178] sm:$0xff]
  %v667 = vld [vmem:[%s4 + $0x180] sm:$0xff]
  %v668 = vld [vmem:[%s4 + $0x188] sm:$0xff]
  %v669 = vld [vmem:[%s4 + $0x190] sm:$0xff]
  %v670 = vld [vmem:[%s4 + $0x198] sm:$0xff]
  %v671 = vld [vmem:[%s4 + $0x1a0] sm:$0xff]
  %v672 = vld [vmem:[%s4 + $0x1a8] sm:$0xff]
  %v673 = vld [vmem:[%s4 + $0x1b0] sm:$0xff]
  %v674 = vld [vmem:[%s4 + $0x1b8] sm:$0xff]
  %v675 = vld [vmem:[%s4 + $0x1c0] sm:$0xff]
  %v676 = vld [vmem:[%s4 + $0x1c8] sm:$0xff]
  %v677 = vld [vmem:[%s4 + $0x1d0] sm:$0xff]
  %v678 = vld [vmem:[%s4 + $0x1d8] sm:$0xff]
  %v679 = vld [vmem:[%s4 + $0x1e0] sm:$0xff]
  %v680 = vld [vmem:[%s4 + $0x1e8] sm:$0xff]
  %v681 = vld [vmem:[%s4 + $0x1f0] sm:$0xff]
  %v682 = vld [vmem:[%s4 + $0x1f8] sm:$0xff]
  %683 = vmatpush.msra.mxu0 %v679
  %684 = vmatpush.msra.mxu0 %v675
  %685 = vmatpush.msra.mxu0 %v671
  %686 = vmatpush.msra.mxu0 %v667
  %687 = vmatpush.msra.mxu0 %v663
  %688 = vmatpush.msra.mxu0 %v659
  %689 = vmatpush.msra.mxu0 %v655
  %690 = vmatpush.msra.mxu0 %v651
  %691 = vmatpush.msra.mxu0 %v647
  %692 = vmatpush.msra.mxu0 %v643
  %693 = vmatpush.msra.mxu0 %v639
  %694 = vmatpush.msra.mxu0 %v635
  %695 = vmatpush.msra.mxu0 %v631
  %696 = vmatpush.msra.mxu0 %v627
  %697 = vmatpush.msra.mxu0 %v623
  %698 = vmatpush.msra.mxu0 %v619
  %699 = vmatmul.f32.gmra.mxu0 %v612
  %v700 = vpop.f32.mrf.mxu0
  %v701 = vadd.f32 0.0, %v700
  %702 = vdwg.mxu0
  %703 = vmatpush.msra.mxu0 %v680
  %704 = vmatpush.msra.mxu0 %v676
  %705 = vmatpush.msra.mxu0 %v672
  %706 = vmatpush.msra.mxu0 %v668
  %707 = vmatpush.msra.mxu0 %v664
  %708 = vmatpush.msra.mxu0 %v660
  %709 = vmatpush.msra.mxu0 %v656
  %710 = vmatpush.msra.mxu0 %v652
  %711 = vmatpush.msra.mxu0 %v648
  %712 = vmatpush.msra.mxu0 %v644
  %713 = vmatpush.msra.mxu0 %v640
  %714 = vmatpush.msra.mxu0 %v636
  %715 = vmatpush.msra.mxu0 %v632
  %716 = vmatpush.msra.mxu0 %v628
  %717 = vmatpush.msra.mxu0 %v624
  %718 = vmatpush.msra.mxu0 %v620
  %719 = vmatmul.f32.gmra.mxu0 %v612
  %v720 = vpop.f32.mrf.mxu0
  %v721 = vadd.f32 0.0, %v720
  %722 = vdwg.mxu0
  %723 = vmatpush.msra.mxu0 %v681
  %724 = vmatpush.msra.mxu0 %v677
  %725 = vmatpush.msra.mxu0 %v673
  %726 = vmatpush.msra.mxu0 %v669
  %727 = vmatpush.msra.mxu0 %v665
  %728 = vmatpush.msra.mxu0 %v661
  %729 = vmatpush.msra.mxu0 %v657
  %730 = vmatpush.msra.mxu0 %v653
  %731 = vmatpush.msra.mxu0 %v649
  %732 = vmatpush.msra.mxu0 %v645
  %733 = vmatpush.msra.mxu0 %v641
  %734 = vmatpush.msra.mxu0 %v637
  %735 = vmatpush.msra.mxu0 %v633
  %736 = vmatpush.msra.mxu0 %v629
  %737 = vmatpush.msra.mxu0 %v625
  %738 = vmatpush.msra.mxu0 %v621
  %739 = vmatmul.f32.gmra.mxu0 %v612
  %v740 = vpop.f32.mrf.mxu0
  %v741 = vadd.f32 0.0, %v740
  %742 = vdwg.mxu0
  %743 = vmatpush.msra.mxu0 %v682
  %744 = vmatpush.msra.mxu0 %v678
  %745 = vmatpush.msra.mxu0 %v674
  %746 = vmatpush.msra.mxu0 %v670
  %747 = vmatpush.msra.mxu0 %v666
  %748 = vmatpush.msra.mxu0 %v662
  %749 = vmatpush.msra.mxu0 %v658
  %750 = vmatpush.msra.mxu0 %v654
  %751 = vmatpush.msra.mxu0 %v650
  %752 = vmatpush.msra.mxu0 %v646
  %753 = vmatpush.msra.mxu0 %v642
  %754 = vmatpush.msra.mxu0 %v638
  %755 = vmatpush.msra.mxu0 %v634
  %756 = vmatpush.msra.mxu0 %v630
  %757 = vmatpush.msra.mxu0 %v626
  %758 = vmatpush.msra.mxu0 %v622
  %759 = vmatmul.f32.gmra.mxu0 %v612
  %v760 = vpop.f32.mrf.mxu0
  %v761 = vadd.f32 0.0, %v760
  %762 = vdwg.mxu0
  %v763 = vadd.f32 %v615, %v701
  %v764 = vadd.f32 %v616, %v721
  %v765 = vadd.f32 %v617, %v741
  %v766 = vadd.f32 %v618, %v761
  %v767 = vxor.u32 %v763, 2147483648
  %v768 = vxor.u32 %v764, 2147483648
  %v769 = vxor.u32 %v765, 2147483648
  %v770 = vmul.f32 %v767, 1.442695
  %v771 = vpow.pop %v770
  %v772 = vmul.f32 %v768, 1.442695
  %v773 = vpow.pop %v772
  %v774 = vmul.f32 %v769, 1.442695
  %v775 = vpow.pop %v774
  %v776 = vadd.f32 %v771, 1.0
  %v777 = vadd.f32 %v773, 1.0
  %v778 = vadd.f32 %v775, 1.0
  %v779 = vrcp.pop %v776
  %v780 = vmul.f32 %v776, %v779
  %v781 = vsub.f32 1.0, %v780
  %v782 = vmul.f32 %v779, %v781
  %v783 = vadd.f32 %v779, %v782
  %vm784 = vweird.f32 %v776
  %vm785 = vweird.f32 %v779
  %vm786 = vmor %vm784, %vm785
  %v787 = vsel %vm786, %v779, %v783
  %v788 = vand.u32 2147483647, %v776
  %vm789 = vcmp.eq.f32.partialorder %v788, 8.507059e+37
  %v790 = vand.u32 %v776, 2147483648
  %v791 = vor.u32 1.1754944e-38, %v790
  %v792 = vsel %vm789, %v791, %v787
  %v793 = vmul.f32 1.0, %v792
  %v794 = vrcp.pop %v777
  %v795 = vmul.f32 %v777, %v794
  %v796 = vsub.f32 1.0, %v795
  %v797 = vmul.f32 %v794, %v796
  %v798 = vadd.f32 %v794, %v797
  %vm799 = vweird.f32 %v777
  %vm800 = vweird.f32 %v794
  %vm801 = vmor %vm799, %vm800
  %v802 = vsel %vm801, %v794, %v798
  %v803 = vand.u32 2147483647, %v777
  %vm804 = vcmp.eq.f32.partialorder %v803, 8.507059e+37
  %v805 = vand.u32 %v777, 2147483648
  %v806 = vor.u32 1.1754944e-38, %v805
  %v807 = vsel %vm804, %v806, %v802
  %v808 = vmul.f32 1.0, %v807
  %v809 = vrcp.pop %v778
  %v810 = vmul.f32 %v778, %v809
  %v811 = vsub.f32 1.0, %v810
  %v812 = vmul.f32 %v809, %v811
  %v813 = vadd.f32 %v809, %v812
  %vm814 = vweird.f32 %v778
  %vm815 = vweird.f32 %v809
  %vm816 = vmor %vm814, %vm815
  %v817 = vsel %vm816, %v809, %v813
  %v818 = vand.u32 2147483647, %v778
  %vm819 = vcmp.eq.f32.partialorder %v818, 8.507059e+37
  %v820 = vand.u32 %v778, 2147483648
  %v821 = vor.u32 1.1754944e-38, %v820
  %v822 = vsel %vm819, %v821, %v817
  %v823 = vmul.f32 1.0, %v822
  %v824 = vtanh.pop %v766
  %v825 = vmul.f32 %v808, %v610
  %v826 = vmul.f32 %v793, %v824
  %v827 = vadd.f32 %v825, %v826
  %v828 = vtanh.pop %v827
  %v829 = vmul.f32 %v823, %v828
  %s830 = scalar_lea.vmem [#allocation5], 8
  %831 = vst [vmem:[%s830] sm:$0xff] %v829
  %s832 = scalar_lea.vmem [#allocation4], 64
  %v833 = vld [vmem:[%s832] sm:$0xff]
  %v834 = vld [vmem:[%s832 + $0x8] sm:$0xff]
  %v835 = vld [vmem:[%s832 + $0x10] sm:$0xff]
  %v836 = vld [vmem:[%s832 + $0x18] sm:$0xff]
  %v837 = vld [vmem:[%s4] sm:$0xff]
  %v838 = vld [vmem:[%s4 + $0x8] sm:$0xff]
  %v839 = vld [vmem:[%s4 + $0x10] sm:$0xff]
  %v840 = vld [vmem:[%s4 + $0x18] sm:$0xff]
  %v841 = vld [vmem:[%s4 + $0x20] sm:$0xff]
  %v842 = vld [vmem:[%s4 + $0x28] sm:$0xff]
  %v843 = vld [vmem:[%s4 + $0x30] sm:$0xff]
  %v844 = vld [vmem:[%s4 + $0x38] sm:$0xff]
  %v845 = vld [vmem:[%s4 + $0x40] sm:$0xff]
  %v846 = vld [vmem:[%s4 + $0x48] sm:$0xff]
  %v847 = vld [vmem:[%s4 + $0x50] sm:$0xff]
  %v848 = vld [vmem:[%s4 + $0x58] sm:$0xff]
  %v849 = vld [vmem:[%s4 + $0x60] sm:$0xff]
  %v850 = vld [vmem:[%s4 + $0x68] sm:$0xff]
  %v851 = vld [vmem:[%s4 + $0x70] sm:$0xff]
  %v852 = vld [vmem:[%s4 + $0x78] sm:$0xff]
  %v853 = vld [vmem:[%s4 + $0x80] sm:$0xff]
  %v854 = vld [vmem:[%s4 + $0x88] sm:$0xff]
  %v855 = vld [vmem:[%s4 + $0x90] sm:$0xff]
  %v856 = vld [vmem:[%s4 + $0x98] sm:$0xff]
  %v857 = vld [vmem:[%s4 + $0xa0] sm:$0xff]
  %v858 = vld [vmem:[%s4 + $0xa8] sm:$0xff]
  %v859 = vld [vmem:[%s4 + $0xb0] sm:$0xff]
  %v860 = vld [vmem:[%s4 + $0xb8] sm:$0xff]
  %v861 = vld [vmem:[%s4 + $0xc0] sm:$0xff]
  %v862 = vld [vmem:[%s4 + $0xc8] sm:$0xff]
  %v863 = vld [vmem:[%s4 + $0xd0] sm:$0xff]
  %v864 = vld [vmem:[%s4 + $0xd8] sm:$0xff]
  %v865 = vld [vmem:[%s4 + $0xe0] sm:$0xff]
  %v866 = vld [vmem:[%s4 + $0xe8] sm:$0xff]
  %v867 = vld [vmem:[%s4 + $0xf0] sm:$0xff]
  %v868 = vld [vmem:[%s4 + $0xf8] sm:$0xff]
  %v869 = vld [vmem:[%s4 + $0x100] sm:$0xff]
  %v870 = vld [vmem:[%s4 + $0x108] sm:$0xff]
  %v871 = vld [vmem:[%s4 + $0x110] sm:$0xff]
  %v872 = vld [vmem:[%s4 + $0x118] sm:$0xff]
  %v873 = vld [vmem:[%s4 + $0x120] sm:$0xff]
  %v874 = vld [vmem:[%s4 + $0x128] sm:$0xff]
  %v875 = vld [vmem:[%s4 + $0x130] sm:$0xff]
  %v876 = vld [vmem:[%s4 + $0x138] sm:$0xff]
  %v877 = vld [vmem:[%s4 + $0x140] sm:$0xff]
  %v878 = vld [vmem:[%s4 + $0x148] sm:$0xff]
  %v879 = vld [vmem:[%s4 + $0x150] sm:$0xff]
  %v880 = vld [vmem:[%s4 + $0x158] sm:$0xff]
  %v881 = vld [vmem:[%s4 + $0x160] sm:$0xff]
  %v882 = vld [vmem:[%s4 + $0x168] sm:$0xff]
  %v883 = vld [vmem:[%s4 + $0x170] sm:$0xff]
  %v884 = vld [vmem:[%s4 + $0x178] sm:$0xff]
  %v885 = vld [vmem:[%s4 + $0x180] sm:$0xff]
  %v886 = vld [vmem:[%s4 + $0x188] sm:$0xff]
  %v887 = vld [vmem:[%s4 + $0x190] sm:$0xff]
  %v888 = vld [vmem:[%s4 + $0x198] sm:$0xff]
  %v889 = vld [vmem:[%s4 + $0x1a0] sm:$0xff]
  %v890 = vld [vmem:[%s4 + $0x1a8] sm:$0xff]
  %v891 = vld [vmem:[%s4 + $0x1b0] sm:$0xff]
  %v892 = vld [vmem:[%s4 + $0x1b8] sm:$0xff]
  %v893 = vld [vmem:[%s4 + $0x1c0] sm:$0xff]
  %v894 = vld [vmem:[%s4 + $0x1c8] sm:$0xff]
  %v895 = vld [vmem:[%s4 + $0x1d0] sm:$0xff]
  %v896 = vld [vmem:[%s4 + $0x1d8] sm:$0xff]
  %v897 = vld [vmem:[%s4 + $0x1e0] sm:$0xff]
  %v898 = vld [vmem:[%s4 + $0x1e8] sm:$0xff]
  %v899 = vld [vmem:[%s4 + $0x1f0] sm:$0xff]
  %v900 = vld [vmem:[%s4 + $0x1f8] sm:$0xff]
  %901 = vmatpush.msra.mxu0 %v897
  %902 = vmatpush.msra.mxu0 %v893
  %903 = vmatpush.msra.mxu0 %v889
  %904 = vmatpush.msra.mxu0 %v885
  %905 = vmatpush.msra.mxu0 %v881
  %906 = vmatpush.msra.mxu0 %v877
  %907 = vmatpush.msra.mxu0 %v873
  %908 = vmatpush.msra.mxu0 %v869
  %909 = vmatpush.msra.mxu0 %v865
  %910 = vmatpush.msra.mxu0 %v861
  %911 = vmatpush.msra.mxu0 %v857
  %912 = vmatpush.msra.mxu0 %v853
  %913 = vmatpush.msra.mxu0 %v849
  %914 = vmatpush.msra.mxu0 %v845
  %915 = vmatpush.msra.mxu0 %v841
  %916 = vmatpush.msra.mxu0 %v837
  %917 = vmatmul.f32.gmra.mxu0 %v829
  %v918 = vpop.f32.mrf.mxu0
  %v919 = vadd.f32 0.0, %v918
  %920 = vdwg.mxu0
  %921 = vmatpush.msra.mxu0 %v898
  %922 = vmatpush.msra.mxu0 %v894
  %923 = vmatpush.msra.mxu0 %v890
  %924 = vmatpush.msra.mxu0 %v886
  %925 = vmatpush.msra.mxu0 %v882
  %926 = vmatpush.msra.mxu0 %v878
  %927 = vmatpush.msra.mxu0 %v874
  %928 = vmatpush.msra.mxu0 %v870
  %929 = vmatpush.msra.mxu0 %v866
  %930 = vmatpush.msra.mxu0 %v862
  %931 = vmatpush.msra.mxu0 %v858
  %932 = vmatpush.msra.mxu0 %v854
  %933 = vmatpush.msra.mxu0 %v850
  %934 = vmatpush.msra.mxu0 %v846
  %935 = vmatpush.msra.mxu0 %v842
  %936 = vmatpush.msra.mxu0 %v838
  %937 = vmatmul.f32.gmra.mxu0 %v829
  %v938 = vpop.f32.mrf.mxu0
  %v939 = vadd.f32 0.0, %v938
  %940 = vdwg.mxu0
  %941 = vmatpush.msra.mxu0 %v899
  %942 = vmatpush.msra.mxu0 %v895
  %943 = vmatpush.msra.mxu0 %v891
  %944 = vmatpush.msra.mxu0 %v887
  %945 = vmatpush.msra.mxu0 %v883
  %946 = vmatpush.msra.mxu0 %v879
  %947 = vmatpush.msra.mxu0 %v875
  %948 = vmatpush.msra.mxu0 %v871
  %949 = vmatpush.msra.mxu0 %v867
  %950 = vmatpush.msra.mxu0 %v863
  %951 = vmatpush.msra.mxu0 %v859
  %952 = vmatpush.msra.mxu0 %v855
  %953 = vmatpush.msra.mxu0 %v851
  %954 = vmatpush.msra.mxu0 %v847
  %955 = vmatpush.msra.mxu0 %v843
  %956 = vmatpush.msra.mxu0 %v839
  %957 = vmatmul.f32.gmra.mxu0 %v829
  %v958 = vpop.f32.mrf.mxu0
  %v959 = vadd.f32 0.0, %v958
  %960 = vdwg.mxu0
  %961 = vmatpush.msra.mxu0 %v900
  %962 = vmatpush.msra.mxu0 %v896
  %963 = vmatpush.msra.mxu0 %v892
  %964 = vmatpush.msra.mxu0 %v888
  %965 = vmatpush.msra.mxu0 %v884
  %966 = vmatpush.msra.mxu0 %v880
  %967 = vmatpush.msra.mxu0 %v876
  %968 = vmatpush.msra.mxu0 %v872
  %969 = vmatpush.msra.mxu0 %v868
  %970 = vmatpush.msra.mxu0 %v864
  %971 = vmatpush.msra.mxu0 %v860
  %972 = vmatpush.msra.mxu0 %v856
  %973 = vmatpush.msra.mxu0 %v852
  %974 = vmatpush.msra.mxu0 %v848
  %975 = vmatpush.msra.mxu0 %v844
  %976 = vmatpush.msra.mxu0 %v840
  %977 = vmatmul.f32.gmra.mxu0 %v829
  %v978 = vpop.f32.mrf.mxu0
  %v979 = vadd.f32 0.0, %v978
  %980 = vdwg.mxu0
  %v981 = vadd.f32 %v833, %v919
  %v982 = vadd.f32 %v834, %v939
  %v983 = vadd.f32 %v835, %v959
  %v984 = vadd.f32 %v836, %v979
  %v985 = vxor.u32 %v981, 2147483648
  %v986 = vxor.u32 %v982, 2147483648
  %v987 = vxor.u32 %v983, 2147483648
  %v988 = vmul.f32 %v985, 1.442695
  %v989 = vpow.pop %v988
  %v990 = vmul.f32 %v986, 1.442695
  %v991 = vpow.pop %v990
  %v992 = vmul.f32 %v987, 1.442695
  %v993 = vpow.pop %v992
  %v994 = vadd.f32 %v989, 1.0
  %v995 = vadd.f32 %v991, 1.0
  %v996 = vadd.f32 %v993, 1.0
  %v997 = vrcp.pop %v994
  %v998 = vmul.f32 %v994, %v997
  %v999 = vsub.f32 1.0, %v998
  %v1000 = vmul.f32 %v997, %v999
  %v1001 = vadd.f32 %v997, %v1000
  %vm1002 = vweird.f32 %v994
  %vm1003 = vweird.f32 %v997
  %vm1004 = vmor %vm1002, %vm1003
  %v1005 = vsel %vm1004, %v997, %v1001
  %v1006 = vand.u32 2147483647, %v994
  %vm1007 = vcmp.eq.f32.partialorder %v1006, 8.507059e+37
  %v1008 = vand.u32 %v994, 2147483648
  %v1009 = vor.u32 1.1754944e-38, %v1008
  %v1010 = vsel %vm1007, %v1009, %v1005
  %v1011 = vmul.f32 1.0, %v1010
  %v1012 = vrcp.pop %v995
  %v1013 = vmul.f32 %v995, %v1012
  %v1014 = vsub.f32 1.0, %v1013
  %v1015 = vmul.f32 %v1012, %v1014
  %v1016 = vadd.f32 %v1012, %v1015
  %vm1017 = vweird.f32 %v995
  %vm1018 = vweird.f32 %v1012
  %vm1019 = vmor %vm1017, %vm1018
  %v1020 = vsel %vm1019, %v1012, %v1016
  %v1021 = vand.u32 2147483647, %v995
  %vm1022 = vcmp.eq.f32.partialorder %v1021, 8.507059e+37
  %v1023 = vand.u32 %v995, 2147483648
  %v1024 = vor.u32 1.1754944e-38, %v1023
  %v1025 = vsel %vm1022, %v1024, %v1020
  %v1026 = vmul.f32 1.0, %v1025
  %v1027 = vrcp.pop %v996
  %v1028 = vmul.f32 %v996, %v1027
  %v1029 = vsub.f32 1.0, %v1028
  %v1030 = vmul.f32 %v1027, %v1029
  %v1031 = vadd.f32 %v1027, %v1030
  %vm1032 = vweird.f32 %v996
  %vm1033 = vweird.f32 %v1027
  %vm1034 = vmor %vm1032, %vm1033
  %v1035 = vsel %vm1034, %v1027, %v1031
  %v1036 = vand.u32 2147483647, %v996
  %vm1037 = vcmp.eq.f32.partialorder %v1036, 8.507059e+37
  %v1038 = vand.u32 %v996, 2147483648
  %v1039 = vor.u32 1.1754944e-38, %v1038
  %v1040 = vsel %vm1037, %v1039, %v1035
  %v1041 = vmul.f32 1.0, %v1040
  %v1042 = vtanh.pop %v984
  %v1043 = vmul.f32 %v1026, %v827
  %v1044 = vmul.f32 %v1011, %v1042
  %v1045 = vadd.f32 %v1043, %v1044
  %v1046 = vtanh.pop %v1045
  %v1047 = vmul.f32 %v1041, %v1046
  %s1048 = scalar_lea.vmem [#allocation5], 16
  %1049 = vst [vmem:[%s1048] sm:$0xff] %v1047
  %s1050 = scalar_lea.vmem [#allocation4], 96
  %v1051 = vld [vmem:[%s1050] sm:$0xff]
  %v1052 = vld [vmem:[%s1050 + $0x8] sm:$0xff]
  %v1053 = vld [vmem:[%s1050 + $0x10] sm:$0xff]
  %v1054 = vld [vmem:[%s1050 + $0x18] sm:$0xff]
  %v1055 = vld [vmem:[%s4] sm:$0xff]
  %v1056 = vld [vmem:[%s4 + $0x8] sm:$0xff]
  %v1057 = vld [vmem:[%s4 + $0x10] sm:$0xff]
  %v1058 = vld [vmem:[%s4 + $0x18] sm:$0xff]
  %v1059 = vld [vmem:[%s4 + $0x20] sm:$0xff]
  %v1060 = vld [vmem:[%s4 + $0x28] sm:$0xff]
  %v1061 = vld [vmem:[%s4 + $0x30] sm:$0xff]
  %v1062 = vld [vmem:[%s4 + $0x38] sm:$0xff]
  %v1063 = vld [vmem:[%s4 + $0x40] sm:$0xff]
  %v1064 = vld [vmem:[%s4 + $0x48] sm:$0xff]
  %v1065 = vld [vmem:[%s4 + $0x50] sm:$0xff]
  %v1066 = vld [vmem:[%s4 + $0x58] sm:$0xff]
  %v1067 = vld [vmem:[%s4 + $0x60] sm:$0xff]
  %v1068 = vld [vmem:[%s4 + $0x68] sm:$0xff]
  %v1069 = vld [vmem:[%s4 + $0x70] sm:$0xff]
  %v1070 = vld [vmem:[%s4 + $0x78] sm:$0xff]
  %v1071 = vld [vmem:[%s4 + $0x80] sm:$0xff]
  %v1072 = vld [vmem:[%s4 + $0x88] sm:$0xff]
  %v1073 = vld [vmem:[%s4 + $0x90] sm:$0xff]
  %v1074 = vld [vmem:[%s4 + $0x98] sm:$0xff]
  %v1075 = vld [vmem:[%s4 + $0xa0] sm:$0xff]
  %v1076 = vld [vmem:[%s4 + $0xa8] sm:$0xff]
  %v1077 = vld [vmem:[%s4 + $0xb0] sm:$0xff]
  %v1078 = vld [vmem:[%s4 + $0xb8] sm:$0xff]
  %v1079 = vld [vmem:[%s4 + $0xc0] sm:$0xff]
  %v1080 = vld [vmem:[%s4 + $0xc8] sm:$0xff]
  %v1081 = vld [vmem:[%s4 + $0xd0] sm:$0xff]
  %v1082 = vld [vmem:[%s4 + $0xd8] sm:$0xff]
  %v1083 = vld [vmem:[%s4 + $0xe0] sm:$0xff]
  %v1084 = vld [vmem:[%s4 + $0xe8] sm:$0xff]
  %v1085 = vld [vmem:[%s4 + $0xf0] sm:$0xff]
  %v1086 = vld [vmem:[%s4 + $0xf8] sm:$0xff]
  %v1087 = vld [vmem:[%s4 + $0x100] sm:$0xff]
  %v1088 = vld [vmem:[%s4 + $0x108] sm:$0xff]
  %v1089 = vld [vmem:[%s4 + $0x110] sm:$0xff]
  %v1090 = vld [vmem:[%s4 + $0x118] sm:$0xff]
  %v1091 = vld [vmem:[%s4 + $0x120] sm:$0xff]
  %v1092 = vld [vmem:[%s4 + $0x128] sm:$0xff]
  %v1093 = vld [vmem:[%s4 + $0x130] sm:$0xff]
  %v1094 = vld [vmem:[%s4 + $0x138] sm:$0xff]
  %v1095 = vld [vmem:[%s4 + $0x140] sm:$0xff]
  %v1096 = vld [vmem:[%s4 + $0x148] sm:$0xff]
  %v1097 = vld [vmem:[%s4 + $0x150] sm:$0xff]
  %v1098 = vld [vmem:[%s4 + $0x158] sm:$0xff]
  %v1099 = vld [vmem:[%s4 + $0x160] sm:$0xff]
  %v1100 = vld [vmem:[%s4 + $0x168] sm:$0xff]
  %v1101 = vld [vmem:[%s4 + $0x170] sm:$0xff]
  %v1102 = vld [vmem:[%s4 + $0x178] sm:$0xff]
  %v1103 = vld [vmem:[%s4 + $0x180] sm:$0xff]
  %v1104 = vld [vmem:[%s4 + $0x188] sm:$0xff]
  %v1105 = vld [vmem:[%s4 + $0x190] sm:$0xff]
  %v1106 = vld [vmem:[%s4 + $0x198] sm:$0xff]
  %v1107 = vld [vmem:[%s4 + $0x1a0] sm:$0xff]
  %v1108 = vld [vmem:[%s4 + $0x1a8] sm:$0xff]
  %v1109 = vld [vmem:[%s4 + $0x1b0] sm:$0xff]
  %v1110 = vld [vmem:[%s4 + $0x1b8] sm:$0xff]
  %v1111 = vld [vmem:[%s4 + $0x1c0] sm:$0xff]
  %v1112 = vld [vmem:[%s4 + $0x1c8] sm:$0xff]
  %v1113 = vld [vmem:[%s4 + $0x1d0] sm:$0xff]
  %v1114 = vld [vmem:[%s4 + $0x1d8] sm:$0xff]
  %v1115 = vld [vmem:[%s4 + $0x1e0] sm:$0xff]
  %v1116 = vld [vmem:[%s4 + $0x1e8] sm:$0xff]
  %v1117 = vld [vmem:[%s4 + $0x1f0] sm:$0xff]
  %v1118 = vld [vmem:[%s4 + $0x1f8] sm:$0xff]
  %1119 = vmatpush.msra.mxu0 %v1115
  %1120 = vmatpush.msra.mxu0 %v1111
  %1121 = vmatpush.msra.mxu0 %v1107
  %1122 = vmatpush.msra.mxu0 %v1103
  %1123 = vmatpush.msra.mxu0 %v1099
  %1124 = vmatpush.msra.mxu0 %v1095
  %1125 = vmatpush.msra.mxu0 %v1091
  %1126 = vmatpush.msra.mxu0 %v1087
  %1127 = vmatpush.msra.mxu0 %v1083
  %1128 = vmatpush.msra.mxu0 %v1079
  %1129 = vmatpush.msra.mxu0 %v1075
  %1130 = vmatpush.msra.mxu0 %v1071
  %1131 = vmatpush.msra.mxu0 %v1067
  %1132 = vmatpush.msra.mxu0 %v1063
  %1133 = vmatpush.msra.mxu0 %v1059
  %1134 = vmatpush.msra.mxu0 %v1055
  %1135 = vmatmul.f32.gmra.mxu0 %v1047
  %v1136 = vpop.f32.mrf.mxu0
  %v1137 = vadd.f32 0.0, %v1136
  %1138 = vdwg.mxu0
  %1139 = vmatpush.msra.mxu0 %v1116
  %1140 = vmatpush.msra.mxu0 %v1112
  %1141 = vmatpush.msra.mxu0 %v1108
  %1142 = vmatpush.msra.mxu0 %v1104
  %1143 = vmatpush.msra.mxu0 %v1100
  %1144 = vmatpush.msra.mxu0 %v1096
  %1145 = vmatpush.msra.mxu0 %v1092
  %1146 = vmatpush.msra.mxu0 %v1088
  %1147 = vmatpush.msra.mxu0 %v1084
  %1148 = vmatpush.msra.mxu0 %v1080
  %1149 = vmatpush.msra.mxu0 %v1076
  %1150 = vmatpush.msra.mxu0 %v1072
  %1151 = vmatpush.msra.mxu0 %v1068
  %1152 = vmatpush.msra.mxu0 %v1064
  %1153 = vmatpush.msra.mxu0 %v1060
  %1154 = vmatpush.msra.mxu0 %v1056
  %1155 = vmatmul.f32.gmra.mxu0 %v1047
  %v1156 = vpop.f32.mrf.mxu0
  %v1157 = vadd.f32 0.0, %v1156
  %1158 = vdwg.mxu0
  %1159 = vmatpush.msra.mxu0 %v1117
  %1160 = vmatpush.msra.mxu0 %v1113
  %1161 = vmatpush.msra.mxu0 %v1109
  %1162 = vmatpush.msra.mxu0 %v1105
  %1163 = vmatpush.msra.mxu0 %v1101
  %1164 = vmatpush.msra.mxu0 %v1097
  %1165 = vmatpush.msra.mxu0 %v1093
  %1166 = vmatpush.msra.mxu0 %v1089
  %1167 = vmatpush.msra.mxu0 %v1085
  %1168 = vmatpush.msra.mxu0 %v1081
  %1169 = vmatpush.msra.mxu0 %v1077
  %1170 = vmatpush.msra.mxu0 %v1073
  %1171 = vmatpush.msra.mxu0 %v1069
  %1172 = vmatpush.msra.mxu0 %v1065
  %1173 = vmatpush.msra.mxu0 %v1061
  %1174 = vmatpush.msra.mxu0 %v1057
  %1175 = vmatmul.f32.gmra.mxu0 %v1047
  %v1176 = vpop.f32.mrf.mxu0
  %v1177 = vadd.f32 0.0, %v1176
  %1178 = vdwg.mxu0
  %1179 = vmatpush.msra.mxu0 %v1118
  %1180 = vmatpush.msra.mxu0 %v1114
  %1181 = vmatpush.msra.mxu0 %v1110
  %1182 = vmatpush.msra.mxu0 %v1106
  %1183 = vmatpush.msra.mxu0 %v1102
  %1184 = vmatpush.msra.mxu0 %v1098
  %1185 = vmatpush.msra.mxu0 %v1094
  %1186 = vmatpush.msra.mxu0 %v1090
  %1187 = vmatpush.msra.mxu0 %v1086
  %1188 = vmatpush.msra.mxu0 %v1082
  %1189 = vmatpush.msra.mxu0 %v1078
  %1190 = vmatpush.msra.mxu0 %v1074
  %1191 = vmatpush.msra.mxu0 %v1070
  %1192 = vmatpush.msra.mxu0 %v1066
  %1193 = vmatpush.msra.mxu0 %v1062
  %1194 = vmatpush.msra.mxu0 %v1058
  %1195 = vmatmul.f32.gmra.mxu0 %v1047
  %v1196 = vpop.f32.mrf.mxu0
  %v1197 = vadd.f32 0.0, %v1196
  %1198 = vdwg.mxu0
  %v1199 = vadd.f32 %v1051, %v1137
  %v1200 = vadd.f32 %v1052, %v1157
  %v1201 = vadd.f32 %v1053, %v1177
  %v1202 = vadd.f32 %v1054, %v1197
  %v1203 = vxor.u32 %v1199, 2147483648
  %v1204 = vxor.u32 %v1200, 2147483648
  %v1205 = vxor.u32 %v1201, 2147483648
  %v1206 = vmul.f32 %v1203, 1.442695
  %v1207 = vpow.pop %v1206
  %v1208 = vmul.f32 %v1204, 1.442695
  %v1209 = vpow.pop %v1208
  %v1210 = vmul.f32 %v1205, 1.442695
  %v1211 = vpow.pop %v1210
  %v1212 = vadd.f32 %v1207, 1.0
  %v1213 = vadd.f32 %v1209, 1.0
  %v1214 = vadd.f32 %v1211, 1.0
  %v1215 = vrcp.pop %v1212
  %v1216 = vmul.f32 %v1212, %v1215
  %v1217 = vsub.f32 1.0, %v1216
  %v1218 = vmul.f32 %v1215, %v1217
  %v1219 = vadd.f32 %v1215, %v1218
  %vm1220 = vweird.f32 %v1212
  %vm1221 = vweird.f32 %v1215
  %vm1222 = vmor %vm1220, %vm1221
  %v1223 = vsel %vm1222, %v1215, %v1219
  %v1224 = vand.u32 2147483647, %v1212
  %vm1225 = vcmp.eq.f32.partialorder %v1224, 8.507059e+37
  %v1226 = vand.u32 %v1212, 2147483648
  %v1227 = vor.u32 1.1754944e-38, %v1226
  %v1228 = vsel %vm1225, %v1227, %v1223
  %v1229 = vmul.f32 1.0, %v1228
  %v1230 = vrcp.pop %v1213
  %v1231 = vmul.f32 %v1213, %v1230
  %v1232 = vsub.f32 1.0, %v1231
  %v1233 = vmul.f32 %v1230, %v1232
  %v1234 = vadd.f32 %v1230, %v1233
  %vm1235 = vweird.f32 %v1213
  %vm1236 = vweird.f32 %v1230
  %vm1237 = vmor %vm1235, %vm1236
  %v1238 = vsel %vm1237, %v1230, %v1234
  %v1239 = vand.u32 2147483647, %v1213
  %vm1240 = vcmp.eq.f32.partialorder %v1239, 8.507059e+37
  %v1241 = vand.u32 %v1213, 2147483648
  %v1242 = vor.u32 1.1754944e-38, %v1241
  %v1243 = vsel %vm1240, %v1242, %v1238
  %v1244 = vmul.f32 1.0, %v1243
  %v1245 = vrcp.pop %v1214
  %v1246 = vmul.f32 %v1214, %v1245
  %v1247 = vsub.f32 1.0, %v1246
  %v1248 = vmul.f32 %v1245, %v1247
  %v1249 = vadd.f32 %v1245, %v1248
  %vm1250 = vweird.f32 %v1214
  %vm1251 = vweird.f32 %v1245
  %vm1252 = vmor %vm1250, %vm1251
  %v1253 = vsel %vm1252, %v1245, %v1249
  %v1254 = vand.u32 2147483647, %v1214
  %vm1255 = vcmp.eq.f32.partialorder %v1254, 8.507059e+37
  %v1256 = vand.u32 %v1214, 2147483648
  %v1257 = vor.u32 1.1754944e-38, %v1256
  %v1258 = vsel %vm1255, %v1257, %v1253
  %v1259 = vmul.f32 1.0, %v1258
  %v1260 = vtanh.pop %v1202
  %v1261 = vmul.f32 %v1244, %v1045
  %v1262 = vmul.f32 %v1229, %v1260
  %v1263 = vadd.f32 %v1261, %v1262
  %v1264 = vtanh.pop %v1263
  %v1265 = vmul.f32 %v1259, %v1264
  %s1266 = scalar_lea.vmem [#allocation5], 24
  %1267 = vst [vmem:[%s1266] sm:$0xff] %v1265
  %s1268 = scalar_lea.vmem [#allocation4], 128
  %v1269 = vld [vmem:[%s1268] sm:$0xff]
  %v1270 = vld [vmem:[%s1268 + $0x8] sm:$0xff]
  %v1271 = vld [vmem:[%s1268 + $0x10] sm:$0xff]
  %v1272 = vld [vmem:[%s1268 + $0x18] sm:$0xff]
  %v1273 = vld [vmem:[%s4] sm:$0xff]
  %v1274 = vld [vmem:[%s4 + $0x8] sm:$0xff]
  %v1275 = vld [vmem:[%s4 + $0x10] sm:$0xff]
  %v1276 = vld [vmem:[%s4 + $0x18] sm:$0xff]
  %v1277 = vld [vmem:[%s4 + $0x20] sm:$0xff]
  %v1278 = vld [vmem:[%s4 + $0x28] sm:$0xff]
  %v1279 = vld [vmem:[%s4 + $0x30] sm:$0xff]
  %v1280 = vld [vmem:[%s4 + $0x38] sm:$0xff]
  %v1281 = vld [vmem:[%s4 + $0x40] sm:$0xff]
  %v1282 = vld [vmem:[%s4 + $0x48] sm:$0xff]
  %v1283 = vld [vmem:[%s4 + $0x50] sm:$0xff]
  %v1284 = vld [vmem:[%s4 + $0x58] sm:$0xff]
  %v1285 = vld [vmem:[%s4 + $0x60] sm:$0xff]
  %v1286 = vld [vmem:[%s4 + $0x68] sm:$0xff]
  %v1287 = vld [vmem:[%s4 + $0x70] sm:$0xff]
  %v1288 = vld [vmem:[%s4 + $0x78] sm:$0xff]
  %v1289 = vld [vmem:[%s4 + $0x80] sm:$0xff]
  %v1290 = vld [vmem:[%s4 + $0x88] sm:$0xff]
  %v1291 = vld [vmem:[%s4 + $0x90] sm:$0xff]
  %v1292 = vld [vmem:[%s4 + $0x98] sm:$0xff]
  %v1293 = vld [vmem:[%s4 + $0xa0] sm:$0xff]
  %v1294 = vld [vmem:[%s4 + $0xa8] sm:$0xff]
  %v1295 = vld [vmem:[%s4 + $0xb0] sm:$0xff]
  %v1296 = vld [vmem:[%s4 + $0xb8] sm:$0xff]
  %v1297 = vld [vmem:[%s4 + $0xc0] sm:$0xff]
  %v1298 = vld [vmem:[%s4 + $0xc8] sm:$0xff]
  %v1299 = vld [vmem:[%s4 + $0xd0] sm:$0xff]
  %v1300 = vld [vmem:[%s4 + $0xd8] sm:$0xff]
  %v1301 = vld [vmem:[%s4 + $0xe0] sm:$0xff]
  %v1302 = vld [vmem:[%s4 + $0xe8] sm:$0xff]
  %v1303 = vld [vmem:[%s4 + $0xf0] sm:$0xff]
  %v1304 = vld [vmem:[%s4 + $0xf8] sm:$0xff]
  %v1305 = vld [vmem:[%s4 + $0x100] sm:$0xff]
  %v1306 = vld [vmem:[%s4 + $0x108] sm:$0xff]
  %v1307 = vld [vmem:[%s4 + $0x110] sm:$0xff]
  %v1308 = vld [vmem:[%s4 + $0x118] sm:$0xff]
  %v1309 = vld [vmem:[%s4 + $0x120] sm:$0xff]
  %v1310 = vld [vmem:[%s4 + $0x128] sm:$0xff]
  %v1311 = vld [vmem:[%s4 + $0x130] sm:$0xff]
  %v1312 = vld [vmem:[%s4 + $0x138] sm:$0xff]
  %v1313 = vld [vmem:[%s4 + $0x140] sm:$0xff]
  %v1314 = vld [vmem:[%s4 + $0x148] sm:$0xff]
  %v1315 = vld [vmem:[%s4 + $0x150] sm:$0xff]
  %v1316 = vld [vmem:[%s4 + $0x158] sm:$0xff]
  %v1317 = vld [vmem:[%s4 + $0x160] sm:$0xff]
  %v1318 = vld [vmem:[%s4 + $0x168] sm:$0xff]
  %v1319 = vld [vmem:[%s4 + $0x170] sm:$0xff]
  %v1320 = vld [vmem:[%s4 + $0x178] sm:$0xff]
  %v1321 = vld [vmem:[%s4 + $0x180] sm:$0xff]
  %v1322 = vld [vmem:[%s4 + $0x188] sm:$0xff]
  %v1323 = vld [vmem:[%s4 + $0x190] sm:$0xff]
  %v1324 = vld [vmem:[%s4 + $0x198] sm:$0xff]
  %v1325 = vld [vmem:[%s4 + $0x1a0] sm:$0xff]
  %v1326 = vld [vmem:[%s4 + $0x1a8] sm:$0xff]
  %v1327 = vld [vmem:[%s4 + $0x1b0] sm:$0xff]
  %v1328 = vld [vmem:[%s4 + $0x1b8] sm:$0xff]
  %v1329 = vld [vmem:[%s4 + $0x1c0] sm:$0xff]
  %v1330 = vld [vmem:[%s4 + $0x1c8] sm:$0xff]
  %v1331 = vld [vmem:[%s4 + $0x1d0] sm:$0xff]
  %v1332 = vld [vmem:[%s4 + $0x1d8] sm:$0xff]
  %v1333 = vld [vmem:[%s4 + $0x1e0] sm:$0xff]
  %v1334 = vld [vmem:[%s4 + $0x1e8] sm:$0xff]
  %v1335 = vld [vmem:[%s4 + $0x1f0] sm:$0xff]
  %v1336 = vld [vmem:[%s4 + $0x1f8] sm:$0xff]
  %1337 = vmatpush.msra.mxu0 %v1333
  %1338 = vmatpush.msra.mxu0 %v1329
  %1339 = vmatpush.msra.mxu0 %v1325
  %1340 = vmatpush.msra.mxu0 %v1321
  %1341 = vmatpush.msra.mxu0 %v1317
  %1342 = vmatpush.msra.mxu0 %v1313
  %1343 = vmatpush.msra.mxu0 %v1309
  %1344 = vmatpush.msra.mxu0 %v1305
  %1345 = vmatpush.msra.mxu0 %v1301
  %1346 = vmatpush.msra.mxu0 %v1297
  %1347 = vmatpush.msra.mxu0 %v1293
  %1348 = vmatpush.msra.mxu0 %v1289
  %1349 = vmatpush.msra.mxu0 %v1285
  %1350 = vmatpush.msra.mxu0 %v1281
  %1351 = vmatpush.msra.mxu0 %v1277
  %1352 = vmatpush.msra.mxu0 %v1273
  %1353 = vmatmul.f32.gmra.mxu0 %v1265
  %v1354 = vpop.f32.mrf.mxu0
  %v1355 = vadd.f32 0.0, %v1354
  %1356 = vdwg.mxu0
  %1357 = vmatpush.msra.mxu0 %v1334
  %1358 = vmatpush.msra.mxu0 %v1330
  %1359 = vmatpush.msra.mxu0 %v1326
  %1360 = vmatpush.msra.mxu0 %v1322
  %1361 = vmatpush.msra.mxu0 %v1318
  %1362 = vmatpush.msra.mxu0 %v1314
  %1363 = vmatpush.msra.mxu0 %v1310
  %1364 = vmatpush.msra.mxu0 %v1306
  %1365 = vmatpush.msra.mxu0 %v1302
  %1366 = vmatpush.msra.mxu0 %v1298
  %1367 = vmatpush.msra.mxu0 %v1294
  %1368 = vmatpush.msra.mxu0 %v1290
  %1369 = vmatpush.msra.mxu0 %v1286
  %1370 = vmatpush.msra.mxu0 %v1282
  %1371 = vmatpush.msra.mxu0 %v1278
  %1372 = vmatpush.msra.mxu0 %v1274
  %1373 = vmatmul.f32.gmra.mxu0 %v1265
  %v1374 = vpop.f32.mrf.mxu0
  %v1375 = vadd.f32 0.0, %v1374
  %1376 = vdwg.mxu0
  %1377 = vmatpush.msra.mxu0 %v1335
  %1378 = vmatpush.msra.mxu0 %v1331
  %1379 = vmatpush.msra.mxu0 %v1327
  %1380 = vmatpush.msra.mxu0 %v1323
  %1381 = vmatpush.msra.mxu0 %v1319
  %1382 = vmatpush.msra.mxu0 %v1315
  %1383 = vmatpush.msra.mxu0 %v1311
  %1384 = vmatpush.msra.mxu0 %v1307
  %1385 = vmatpush.msra.mxu0 %v1303
  %1386 = vmatpush.msra.mxu0 %v1299
  %1387 = vmatpush.msra.mxu0 %v1295
  %1388 = vmatpush.msra.mxu0 %v1291
  %1389 = vmatpush.msra.mxu0 %v1287
  %1390 = vmatpush.msra.mxu0 %v1283
  %1391 = vmatpush.msra.mxu0 %v1279
  %1392 = vmatpush.msra.mxu0 %v1275
  %1393 = vmatmul.f32.gmra.mxu0 %v1265
  %v1394 = vpop.f32.mrf.mxu0
  %v1395 = vadd.f32 0.0, %v1394
  %1396 = vdwg.mxu0
  %1397 = vmatpush.msra.mxu0 %v1336
  %1398 = vmatpush.msra.mxu0 %v1332
  %1399 = vmatpush.msra.mxu0 %v1328
  %1400 = vmatpush.msra.mxu0 %v1324
  %1401 = vmatpush.msra.mxu0 %v1320
  %1402 = vmatpush.msra.mxu0 %v1316
  %1403 = vmatpush.msra.mxu0 %v1312
  %1404 = vmatpush.msra.mxu0 %v1308
  %1405 = vmatpush.msra.mxu0 %v1304
  %1406 = vmatpush.msra.mxu0 %v1300
  %1407 = vmatpush.msra.mxu0 %v1296
  %1408 = vmatpush.msra.mxu0 %v1292
  %1409 = vmatpush.msra.mxu0 %v1288
  %1410 = vmatpush.msra.mxu0 %v1284
  %1411 = vmatpush.msra.mxu0 %v1280
  %1412 = vmatpush.msra.mxu0 %v1276
  %1413 = vmatmul.f32.gmra.mxu0 %v1265
  %v1414 = vpop.f32.mrf.mxu0
  %v1415 = vadd.f32 0.0, %v1414
  %1416 = vdwg.mxu0
  %v1417 = vadd.f32 %v1269, %v1355
  %v1418 = vadd.f32 %v1270, %v1375
  %v1419 = vadd.f32 %v1271, %v1395
  %v1420 = vadd.f32 %v1272, %v1415
  %v1421 = vxor.u32 %v1417, 2147483648
  %v1422 = vxor.u32 %v1418, 2147483648
  %v1423 = vxor.u32 %v1419, 2147483648
  %v1424 = vmul.f32 %v1421, 1.442695
  %v1425 = vpow.pop %v1424
  %v1426 = vmul.f32 %v1422, 1.442695
  %v1427 = vpow.pop %v1426
  %v1428 = vmul.f32 %v1423, 1.442695
  %v1429 = vpow.pop %v1428
  %v1430 = vadd.f32 %v1425, 1.0
  %v1431 = vadd.f32 %v1427, 1.0
  %v1432 = vadd.f32 %v1429, 1.0
  %v1433 = vrcp.pop %v1430
  %v1434 = vmul.f32 %v1430, %v1433
  %v1435 = vsub.f32 1.0, %v1434
  %v1436 = vmul.f32 %v1433, %v1435
  %v1437 = vadd.f32 %v1433, %v1436
  %vm1438 = vweird.f32 %v1430
  %vm1439 = vweird.f32 %v1433
  %vm1440 = vmor %vm1438, %vm1439
  %v1441 = vsel %vm1440, %v1433, %v1437
  %v1442 = vand.u32 2147483647, %v1430
  %vm1443 = vcmp.eq.f32.partialorder %v1442, 8.507059e+37
  %v1444 = vand.u32 %v1430, 2147483648
  %v1445 = vor.u32 1.1754944e-38, %v1444
  %v1446 = vsel %vm1443, %v1445, %v1441
  %v1447 = vmul.f32 1.0, %v1446
  %v1448 = vrcp.pop %v1431
  %v1449 = vmul.f32 %v1431, %v1448
  %v1450 = vsub.f32 1.0, %v1449
  %v1451 = vmul.f32 %v1448, %v1450
  %v1452 = vadd.f32 %v1448, %v1451
  %vm1453 = vweird.f32 %v1431
  %vm1454 = vweird.f32 %v1448
  %vm1455 = vmor %vm1453, %vm1454
  %v1456 = vsel %vm1455, %v1448, %v1452
  %v1457 = vand.u32 2147483647, %v1431
  %vm1458 = vcmp.eq.f32.partialorder %v1457, 8.507059e+37
  %v1459 = vand.u32 %v1431, 2147483648
  %v1460 = vor.u32 1.1754944e-38, %v1459
  %v1461 = vsel %vm1458, %v1460, %v1456
  %v1462 = vmul.f32 1.0, %v1461
  %v1463 = vrcp.pop %v1432
  %v1464 = vmul.f32 %v1432, %v1463
  %v1465 = vsub.f32 1.0, %v1464
  %v1466 = vmul.f32 %v1463, %v1465
  %v1467 = vadd.f32 %v1463, %v1466
  %vm1468 = vweird.f32 %v1432
  %vm1469 = vweird.f32 %v1463
  %vm1470 = vmor %vm1468, %vm1469
  %v1471 = vsel %vm1470, %v1463, %v1467
  %v1472 = vand.u32 2147483647, %v1432
  %vm1473 = vcmp.eq.f32.partialorder %v1472, 8.507059e+37
  %v1474 = vand.u32 %v1432, 2147483648
  %v1475 = vor.u32 1.1754944e-38, %v1474
  %v1476 = vsel %vm1473, %v1475, %v1471
  %v1477 = vmul.f32 1.0, %v1476
  %v1478 = vtanh.pop %v1420
  %v1479 = vmul.f32 %v1462, %v1263
  %v1480 = vmul.f32 %v1447, %v1478
  %v1481 = vadd.f32 %v1479, %v1480
  %v1482 = vtanh.pop %v1481
  %v1483 = vmul.f32 %v1477, %v1482
  %s1484 = scalar_lea.vmem [#allocation5], 32
  %1485 = vst [vmem:[%s1484] sm:$0xff] %v1483
  %s1486 = scalar_lea.vmem [#allocation4], 160
  %v1487 = vld [vmem:[%s1486] sm:$0xff]
  %v1488 = vld [vmem:[%s1486 + $0x8] sm:$0xff]
  %v1489 = vld [vmem:[%s1486 + $0x10] sm:$0xff]
  %v1490 = vld [vmem:[%s1486 + $0x18] sm:$0xff]
  %v1491 = vld [vmem:[%s4] sm:$0xff]
  %v1492 = vld [vmem:[%s4 + $0x8] sm:$0xff]
  %v1493 = vld [vmem:[%s4 + $0x10] sm:$0xff]
  %v1494 = vld [vmem:[%s4 + $0x18] sm:$0xff]
  %v1495 = vld [vmem:[%s4 + $0x20] sm:$0xff]
  %v1496 = vld [vmem:[%s4 + $0x28] sm:$0xff]
  %v1497 = vld [vmem:[%s4 + $0x30] sm:$0xff]
  %v1498 = vld [vmem:[%s4 + $0x38] sm:$0xff]
  %v1499 = vld [vmem:[%s4 + $0x40] sm:$0xff]
  %v1500 = vld [vmem:[%s4 + $0x48] sm:$0xff]
  %v1501 = vld [vmem:[%s4 + $0x50] sm:$0xff]
  %v1502 = vld [vmem:[%s4 + $0x58] sm:$0xff]
  %v1503 = vld [vmem:[%s4 + $0x60] sm:$0xff]
  %v1504 = vld [vmem:[%s4 + $0x68] sm:$0xff]
  %v1505 = vld [vmem:[%s4 + $0x70] sm:$0xff]
  %v1506 = vld [vmem:[%s4 + $0x78] sm:$0xff]
  %v1507 = vld [vmem:[%s4 + $0x80] sm:$0xff]
  %v1508 = vld [vmem:[%s4 + $0x88] sm:$0xff]
  %v1509 = vld [vmem:[%s4 + $0x90] sm:$0xff]
  %v1510 = vld [vmem:[%s4 + $0x98] sm:$0xff]
  %v1511 = vld [vmem:[%s4 + $0xa0] sm:$0xff]
  %v1512 = vld [vmem:[%s4 + $0xa8] sm:$0xff]
  %v1513 = vld [vmem:[%s4 + $0xb0] sm:$0xff]
  %v1514 = vld [vmem:[%s4 + $0xb8] sm:$0xff]
  %v1515 = vld [vmem:[%s4 + $0xc0] sm:$0xff]
  %v1516 = vld [vmem:[%s4 + $0xc8] sm:$0xff]
  %v1517 = vld [vmem:[%s4 + $0xd0] sm:$0xff]
  %v1518 = vld [vmem:[%s4 + $0xd8] sm:$0xff]
  %v1519 = vld [vmem:[%s4 + $0xe0] sm:$0xff]
  %v1520 = vld [vmem:[%s4 + $0xe8] sm:$0xff]
  %v1521 = vld [vmem:[%s4 + $0xf0] sm:$0xff]
  %v1522 = vld [vmem:[%s4 + $0xf8] sm:$0xff]
  %v1523 = vld [vmem:[%s4 + $0x100] sm:$0xff]
  %v1524 = vld [vmem:[%s4 + $0x108] sm:$0xff]
  %v1525 = vld [vmem:[%s4 + $0x110] sm:$0xff]
  %v1526 = vld [vmem:[%s4 + $0x118] sm:$0xff]
  %v1527 = vld [vmem:[%s4 + $0x120] sm:$0xff]
  %v1528 = vld [vmem:[%s4 + $0x128] sm:$0xff]
  %v1529 = vld [vmem:[%s4 + $0x130] sm:$0xff]
  %v1530 = vld [vmem:[%s4 + $0x138] sm:$0xff]
  %v1531 = vld [vmem:[%s4 + $0x140] sm:$0xff]
  %v1532 = vld [vmem:[%s4 + $0x148] sm:$0xff]
  %v1533 = vld [vmem:[%s4 + $0x150] sm:$0xff]
  %v1534 = vld [vmem:[%s4 + $0x158] sm:$0xff]
  %v1535 = vld [vmem:[%s4 + $0x160] sm:$0xff]
  %v1536 = vld [vmem:[%s4 + $0x168] sm:$0xff]
  %v1537 = vld [vmem:[%s4 + $0x170] sm:$0xff]
  %v1538 = vld [vmem:[%s4 + $0x178] sm:$0xff]
  %v1539 = vld [vmem:[%s4 + $0x180] sm:$0xff]
  %v1540 = vld [vmem:[%s4 + $0x188] sm:$0xff]
  %v1541 = vld [vmem:[%s4 + $0x190] sm:$0xff]
  %v1542 = vld [vmem:[%s4 + $0x198] sm:$0xff]
  %v1543 = vld [vmem:[%s4 + $0x1a0] sm:$0xff]
  %v1544 = vld [vmem:[%s4 + $0x1a8] sm:$0xff]
  %v1545 = vld [vmem:[%s4 + $0x1b0] sm:$0xff]
  %v1546 = vld [vmem:[%s4 + $0x1b8] sm:$0xff]
  %v1547 = vld [vmem:[%s4 + $0x1c0] sm:$0xff]
  %v1548 = vld [vmem:[%s4 + $0x1c8] sm:$0xff]
  %v1549 = vld [vmem:[%s4 + $0x1d0] sm:$0xff]
  %v1550 = vld [vmem:[%s4 + $0x1d8] sm:$0xff]
  %v1551 = vld [vmem:[%s4 + $0x1e0] sm:$0xff]
  %v1552 = vld [vmem:[%s4 + $0x1e8] sm:$0xff]
  %v1553 = vld [vmem:[%s4 + $0x1f0] sm:$0xff]
  %v1554 = vld [vmem:[%s4 + $0x1f8] sm:$0xff]
  %1555 = vmatpush.msra.mxu0 %v1551
  %1556 = vmatpush.msra.mxu0 %v1547
  %1557 = vmatpush.msra.mxu0 %v1543
  %1558 = vmatpush.msra.mxu0 %v1539
  %1559 = vmatpush.msra.mxu0 %v1535
  %1560 = vmatpush.msra.mxu0 %v1531
  %1561 = vmatpush.msra.mxu0 %v1527
  %1562 = vmatpush.msra.mxu0 %v1523
  %1563 = vmatpush.msra.mxu0 %v1519
  %1564 = vmatpush.msra.mxu0 %v1515
  %1565 = vmatpush.msra.mxu0 %v1511
  %1566 = vmatpush.msra.mxu0 %v1507
  %1567 = vmatpush.msra.mxu0 %v1503
  %1568 = vmatpush.msra.mxu0 %v1499
  %1569 = vmatpush.msra.mxu0 %v1495
  %1570 = vmatpush.msra.mxu0 %v1491
  %1571 = vmatmul.f32.gmra.mxu0 %v1483
  %v1572 = vpop.f32.mrf.mxu0
  %v1573 = vadd.f32 0.0, %v1572
  %1574 = vdwg.mxu0
  %1575 = vmatpush.msra.mxu0 %v1552
  %1576 = vmatpush.msra.mxu0 %v1548
  %1577 = vmatpush.msra.mxu0 %v1544
  %1578 = vmatpush.msra.mxu0 %v1540
  %1579 = vmatpush.msra.mxu0 %v1536
  %1580 = vmatpush.msra.mxu0 %v1532
  %1581 = vmatpush.msra.mxu0 %v1528
  %1582 = vmatpush.msra.mxu0 %v1524
  %1583 = vmatpush.msra.mxu0 %v1520
  %1584 = vmatpush.msra.mxu0 %v1516
  %1585 = vmatpush.msra.mxu0 %v1512
  %1586 = vmatpush.msra.mxu0 %v1508
  %1587 = vmatpush.msra.mxu0 %v1504
  %1588 = vmatpush.msra.mxu0 %v1500
  %1589 = vmatpush.msra.mxu0 %v1496
  %1590 = vmatpush.msra.mxu0 %v1492
  %1591 = vmatmul.f32.gmra.mxu0 %v1483
  %v1592 = vpop.f32.mrf.mxu0
  %v1593 = vadd.f32 0.0, %v1592
  %1594 = vdwg.mxu0
  %1595 = vmatpush.msra.mxu0 %v1553
  %1596 = vmatpush.msra.mxu0 %v1549
  %1597 = vmatpush.msra.mxu0 %v1545
  %1598 = vmatpush.msra.mxu0 %v1541
  %1599 = vmatpush.msra.mxu0 %v1537
  %1600 = vmatpush.msra.mxu0 %v1533
  %1601 = vmatpush.msra.mxu0 %v1529
  %1602 = vmatpush.msra.mxu0 %v1525
  %1603 = vmatpush.msra.mxu0 %v1521
  %1604 = vmatpush.msra.mxu0 %v1517
  %1605 = vmatpush.msra.mxu0 %v1513
  %1606 = vmatpush.msra.mxu0 %v1509
  %1607 = vmatpush.msra.mxu0 %v1505
  %1608 = vmatpush.msra.mxu0 %v1501
  %1609 = vmatpush.msra.mxu0 %v1497
  %1610 = vmatpush.msra.mxu0 %v1493
  %1611 = vmatmul.f32.gmra.mxu0 %v1483
  %v1612 = vpop.f32.mrf.mxu0
  %v1613 = vadd.f32 0.0, %v1612
  %1614 = vdwg.mxu0
  %1615 = vmatpush.msra.mxu0 %v1554
  %1616 = vmatpush.msra.mxu0 %v1550
  %1617 = vmatpush.msra.mxu0 %v1546
  %1618 = vmatpush.msra.mxu0 %v1542
  %1619 = vmatpush.msra.mxu0 %v1538
  %1620 = vmatpush.msra.mxu0 %v1534
  %1621 = vmatpush.msra.mxu0 %v1530
  %1622 = vmatpush.msra.mxu0 %v1526
  %1623 = vmatpush.msra.mxu0 %v1522
  %1624 = vmatpush.msra.mxu0 %v1518
  %1625 = vmatpush.msra.mxu0 %v1514
  %1626 = vmatpush.msra.mxu0 %v1510
  %1627 = vmatpush.msra.mxu0 %v1506
  %1628 = vmatpush.msra.mxu0 %v1502
  %1629 = vmatpush.msra.mxu0 %v1498
  %1630 = vmatpush.msra.mxu0 %v1494
  %1631 = vmatmul.f32.gmra.mxu0 %v1483
  %v1632 = vpop.f32.mrf.mxu0
  %v1633 = vadd.f32 0.0, %v1632
  %1634 = vdwg.mxu0
  %v1635 = vadd.f32 %v1487, %v1573
  %v1636 = vadd.f32 %v1488, %v1593
  %v1637 = vadd.f32 %v1489, %v1613
  %v1638 = vadd.f32 %v1490, %v1633
  %v1639 = vxor.u32 %v1635, 2147483648
  %v1640 = vxor.u32 %v1636, 2147483648
  %v1641 = vxor.u32 %v1637, 2147483648
  %v1642 = vmul.f32 %v1639, 1.442695
  %v1643 = vpow.pop %v1642
  %v1644 = vmul.f32 %v1640, 1.442695
  %v1645 = vpow.pop %v1644
  %v1646 = vmul.f32 %v1641, 1.442695
  %v1647 = vpow.pop %v1646
  %v1648 = vadd.f32 %v1643, 1.0
  %v1649 = vadd.f32 %v1645, 1.0
  %v1650 = vadd.f32 %v1647, 1.0
  %v1651 = vrcp.pop %v1648
  %v1652 = vmul.f32 %v1648, %v1651
  %v1653 = vsub.f32 1.0, %v1652
  %v1654 = vmul.f32 %v1651, %v1653
  %v1655 = vadd.f32 %v1651, %v1654
  %vm1656 = vweird.f32 %v1648
  %vm1657 = vweird.f32 %v1651
  %vm1658 = vmor %vm1656, %vm1657
  %v1659 = vsel %vm1658, %v1651, %v1655
  %v1660 = vand.u32 2147483647, %v1648
  %vm1661 = vcmp.eq.f32.partialorder %v1660, 8.507059e+37
  %v1662 = vand.u32 %v1648, 2147483648
  %v1663 = vor.u32 1.1754944e-38, %v1662
  %v1664 = vsel %vm1661, %v1663, %v1659
  %v1665 = vmul.f32 1.0, %v1664
  %v1666 = vrcp.pop %v1649
  %v1667 = vmul.f32 %v1649, %v1666
  %v1668 = vsub.f32 1.0, %v1667
  %v1669 = vmul.f32 %v1666, %v1668
  %v1670 = vadd.f32 %v1666, %v1669
  %vm1671 = vweird.f32 %v1649
  %vm1672 = vweird.f32 %v1666
  %vm1673 = vmor %vm1671, %vm1672
  %v1674 = vsel %vm1673, %v1666, %v1670
  %v1675 = vand.u32 2147483647, %v1649
  %vm1676 = vcmp.eq.f32.partialorder %v1675, 8.507059e+37
  %v1677 = vand.u32 %v1649, 2147483648
  %v1678 = vor.u32 1.1754944e-38, %v1677
  %v1679 = vsel %vm1676, %v1678, %v1674
  %v1680 = vmul.f32 1.0, %v1679
  %v1681 = vrcp.pop %v1650
  %v1682 = vmul.f32 %v1650, %v1681
  %v1683 = vsub.f32 1.0, %v1682
  %v1684 = vmul.f32 %v1681, %v1683
  %v1685 = vadd.f32 %v1681, %v1684
  %vm1686 = vweird.f32 %v1650
  %vm1687 = vweird.f32 %v1681
  %vm1688 = vmor %vm1686, %vm1687
  %v1689 = vsel %vm1688, %v1681, %v1685
  %v1690 = vand.u32 2147483647, %v1650
  %vm1691 = vcmp.eq.f32.partialorder %v1690, 8.507059e+37
  %v1692 = vand.u32 %v1650, 2147483648
  %v1693 = vor.u32 1.1754944e-38, %v1692
  %v1694 = vsel %vm1691, %v1693, %v1689
  %v1695 = vmul.f32 1.0, %v1694
  %v1696 = vtanh.pop %v1638
  %v1697 = vmul.f32 %v1680, %v1481
  %v1698 = vmul.f32 %v1665, %v1696
  %v1699 = vadd.f32 %v1697, %v1698
  %v1700 = vtanh.pop %v1699
  %v1701 = vmul.f32 %v1695, %v1700
  %s1702 = scalar_lea.vmem [#allocation5], 40
  %1703 = vst [vmem:[%s1702] sm:$0xff] %v1701
  %s1704 = scalar_lea.vmem [#allocation4], 192
  %v1705 = vld [vmem:[%s1704] sm:$0xff]
  %v1706 = vld [vmem:[%s1704 + $0x8] sm:$0xff]
  %v1707 = vld [vmem:[%s1704 + $0x10] sm:$0xff]
  %v1708 = vld [vmem:[%s1704 + $0x18] sm:$0xff]
  %v1709 = vld [vmem:[%s4] sm:$0xff]
  %v1710 = vld [vmem:[%s4 + $0x8] sm:$0xff]
  %v1711 = vld [vmem:[%s4 + $0x10] sm:$0xff]
  %v1712 = vld [vmem:[%s4 + $0x18] sm:$0xff]
  %v1713 = vld [vmem:[%s4 + $0x20] sm:$0xff]
  %v1714 = vld [vmem:[%s4 + $0x28] sm:$0xff]
  %v1715 = vld [vmem:[%s4 + $0x30] sm:$0xff]
  %v1716 = vld [vmem:[%s4 + $0x38] sm:$0xff]
  %v1717 = vld [vmem:[%s4 + $0x40] sm:$0xff]
  %v1718 = vld [vmem:[%s4 + $0x48] sm:$0xff]
  %v1719 = vld [vmem:[%s4 + $0x50] sm:$0xff]
  %v1720 = vld [vmem:[%s4 + $0x58] sm:$0xff]
  %v1721 = vld [vmem:[%s4 + $0x60] sm:$0xff]
  %v1722 = vld [vmem:[%s4 + $0x68] sm:$0xff]
  %v1723 = vld [vmem:[%s4 + $0x70] sm:$0xff]
  %v1724 = vld [vmem:[%s4 + $0x78] sm:$0xff]
  %v1725 = vld [vmem:[%s4 + $0x80] sm:$0xff]
  %v1726 = vld [vmem:[%s4 + $0x88] sm:$0xff]
  %v1727 = vld [vmem:[%s4 + $0x90] sm:$0xff]
  %v1728 = vld [vmem:[%s4 + $0x98] sm:$0xff]
  %v1729 = vld [vmem:[%s4 + $0xa0] sm:$0xff]
  %v1730 = vld [vmem:[%s4 + $0xa8] sm:$0xff]
  %v1731 = vld [vmem:[%s4 + $0xb0] sm:$0xff]
  %v1732 = vld [vmem:[%s4 + $0xb8] sm:$0xff]
  %v1733 = vld [vmem:[%s4 + $0xc0] sm:$0xff]
  %v1734 = vld [vmem:[%s4 + $0xc8] sm:$0xff]
  %v1735 = vld [vmem:[%s4 + $0xd0] sm:$0xff]
  %v1736 = vld [vmem:[%s4 + $0xd8] sm:$0xff]
  %v1737 = vld [vmem:[%s4 + $0xe0] sm:$0xff]
  %v1738 = vld [vmem:[%s4 + $0xe8] sm:$0xff]
  %v1739 = vld [vmem:[%s4 + $0xf0] sm:$0xff]
  %v1740 = vld [vmem:[%s4 + $0xf8] sm:$0xff]
  %v1741 = vld [vmem:[%s4 + $0x100] sm:$0xff]
  %v1742 = vld [vmem:[%s4 + $0x108] sm:$0xff]
  %v1743 = vld [vmem:[%s4 + $0x110] sm:$0xff]
  %v1744 = vld [vmem:[%s4 + $0x118] sm:$0xff]
  %v1745 = vld [vmem:[%s4 + $0x120] sm:$0xff]
  %v1746 = vld [vmem:[%s4 + $0x128] sm:$0xff]
  %v1747 = vld [vmem:[%s4 + $0x130] sm:$0xff]
  %v1748 = vld [vmem:[%s4 + $0x138] sm:$0xff]
  %v1749 = vld [vmem:[%s4 + $0x140] sm:$0xff]
  %v1750 = vld [vmem:[%s4 + $0x148] sm:$0xff]
  %v1751 = vld [vmem:[%s4 + $0x150] sm:$0xff]
  %v1752 = vld [vmem:[%s4 + $0x158] sm:$0xff]
  %v1753 = vld [vmem:[%s4 + $0x160] sm:$0xff]
  %v1754 = vld [vmem:[%s4 + $0x168] sm:$0xff]
  %v1755 = vld [vmem:[%s4 + $0x170] sm:$0xff]
  %v1756 = vld [vmem:[%s4 + $0x178] sm:$0xff]
  %v1757 = vld [vmem:[%s4 + $0x180] sm:$0xff]
  %v1758 = vld [vmem:[%s4 + $0x188] sm:$0xff]
  %v1759 = vld [vmem:[%s4 + $0x190] sm:$0xff]
  %v1760 = vld [vmem:[%s4 + $0x198] sm:$0xff]
  %v1761 = vld [vmem:[%s4 + $0x1a0] sm:$0xff]
  %v1762 = vld [vmem:[%s4 + $0x1a8] sm:$0xff]
  %v1763 = vld [vmem:[%s4 + $0x1b0] sm:$0xff]
  %v1764 = vld [vmem:[%s4 + $0x1b8] sm:$0xff]
  %v1765 = vld [vmem:[%s4 + $0x1c0] sm:$0xff]
  %v1766 = vld [vmem:[%s4 + $0x1c8] sm:$0xff]
  %v1767 = vld [vmem:[%s4 + $0x1d0] sm:$0xff]
  %v1768 = vld [vmem:[%s4 + $0x1d8] sm:$0xff]
  %v1769 = vld [vmem:[%s4 + $0x1e0] sm:$0xff]
  %v1770 = vld [vmem:[%s4 + $0x1e8] sm:$0xff]
  %v1771 = vld [vmem:[%s4 + $0x1f0] sm:$0xff]
  %v1772 = vld [vmem:[%s4 + $0x1f8] sm:$0xff]
  %1773 = vmatpush.msra.mxu0 %v1769
  %1774 = vmatpush.msra.mxu0 %v1765
  %1775 = vmatpush.msra.mxu0 %v1761
  %1776 = vmatpush.msra.mxu0 %v1757
  %1777 = vmatpush.msra.mxu0 %v1753
  %1778 = vmatpush.msra.mxu0 %v1749
  %1779 = vmatpush.msra.mxu0 %v1745
  %1780 = vmatpush.msra.mxu0 %v1741
  %1781 = vmatpush.msra.mxu0 %v1737
  %1782 = vmatpush.msra.mxu0 %v1733
  %1783 = vmatpush.msra.mxu0 %v1729
  %1784 = vmatpush.msra.mxu0 %v1725
  %1785 = vmatpush.msra.mxu0 %v1721
  %1786 = vmatpush.msra.mxu0 %v1717
  %1787 = vmatpush.msra.mxu0 %v1713
  %1788 = vmatpush.msra.mxu0 %v1709
  %1789 = vmatmul.f32.gmra.mxu0 %v1701
  %v1790 = vpop.f32.mrf.mxu0
  %v1791 = vadd.f32 0.0, %v1790
  %1792 = vdwg.mxu0
  %1793 = vmatpush.msra.mxu0 %v1770
  %1794 = vmatpush.msra.mxu0 %v1766
  %1795 = vmatpush.msra.mxu0 %v1762
  %1796 = vmatpush.msra.mxu0 %v1758
  %1797 = vmatpush.msra.mxu0 %v1754
  %1798 = vmatpush.msra.mxu0 %v1750
  %1799 = vmatpush.msra.mxu0 %v1746
  %1800 = vmatpush.msra.mxu0 %v1742
  %1801 = vmatpush.msra.mxu0 %v1738
  %1802 = vmatpush.msra.mxu0 %v1734
  %1803 = vmatpush.msra.mxu0 %v1730
  %1804 = vmatpush.msra.mxu0 %v1726
  %1805 = vmatpush.msra.mxu0 %v1722
  %1806 = vmatpush.msra.mxu0 %v1718
  %1807 = vmatpush.msra.mxu0 %v1714
  %1808 = vmatpush.msra.mxu0 %v1710
  %1809 = vmatmul.f32.gmra.mxu0 %v1701
  %v1810 = vpop.f32.mrf.mxu0
  %v1811 = vadd.f32 0.0, %v1810
  %1812 = vdwg.mxu0
  %1813 = vmatpush.msra.mxu0 %v1771
  %1814 = vmatpush.msra.mxu0 %v1767
  %1815 = vmatpush.msra.mxu0 %v1763
  %1816 = vmatpush.msra.mxu0 %v1759
  %1817 = vmatpush.msra.mxu0 %v1755
  %1818 = vmatpush.msra.mxu0 %v1751
  %1819 = vmatpush.msra.mxu0 %v1747
  %1820 = vmatpush.msra.mxu0 %v1743
  %1821 = vmatpush.msra.mxu0 %v1739
  %1822 = vmatpush.msra.mxu0 %v1735
  %1823 = vmatpush.msra.mxu0 %v1731
  %1824 = vmatpush.msra.mxu0 %v1727
  %1825 = vmatpush.msra.mxu0 %v1723
  %1826 = vmatpush.msra.mxu0 %v1719
  %1827 = vmatpush.msra.mxu0 %v1715
  %1828 = vmatpush.msra.mxu0 %v1711
  %1829 = vmatmul.f32.gmra.mxu0 %v1701
  %v1830 = vpop.f32.mrf.mxu0
  %v1831 = vadd.f32 0.0, %v1830
  %1832 = vdwg.mxu0
  %1833 = vmatpush.msra.mxu0 %v1772
  %1834 = vmatpush.msra.mxu0 %v1768
  %1835 = vmatpush.msra.mxu0 %v1764
  %1836 = vmatpush.msra.mxu0 %v1760
  %1837 = vmatpush.msra.mxu0 %v1756
  %1838 = vmatpush.msra.mxu0 %v1752
  %1839 = vmatpush.msra.mxu0 %v1748
  %1840 = vmatpush.msra.mxu0 %v1744
  %1841 = vmatpush.msra.mxu0 %v1740
  %1842 = vmatpush.msra.mxu0 %v1736
  %1843 = vmatpush.msra.mxu0 %v1732
  %1844 = vmatpush.msra.mxu0 %v1728
  %1845 = vmatpush.msra.mxu0 %v1724
  %1846 = vmatpush.msra.mxu0 %v1720
  %1847 = vmatpush.msra.mxu0 %v1716
  %1848 = vmatpush.msra.mxu0 %v1712
  %1849 = vmatmul.f32.gmra.mxu0 %v1701
  %v1850 = vpop.f32.mrf.mxu0
  %v1851 = vadd.f32 0.0, %v1850
  %1852 = vdwg.mxu0
  %v1853 = vadd.f32 %v1705, %v1791
  %v1854 = vadd.f32 %v1706, %v1811
  %v1855 = vadd.f32 %v1707, %v1831
  %v1856 = vadd.f32 %v1708, %v1851
  %v1857 = vxor.u32 %v1853, 2147483648
  %v1858 = vxor.u32 %v1854, 2147483648
  %v1859 = vxor.u32 %v1855, 2147483648
  %v1860 = vmul.f32 %v1857, 1.442695
  %v1861 = vpow.pop %v1860
  %v1862 = vmul.f32 %v1858, 1.442695
  %v1863 = vpow.pop %v1862
  %v1864 = vmul.f32 %v1859, 1.442695
  %v1865 = vpow.pop %v1864
  %v1866 = vadd.f32 %v1861, 1.0
  %v1867 = vadd.f32 %v1863, 1.0
  %v1868 = vadd.f32 %v1865, 1.0
  %v1869 = vrcp.pop %v1866
  %v1870 = vmul.f32 %v1866, %v1869
  %v1871 = vsub.f32 1.0, %v1870
  %v1872 = vmul.f32 %v1869, %v1871
  %v1873 = vadd.f32 %v1869, %v1872
  %vm1874 = vweird.f32 %v1866
  %vm1875 = vweird.f32 %v1869
  %vm1876 = vmor %vm1874, %vm1875
  %v1877 = vsel %vm1876, %v1869, %v1873
  %v1878 = vand.u32 2147483647, %v1866
  %vm1879 = vcmp.eq.f32.partialorder %v1878, 8.507059e+37
  %v1880 = vand.u32 %v1866, 2147483648
  %v1881 = vor.u32 1.1754944e-38, %v1880
  %v1882 = vsel %vm1879, %v1881, %v1877
  %v1883 = vmul.f32 1.0, %v1882
  %v1884 = vrcp.pop %v1867
  %v1885 = vmul.f32 %v1867, %v1884
  %v1886 = vsub.f32 1.0, %v1885
  %v1887 = vmul.f32 %v1884, %v1886
  %v1888 = vadd.f32 %v1884, %v1887
  %vm1889 = vweird.f32 %v1867
  %vm1890 = vweird.f32 %v1884
  %vm1891 = vmor %vm1889, %vm1890
  %v1892 = vsel %vm1891, %v1884, %v1888
  %v1893 = vand.u32 2147483647, %v1867
  %vm1894 = vcmp.eq.f32.partialorder %v1893, 8.507059e+37
  %v1895 = vand.u32 %v1867, 2147483648
  %v1896 = vor.u32 1.1754944e-38, %v1895
  %v1897 = vsel %vm1894, %v1896, %v1892
  %v1898 = vmul.f32 1.0, %v1897
  %v1899 = vrcp.pop %v1868
  %v1900 = vmul.f32 %v1868, %v1899
  %v1901 = vsub.f32 1.0, %v1900
  %v1902 = vmul.f32 %v1899, %v1901
  %v1903 = vadd.f32 %v1899, %v1902
  %vm1904 = vweird.f32 %v1868
  %vm1905 = vweird.f32 %v1899
  %vm1906 = vmor %vm1904, %vm1905
  %v1907 = vsel %vm1906, %v1899, %v1903
  %v1908 = vand.u32 2147483647, %v1868
  %vm1909 = vcmp.eq.f32.partialorder %v1908, 8.507059e+37
  %v1910 = vand.u32 %v1868, 2147483648
  %v1911 = vor.u32 1.1754944e-38, %v1910
  %v1912 = vsel %vm1909, %v1911, %v1907
  %v1913 = vmul.f32 1.0, %v1912
  %v1914 = vtanh.pop %v1856
  %v1915 = vmul.f32 %v1898, %v1699
  %v1916 = vmul.f32 %v1883, %v1914
  %v1917 = vadd.f32 %v1915, %v1916
  %v1918 = vtanh.pop %v1917
  %v1919 = vmul.f32 %v1913, %v1918
  %s1920 = scalar_lea.vmem [#allocation5], 48
  %1921 = vst [vmem:[%s1920] sm:$0xff] %v1919
  %s1922 = scalar_lea.vmem [#allocation4], 224
  %v1923 = vld [vmem:[%s1922] sm:$0xff]
  %v1924 = vld [vmem:[%s1922 + $0x8] sm:$0xff]
  %v1925 = vld [vmem:[%s1922 + $0x10] sm:$0xff]
  %v1926 = vld [vmem:[%s1922 + $0x18] sm:$0xff]
  %v1927 = vld [vmem:[%s4] sm:$0xff]
  %v1928 = vld [vmem:[%s4 + $0x8] sm:$0xff]
  %v1929 = vld [vmem:[%s4 + $0x10] sm:$0xff]
  %v1930 = vld [vmem:[%s4 + $0x18] sm:$0xff]
  %v1931 = vld [vmem:[%s4 + $0x20] sm:$0xff]
  %v1932 = vld [vmem:[%s4 + $0x28] sm:$0xff]
  %v1933 = vld [vmem:[%s4 + $0x30] sm:$0xff]
  %v1934 = vld [vmem:[%s4 + $0x38] sm:$0xff]
  %v1935 = vld [vmem:[%s4 + $0x40] sm:$0xff]
  %v1936 = vld [vmem:[%s4 + $0x48] sm:$0xff]
  %v1937 = vld [vmem:[%s4 + $0x50] sm:$0xff]
  %v1938 = vld [vmem:[%s4 + $0x58] sm:$0xff]
  %v1939 = vld [vmem:[%s4 + $0x60] sm:$0xff]
  %v1940 = vld [vmem:[%s4 + $0x68] sm:$0xff]
  %v1941 = vld [vmem:[%s4 + $0x70] sm:$0xff]
  %v1942 = vld [vmem:[%s4 + $0x78] sm:$0xff]
  %v1943 = vld [vmem:[%s4 + $0x80] sm:$0xff]
  %v1944 = vld [vmem:[%s4 + $0x88] sm:$0xff]
  %v1945 = vld [vmem:[%s4 + $0x90] sm:$0xff]
  %v1946 = vld [vmem:[%s4 + $0x98] sm:$0xff]
  %v1947 = vld [vmem:[%s4 + $0xa0] sm:$0xff]
  %v1948 = vld [vmem:[%s4 + $0xa8] sm:$0xff]
  %v1949 = vld [vmem:[%s4 + $0xb0] sm:$0xff]
  %v1950 = vld [vmem:[%s4 + $0xb8] sm:$0xff]
  %v1951 = vld [vmem:[%s4 + $0xc0] sm:$0xff]
  %v1952 = vld [vmem:[%s4 + $0xc8] sm:$0xff]
  %v1953 = vld [vmem:[%s4 + $0xd0] sm:$0xff]
  %v1954 = vld [vmem:[%s4 + $0xd8] sm:$0xff]
  %v1955 = vld [vmem:[%s4 + $0xe0] sm:$0xff]
  %v1956 = vld [vmem:[%s4 + $0xe8] sm:$0xff]
  %v1957 = vld [vmem:[%s4 + $0xf0] sm:$0xff]
  %v1958 = vld [vmem:[%s4 + $0xf8] sm:$0xff]
  %v1959 = vld [vmem:[%s4 + $0x100] sm:$0xff]
  %v1960 = vld [vmem:[%s4 + $0x108] sm:$0xff]
  %v1961 = vld [vmem:[%s4 + $0x110] sm:$0xff]
  %v1962 = vld [vmem:[%s4 + $0x118] sm:$0xff]
  %v1963 = vld [vmem:[%s4 + $0x120] sm:$0xff]
  %v1964 = vld [vmem:[%s4 + $0x128] sm:$0xff]
  %v1965 = vld [vmem:[%s4 + $0x130] sm:$0xff]
  %v1966 = vld [vmem:[%s4 + $0x138] sm:$0xff]
  %v1967 = vld [vmem:[%s4 + $0x140] sm:$0xff]
  %v1968 = vld [vmem:[%s4 + $0x148] sm:$0xff]
  %v1969 = vld [vmem:[%s4 + $0x150] sm:$0xff]
  %v1970 = vld [vmem:[%s4 + $0x158] sm:$0xff]
  %v1971 = vld [vmem:[%s4 + $0x160] sm:$0xff]
  %v1972 = vld [vmem:[%s4 + $0x168] sm:$0xff]
  %v1973 = vld [vmem:[%s4 + $0x170] sm:$0xff]
  %v1974 = vld [vmem:[%s4 + $0x178] sm:$0xff]
  %v1975 = vld [vmem:[%s4 + $0x180] sm:$0xff]
  %v1976 = vld [vmem:[%s4 + $0x188] sm:$0xff]
  %v1977 = vld [vmem:[%s4 + $0x190] sm:$0xff]
  %v1978 = vld [vmem:[%s4 + $0x198] sm:$0xff]
  %v1979 = vld [vmem:[%s4 + $0x1a0] sm:$0xff]
  %v1980 = vld [vmem:[%s4 + $0x1a8] sm:$0xff]
  %v1981 = vld [vmem:[%s4 + $0x1b0] sm:$0xff]
  %v1982 = vld [vmem:[%s4 + $0x1b8] sm:$0xff]
  %v1983 = vld [vmem:[%s4 + $0x1c0] sm:$0xff]
  %v1984 = vld [vmem:[%s4 + $0x1c8] sm:$0xff]
  %v1985 = vld [vmem:[%s4 + $0x1d0] sm:$0xff]
  %v1986 = vld [vmem:[%s4 + $0x1d8] sm:$0xff]
  %v1987 = vld [vmem:[%s4 + $0x1e0] sm:$0xff]
  %v1988 = vld [vmem:[%s4 + $0x1e8] sm:$0xff]
  %v1989 = vld [vmem:[%s4 + $0x1f0] sm:$0xff]
  %v1990 = vld [vmem:[%s4 + $0x1f8] sm:$0xff]
  %1991 = vmatpush.msra.mxu0 %v1987
  %1992 = vmatpush.msra.mxu0 %v1983
  %1993 = vmatpush.msra.mxu0 %v1979
  %1994 = vmatpush.msra.mxu0 %v1975
  %1995 = vmatpush.msra.mxu0 %v1971
  %1996 = vmatpush.msra.mxu0 %v1967
  %1997 = vmatpush.msra.mxu0 %v1963
  %1998 = vmatpush.msra.mxu0 %v1959
  %1999 = vmatpush.msra.mxu0 %v1955
  %2000 = vmatpush.msra.mxu0 %v1951
  %2001 = vmatpush.msra.mxu0 %v1947
  %2002 = vmatpush.msra.mxu0 %v1943
  %2003 = vmatpush.msra.mxu0 %v1939
  %2004 = vmatpush.msra.mxu0 %v1935
  %2005 = vmatpush.msra.mxu0 %v1931
  %2006 = vmatpush.msra.mxu0 %v1927
  %2007 = vmatmul.f32.gmra.mxu0 %v1919
  %v2008 = vpop.f32.mrf.mxu0
  %v2009 = vadd.f32 0.0, %v2008
  %2010 = vdwg.mxu0
  %2011 = vmatpush.msra.mxu0 %v1988
  %2012 = vmatpush.msra.mxu0 %v1984
  %2013 = vmatpush.msra.mxu0 %v1980
  %2014 = vmatpush.msra.mxu0 %v1976
  %2015 = vmatpush.msra.mxu0 %v1972
  %2016 = vmatpush.msra.mxu0 %v1968
  %2017 = vmatpush.msra.mxu0 %v1964
  %2018 = vmatpush.msra.mxu0 %v1960
  %2019 = vmatpush.msra.mxu0 %v1956
  %2020 = vmatpush.msra.mxu0 %v1952
  %2021 = vmatpush.msra.mxu0 %v1948
  %2022 = vmatpush.msra.mxu0 %v1944
  %2023 = vmatpush.msra.mxu0 %v1940
  %2024 = vmatpush.msra.mxu0 %v1936
  %2025 = vmatpush.msra.mxu0 %v1932
  %2026 = vmatpush.msra.mxu0 %v1928
  %2027 = vmatmul.f32.gmra.mxu0 %v1919
  %v2028 = vpop.f32.mrf.mxu0
  %v2029 = vadd.f32 0.0, %v2028
  %2030 = vdwg.mxu0
  %2031 = vmatpush.msra.mxu0 %v1989
  %2032 = vmatpush.msra.mxu0 %v1985
  %2033 = vmatpush.msra.mxu0 %v1981
  %2034 = vmatpush.msra.mxu0 %v1977
  %2035 = vmatpush.msra.mxu0 %v1973
  %2036 = vmatpush.msra.mxu0 %v1969
  %2037 = vmatpush.msra.mxu0 %v1965
  %2038 = vmatpush.msra.mxu0 %v1961
  %2039 = vmatpush.msra.mxu0 %v1957
  %2040 = vmatpush.msra.mxu0 %v1953
  %2041 = vmatpush.msra.mxu0 %v1949
  %2042 = vmatpush.msra.mxu0 %v1945
  %2043 = vmatpush.msra.mxu0 %v1941
  %2044 = vmatpush.msra.mxu0 %v1937
  %2045 = vmatpush.msra.mxu0 %v1933
  %2046 = vmatpush.msra.mxu0 %v1929
  %2047 = vmatmul.f32.gmra.mxu0 %v1919
  %v2048 = vpop.f32.mrf.mxu0
  %v2049 = vadd.f32 0.0, %v2048
  %2050 = vdwg.mxu0
  %2051 = vmatpush.msra.mxu0 %v1990
  %2052 = vmatpush.msra.mxu0 %v1986
  %2053 = vmatpush.msra.mxu0 %v1982
  %2054 = vmatpush.msra.mxu0 %v1978
  %2055 = vmatpush.msra.mxu0 %v1974
  %2056 = vmatpush.msra.mxu0 %v1970
  %2057 = vmatpush.msra.mxu0 %v1966
  %2058 = vmatpush.msra.mxu0 %v1962
  %2059 = vmatpush.msra.mxu0 %v1958
  %2060 = vmatpush.msra.mxu0 %v1954
  %2061 = vmatpush.msra.mxu0 %v1950
  %2062 = vmatpush.msra.mxu0 %v1946
  %2063 = vmatpush.msra.mxu0 %v1942
  %2064 = vmatpush.msra.mxu0 %v1938
  %2065 = vmatpush.msra.mxu0 %v1934
  %2066 = vmatpush.msra.mxu0 %v1930
  %2067 = vmatmul.f32.gmra.mxu0 %v1919
  %v2068 = vpop.f32.mrf.mxu0
  %v2069 = vadd.f32 0.0, %v2068
  %2070 = vdwg.mxu0
  %v2071 = vadd.f32 %v1923, %v2009
  %v2072 = vadd.f32 %v1924, %v2029
  %v2073 = vadd.f32 %v1925, %v2049
  %v2074 = vadd.f32 %v1926, %v2069
  %v2075 = vxor.u32 %v2071, 2147483648
  %v2076 = vxor.u32 %v2072, 2147483648
  %v2077 = vxor.u32 %v2073, 2147483648
  %v2078 = vmul.f32 %v2075, 1.442695
  %v2079 = vpow.pop %v2078
  %v2080 = vmul.f32 %v2076, 1.442695
  %v2081 = vpow.pop %v2080
  %v2082 = vmul.f32 %v2077, 1.442695
  %v2083 = vpow.pop %v2082
  %v2084 = vadd.f32 %v2079, 1.0
  %v2085 = vadd.f32 %v2081, 1.0
  %v2086 = vadd.f32 %v2083, 1.0
  %v2087 = vrcp.pop %v2084
  %v2088 = vmul.f32 %v2084, %v2087
  %v2089 = vsub.f32 1.0, %v2088
  %v2090 = vmul.f32 %v2087, %v2089
  %v2091 = vadd.f32 %v2087, %v2090
  %vm2092 = vweird.f32 %v2084
  %vm2093 = vweird.f32 %v2087
  %vm2094 = vmor %vm2092, %vm2093
  %v2095 = vsel %vm2094, %v2087, %v2091
  %v2096 = vand.u32 2147483647, %v2084
  %vm2097 = vcmp.eq.f32.partialorder %v2096, 8.507059e+37
  %v2098 = vand.u32 %v2084, 2147483648
  %v2099 = vor.u32 1.1754944e-38, %v2098
  %v2100 = vsel %vm2097, %v2099, %v2095
  %v2101 = vmul.f32 1.0, %v2100
  %v2102 = vrcp.pop %v2085
  %v2103 = vmul.f32 %v2085, %v2102
  %v2104 = vsub.f32 1.0, %v2103
  %v2105 = vmul.f32 %v2102, %v2104
  %v2106 = vadd.f32 %v2102, %v2105
  %vm2107 = vweird.f32 %v2085
  %vm2108 = vweird.f32 %v2102
  %vm2109 = vmor %vm2107, %vm2108
  %v2110 = vsel %vm2109, %v2102, %v2106
  %v2111 = vand.u32 2147483647, %v2085
  %vm2112 = vcmp.eq.f32.partialorder %v2111, 8.507059e+37
  %v2113 = vand.u32 %v2085, 2147483648
  %v2114 = vor.u32 1.1754944e-38, %v2113
  %v2115 = vsel %vm2112, %v2114, %v2110
  %v2116 = vmul.f32 1.0, %v2115
  %v2117 = vrcp.pop %v2086
  %v2118 = vmul.f32 %v2086, %v2117
  %v2119 = vsub.f32 1.0, %v2118
  %v2120 = vmul.f32 %v2117, %v2119
  %v2121 = vadd.f32 %v2117, %v2120
  %vm2122 = vweird.f32 %v2086
  %vm2123 = vweird.f32 %v2117
  %vm2124 = vmor %vm2122, %vm2123
  %v2125 = vsel %vm2124, %v2117, %v2121
  %v2126 = vand.u32 2147483647, %v2086
  %vm2127 = vcmp.eq.f32.partialorder %v2126, 8.507059e+37
  %v2128 = vand.u32 %v2086, 2147483648
  %v2129 = vor.u32 1.1754944e-38, %v2128
  %v2130 = vsel %vm2127, %v2129, %v2125
  %v2131 = vmul.f32 1.0, %v2130
  %v2132 = vtanh.pop %v2074
  %v2133 = vmul.f32 %v2116, %v1917
  %v2134 = vmul.f32 %v2101, %v2132
  %v2135 = vadd.f32 %v2133, %v2134
  %v2136 = vtanh.pop %v2135
  %v2137 = vmul.f32 %v2131, %v2136
  %s2138 = scalar_lea.vmem [#allocation5], 56
  %2139 = vst [vmem:[%s2138] sm:$0xff] %v2137
  %2140 = vst [vmem:[#allocation2] sm:$0xff] %v2137
  %2141 = vst [vmem:[#allocation3] sm:$0xff] %v2135
  %2142 = vst [vmem:[%s9] sm:$0xff] %v2137
  %2143 = vst [vmem:[%s10] sm:$0xff] %v2135
  %v2144 = vld [vmem:[#allocation5] sm:$0xff]
  %v2145 = vld [vmem:[#allocation5 + $0x8] sm:$0xff]
  %v2146 = vld [vmem:[#allocation5 + $0x10] sm:$0xff]
  %v2147 = vld [vmem:[#allocation5 + $0x18] sm:$0xff]
  %v2148 = vld [vmem:[#allocation5 + $0x20] sm:$0xff]
  %v2149 = vld [vmem:[#allocation5 + $0x28] sm:$0xff]
  %v2150 = vld [vmem:[#allocation5 + $0x30] sm:$0xff]
  %v2151 = vld [vmem:[#allocation5 + $0x38] sm:$0xff]
  %v2152 = vld [vmem:[%s6] sm:$0xff]
  %v2153 = vld [vmem:[%s6 + $0x8] sm:$0xff]
  %v2154 = vld [vmem:[%s6 + $0x10] sm:$0xff]
  %v2155 = vld [vmem:[%s6 + $0x18] sm:$0xff]
  %v2156 = vld [vmem:[%s6 + $0x20] sm:$0xff]
  %v2157 = vld [vmem:[%s6 + $0x28] sm:$0xff]
  %v2158 = vld [vmem:[%s6 + $0x30] sm:$0xff]
  %v2159 = vld [vmem:[%s6 + $0x38] sm:$0xff]
  %v2160 = vld [vmem:[%s6 + $0x40] sm:$0xff]
  %v2161 = vld [vmem:[%s6 + $0x48] sm:$0xff]
  %v2162 = vld [vmem:[%s6 + $0x50] sm:$0xff]
  %v2163 = vld [vmem:[%s6 + $0x58] sm:$0xff]
  %v2164 = vld [vmem:[%s6 + $0x60] sm:$0xff]
  %v2165 = vld [vmem:[%s6 + $0x68] sm:$0xff]
  %v2166 = vld [vmem:[%s6 + $0x70] sm:$0xff]
  %v2167 = vld [vmem:[%s6 + $0x78] sm:$0xff]
  %v2168 = vld [vmem:[%s7] sm:$0x1]
  %v2170 = vperm.slane %v2168, 0
  %2172 = vmatpush.msra.mxu0 %v2167
  %2173 = vmatpush.msra.mxu0 %v2166
  %2174 = vmatpush.msra.mxu0 %v2165
  %2175 = vmatpush.msra.mxu0 %v2164
  %2176 = vmatpush.msra.mxu0 %v2163
  %2177 = vmatpush.msra.mxu0 %v2162
  %2178 = vmatpush.msra.mxu0 %v2161
  %2179 = vmatpush.msra.mxu0 %v2160
  %2180 = vmatpush.msra.mxu0 %v2159
  %2181 = vmatpush.msra.mxu0 %v2158
  %2182 = vmatpush.msra.mxu0 %v2157
  %2183 = vmatpush.msra.mxu0 %v2156
  %2184 = vmatpush.msra.mxu0 %v2155
  %2185 = vmatpush.msra.mxu0 %v2154
  %2186 = vmatpush.msra.mxu0 %v2153
  %2187 = vmatpush.msra.mxu0 %v2152
  %2188 = vmatmul.f32.gmra.mxu0 %v2144
  %v2189 = vpop.f32.mrf.mxu0
  %v2190 = vadd.f32 %v2170, %v2189
  %2191 = vmatmul.f32.gmra.mxu0 %v2145
  %v2192 = vpop.f32.mrf.mxu0
  %v2193 = vadd.f32 %v2170, %v2192
  %2194 = vmatmul.f32.gmra.mxu0 %v2146
  %v2195 = vpop.f32.mrf.mxu0
  %v2196 = vadd.f32 %v2170, %v2195
  %2197 = vmatmul.f32.gmra.mxu0 %v2147
  %v2198 = vpop.f32.mrf.mxu0
  %v2199 = vadd.f32 %v2170, %v2198
  %2200 = vmatmul.f32.gmra.mxu0 %v2148
  %v2201 = vpop.f32.mrf.mxu0
  %v2202 = vadd.f32 %v2170, %v2201
  %2203 = vmatmul.f32.gmra.mxu0 %v2149
  %v2204 = vpop.f32.mrf.mxu0
  %v2205 = vadd.f32 %v2170, %v2204
  %2206 = vmatmul.f32.gmra.mxu0 %v2150
  %v2207 = vpop.f32.mrf.mxu0
  %v2208 = vadd.f32 %v2170, %v2207
  %2209 = vmatmul.f32.gmra.mxu0 %v2151
  %v2210 = vpop.f32.mrf.mxu0
  %v2211 = vadd.f32 %v2170, %v2210
  %2212 = vdwg.mxu0
  %2213 = vst [vmem:[%s8] sm:$0xff] %v2190
  %2214 = vst [vmem:[%s8 + $0x8] sm:$0xff] %v2193
  %2215 = vst [vmem:[%s8 + $0x10] sm:$0xff] %v2196
  %2216 = vst [vmem:[%s8 + $0x18] sm:$0xff] %v2199
  %2217 = vst [vmem:[%s8 + $0x20] sm:$0xff] %v2202
  %2218 = vst [vmem:[%s8 + $0x28] sm:$0xff] %v2205
  %2219 = vst [vmem:[%s8 + $0x30] sm:$0xff] %v2208
  %2220 = vst [vmem:[%s8 + $0x38] sm:$0xff] %v2211
  // Predicated region
  $region38: #{r2d2_forward.1} parent=0 // pred_check
    _
  $region39: #{r2d2_forward.1} parent=0 // pred_check_branch
    %2222 = sbr.rel (0) target = $region41
  $region40: #{r2d2_forward.1} parent=0 // pred_region
    _
  $region41: #{r2d2_forward.1} parent=0 // pred_fallthru
    _
  // Predicated region
  $region42: #{r2d2_forward.1} parent=0 // pred_check
    _
  $region43: #{r2d2_forward.1} parent=0 // pred_check_branch
    %2224 = sbr.rel (0) target = $region45
  $region44: #{r2d2_forward.1} parent=0 // pred_region
    _
  $region45: #{r2d2_forward.1} parent=0 // pred_fallthru
    _
  // Predicated region
  $region46: #{r2d2_forward.1} parent=0 // pred_check
    _
  $region47: #{r2d2_forward.1} parent=0 // pred_check_branch
    %2226 = sbr.rel (0) target = $region49
  $region48: #{r2d2_forward.1} parent=0 // pred_region
    _
  $region49: #{r2d2_forward.1} parent=0 // pred_fallthru
    _
  // Predicated region
  $region50: #{r2d2_forward.1} parent=0 // pred_check
    _
  $region51: #{r2d2_forward.1} parent=0 // pred_check_branch
    %2228 = sbr.rel (0) target = $region53
  $region52: #{r2d2_forward.1} parent=0 // pred_region
    _
  $region53: #{r2d2_forward.1} parent=0 // pred_fallthru
    _
  // Predicated region
  $region54: #{r2d2_forward.1} parent=0 // pred_check
    _
  $region55: #{r2d2_forward.1} parent=0 // pred_check_branch
    %2230 = sbr.rel (0) target = $region57
  $region56: #{r2d2_forward.1} parent=0 // pred_region
    _
  $region57: #{r2d2_forward.1} parent=0 // pred_fallthru
    _
  // Predicated region
  $region58: #{r2d2_forward.1} parent=0 // pred_check
    _
  $region59: #{r2d2_forward.1} parent=0 // pred_check_branch
    %2232 = sbr.rel (0) target = $region61
  $region60: #{r2d2_forward.1} parent=0 // pred_region
    _
  $region61: #{r2d2_forward.1} parent=0 // pred_fallthru
    _

</llo_original>
